<compile_context>
chip_gen: v6e
topology: v6e:2x2x1
jax: 0.10.0
libtpu: 0.0.40
codegen_flags: <defaults>
</compile_context>

<pallas_src>
import functools

import jax
import jax.numpy as jnp
from jax.experimental import pallas as pl
from jax.experimental.pallas import tpu as pltpu


# ----------------------------- Pallas kernel ---------------------------------
def _residual_block_kernel(x_ref, cheb_ref, w1_ref, wt_ref, bt_ref, br_ref, o_ref,
                           *, K, TFc, KTFc):
    """One grid step processes `bb` batches in flat 2-D layouts.

    x_ref   : (bb, N, T*C)           input, (time, channel) flattened into lanes
    cheb_ref: (K, bb*N, bb*N)        I_bb (x) T_k^T (block-diagonal over the bb batches)
    w1_ref  : (T*C, K*T*Fc + To*Ft)  [per-k block-diag Theta_k | strided 1x1 residual]
    wt_ref  : (T*Fc, To*Ft)          block-tridiagonal 3-tap temporal conv (strided)
    bt_ref  : (1, To*Ft)             time-conv bias tiled over To            (f32)
    br_ref  : (1, To*Ft)             residual-conv bias tiled over To        (f32)
    o_ref   : (bb, N, To*Ft)         lane-dense output block
    """
    f32 = jnp.float32
    bb, N, TC = x_ref.shape
    rows = bb * N
    cdt = x_ref.dtype                        # compute dtype (bf16 on the fast path)

    x2d = x_ref[...].reshape(rows, TC)

    # ---- ONE fused MXU pass over x: all K Chebyshev Theta_k channel mixings AND
    #      the strided 1x1 residual conv share the x operand.
    y = jnp.dot(x2d, w1_ref[...], preferred_element_type=f32)    # (rows, KTFc+ToFt)
    res = y[:, KTFc:] + br_ref[...]                              # (rows, ToFt) f32

    # ---- Chebyshev vertex mixing: plain 2-D dots with M = bb*N MXU rows,
    #      no per-batch Python loop and no concatenate.
    sg = jnp.zeros((rows, TFc), f32)
    for k in range(K):                                           # K static & small
        yk = y[:, k * TFc:(k + 1) * TFc].astype(cdt)
        sg = sg + jnp.dot(cheb_ref[k], yk, preferred_element_type=f32)
    sg = jnp.maximum(sg, 0.0).astype(cdt)                        # ReLU

    # ---- temporal (1,3) conv: taps, zero pad and time stride folded into wt_ref.
    tc = jnp.dot(sg, wt_ref[...], preferred_element_type=f32) + bt_ref[...]

    # ---- wave_net_activation with a single EUP exp:
    #      tanh(x)*sigmoid(x) == (1-u)/(1+u^2), u=e^{-x}; computed with u=e^{-|x|}
    #      for overflow safety (x<0 branch of the identity is -u*(1-u)/(1+u^2)).
    u = jnp.exp(-jnp.abs(tc))
    core = (1.0 - u) * pl.reciprocal(1.0 + u * u, approx=True)
    gated = jnp.where(tc >= 0.0, core, -u * core)

    out = res + gated                                            # (rows, ToFt)
    o_ref[...] = out.reshape(bb, N, out.shape[-1]).astype(o_ref.dtype)


# ----------------------------- weight folding --------------------------------
def _build_weights(cheb, theta, w_time, b_time, w_res, b_res, T, s, bb, compute_dtype):
    """Fold K, the 3 conv taps, zero padding, stride and the 1x1 conv into flat
    block-structured weights built once in the wrapper (outside the kernel).

    TODO(synk): this folded form is a small-T optimization (theta/wt blocks scale
    O(T^2) and carry structural zeros); for long sequences, tile T in the grid and
    implement the 3-tap conv with pltpu.roll + three dense (Fc->Ft) matmuls.
    """
    K, N, _ = cheb.shape
    _, C, Fc = theta.shape
    Ft = w_time.shape[0]
    f32 = jnp.float32
    T_out = (T - 1) // s + 1
    pos = jnp.arange(T_out) * s                 # input time index per output step
    t_in = jnp.arange(T)

    cheb_t = jnp.transpose(cheb, (0, 2, 1)).astype(f32)           # (K, N, N) = T_k^T
    eye_bb = jnp.eye(bb, dtype=f32)
    cheb_blk = jnp.stack([jnp.kron(eye_bb, cheb_t[k]) for k in range(K)])  # (K,bb*N,bb*N)

    eye_t = jnp.eye(T, dtype=f32)
    theta_w = jnp.concatenate(                                    # (T*C, K*T*Fc)
        [jnp.kron(eye_t, theta[k].astype(f32)) for k in range(K)], axis=1)

    wt3 = w_time.reshape(Ft, Fc, 3).astype(f32)
    wt_big = jnp.zeros((T * Fc, T_out * Ft), f32)
    for j in range(3):        # tap j reads input time pos + j - 1 (zero pad outside)
        sel = (t_in[:, None] == pos[None, :] + (j - 1)).astype(f32)   # (T, T_out)
        wt_big = wt_big + jnp.kron(sel, wt3[:, :, j].T)

    sel_r = (t_in[:, None] == pos[None, :]).astype(f32)
    wr_big = jnp.kron(sel_r, w_res.reshape(Ft, C).T.astype(f32))      # (T*C, T_out*Ft)

    # Fuse the two weights that consume x into one wide matrix.
    w1 = jnp.concatenate([theta_w, wr_big], axis=1)               # (T*C, K*T*Fc + To*Ft)

    bt_big = jnp.tile(b_time.astype(f32), T_out)[None, :]         # (1, To*Ft) f32
    br_big = jnp.tile(b_res.astype(f32), T_out)[None, :]

    cdt = compute_dtype
    return (cheb_blk.astype(cdt), w1.astype(cdt), wt_big.astype(cdt),
            bt_big, br_big, T_out)


# ----------------------------- sizing heuristics ------------------------------
def _num_parallel_cores():
    """Generation-aware grid sizing: 1-TC chips (v5e/v6e) want grid=(1,)/max bb;
    2-TC (v7x) and megacore (v4/v5p) chips want >= 2 'parallel' grid steps."""
    try:
        kind = jax.devices()[0].device_kind.lower()
    except Exception:
        return 1
    return 2 if any(tag in kind for tag in ("v7", "v4", "v5p")) else 1


def _pick_bb(B, N, *, requested, footprint, budget, min_steps, max_rows=1024):
    divisors = [d for d in range(1, B + 1) if B % d == 0]
    if requested is not None:
        requested = max(1, min(int(requested), B))
        return max(d for d in divisors if d <= requested)      # round down to a divisor
    need_steps = min(min_steps, B)
    best = 1
    for bb in divisors:                                         # ascending -> keep largest ok
        if B // bb < need_steps:
            continue
        if bb != 1 and bb * N > max_rows:
            continue
        if bb != 1 and footprint(bb) > budget:
            continue
        best = bb
    return best


# ----------------------------- public wrapper ---------------------------------
def residual_block(x, cheb, theta, w_time, b_time, w_res, b_res,
                   time_strides=1, batches_per_step=None,
                   compute_dtype=jnp.float32, flat_output=False):
    """x: (B, N, C_in, T).  Returns (B, N, F_time, T_out), or (B, N, T_out*F_time)
    lane-dense when flat_output=True (use that layout between stacked blocks)."""
    B, N, C, T = x.shape
    K = cheb.shape[0]
    Fc = theta.shape[2]
    Ft = w_time.shape[0]
    T_out = (T - 1) // time_strides + 1
    TC, TFc, KTFc, ToFt = T * C, T * Fc, K * T * Fc, T_out * Ft
    cbytes = jnp.dtype(compute_dtype).itemsize

    def footprint(bb):                 # per-step VMEM estimate (bytes)
        rows = bb * N
        blocks = 2 * rows * TC * cbytes + 2 * rows * ToFt * x.dtype.itemsize  # dbl-buffered
        weights = (K * rows * rows + TC * (KTFc + ToFt) + TFc * ToFt) * cbytes + 2 * ToFt * 4
        interm = rows * (KTFc + 3 * ToFt + TFc) * 4                           # f32 values
        return blocks + weights + interm

    bb = _pick_bb(B, N, requested=batches_per_step, footprint=footprint,
                  budget=20 << 20, min_steps=_num_parallel_cores())
    grid = (B // bb,)

    cheb_blk, w1, wt_big, bt_big, br_big, _ = _build_weights(
        cheb, theta, w_time, b_time, w_res, b_res, T, time_strides, bb, compute_dtype)

    # glue: channel-last, (time, channel)-flattened, compute-dtype input layout.
    x_flat = jnp.transpose(x, (0, 1, 3, 2)).reshape(B, N, TC).astype(compute_dtype)

    vmem_limit = int(min(max(2 * footprint(bb) + (8 << 20), 32 << 20), 56 << 20))
    kernel = functools.partial(_residual_block_kernel, K=K, TFc=TFc, KTFc=KTFc)

    def call(single_buffer_weights):
        def wspec(shape, index_map):   # grid-invariant weights
            if single_buffer_weights:
                return pl.BlockSpec(shape, index_map, pipeline_mode=pl.Buffered(1))
            return pl.BlockSpec(shape, index_map)
        return pl.pallas_call(
            kernel,
            out_shape=jax.ShapeDtypeStruct((B, N, ToFt), x.dtype),
            grid=grid,
            in_specs=[
                pl.BlockSpec((bb, N, TC), lambda b: (b, 0, 0)),
                wspec((K, bb * N, bb * N), lambda b: (0, 0, 0)),
                wspec((TC, KTFc + ToFt), lambda b: (0, 0)),
                wspec((TFc, ToFt), lambda b: (0, 0)),
                wspec((1, ToFt), lambda b: (0, 0)),
                wspec((1, ToFt), lambda b: (0, 0)),
            ],
            out_specs=pl.BlockSpec((bb, N, ToFt), lambda b: (b, 0, 0)),
            compiler_params=pltpu.CompilerParams(
                dimension_semantics=("parallel",),
                vmem_limit_bytes=vmem_limit),
        )(x_flat, cheb_blk, w1, wt_big, bt_big, br_big)

    try:
        out = call(True)
    except Exception:
        # pl.Buffered(1) single-buffering unavailable on this jax version; default
        # double-buffering is functionally identical (just 2x weight VMEM).
        out = call(False)

    # TODO(synk): pad ToFt up to a multiple of 128 for arbitrary (Ft, T_out) so the
    # output stays lane-dense; current test shapes (256/128) are already aligned.
    if flat_output:
        return out                                     # (B, N, T_out*Ft), lane-dense
    out = out.reshape(B, N, T_out, Ft)
    return jnp.transpose(out, (0, 1, 3, 2))            # (B, N, F_time, T_out)


# ---------------- pure-JAX reference (mirrors the PyTorch module) -------------
def reference(x, cheb, theta, w_time, b_time, w_res, b_res, s=1):
    B, N, C, T = x.shape
    K = cheb.shape[0]
    Fc = theta.shape[2]
    outs = []
    for t in range(T):
        gs = x[:, :, :, t]                                  # (B, N, C)
        o = jnp.zeros((B, N, Fc), jnp.float32)
        for k in range(K):
            rhs = jnp.einsum('bmc,mn->bnc', gs, cheb[k])
            o = o + rhs @ theta[k]
        outs.append(o[..., None])
    sgcn = jax.nn.relu(jnp.concatenate(outs, axis=-1))      # (B, N, Fc, T)

    inp = jnp.transpose(sgcn, (0, 2, 1, 3))                 # (B, Fc, N, T)
    tc = jax.lax.conv_general_dilated(
        inp, w_time, window_strides=(1, s), padding=((0, 0), (1, 1)),
        dimension_numbers=('NCHW', 'OIHW', 'NCHW'))
    tc = tc + b_time[None, :, None, None]
    gated = jnp.tanh(tc) * jax.nn.sigmoid(tc)

    xr = jnp.transpose(x, (0, 2, 1, 3))                     # (B, C, N, T)
    res = jax.lax.conv_general_dilated(
        xr, w_res, window_strides=(1, s), padding=((0, 0), (0, 0)),
        dimension_numbers=('NCHW', 'OIHW', 'NCHW'))
    res = res + b_res[None, :, None, None]
    out = res + gated                                       # (B, Ft, N, T')
    return jnp.transpose(out, (0, 2, 1, 3))                 # (B, N, Ft, T')


if __name__ == "__main__":
    # small shapes consistent with the module's Residual_block
    # TODO(synk): TCNSubmodule's final_conv / LSTM / FullConnecLayer tail is out of
    # scope here; stack this block with flat_output=True when building the full TCN.
    B, N, C_in, T = 8, 16, 4, 8
    K, F_cheb, F_time = 3, 32, 32

    key = jax.random.PRNGKey(0)
    k_adj, k_x, k_th, k_wt, k_bt, k_wr, k_br = jax.random.split(key, 7)

    # deterministic Chebyshev polynomials of a scaled graph Laplacian
    a = jax.random.uniform(k_adj, (N, N))
    adj = (a + a.T) * 0.5
    adj = adj * (1.0 - jnp.eye(N))
    deg = jnp.sum(adj, axis=1)
    d_inv_sqrt = 1.0 / jnp.sqrt(deg + 1e-6)
    lap = jnp.eye(N) - (d_inv_sqrt[:, None] * adj * d_inv_sqrt[None, :])
    l_tilde = lap - jnp.eye(N)          # lambda_max ~= 2 approximation
    chebs = [jnp.eye(N), l_tilde]
    for _ in range(2, K):
        chebs.append(2.0 * l_tilde @ chebs[-1] - chebs[-2])
    cheb = jnp.stack(chebs[:K]).astype(jnp.float32)          # (K, N, N)

    # deterministic parameters (module __init__ shapes)
    theta = 0.1 * jax.random.normal(k_th, (K, C_in, F_cheb), jnp.float32)
    w_time = 0.1 * jax.random.normal(k_wt, (F_time, F_cheb, 1, 3), jnp.float32)
    b_time = 0.1 * jax.random.normal(k_bt, (F_time,), jnp.float32)
    w_res = 0.1 * jax.random.normal(k_wr, (F_time, C_in, 1, 1), jnp.float32)
    b_res = 0.1 * jax.random.normal(k_br, (F_time,), jnp.float32)

    x = jax.random.normal(k_x, (B, N, C_in, T), jnp.float32)

    # (stride, compute dtype, tolerance).  The f32 tolerance is dominated by the
    # approx-reciprocal in the fused gate; the bf16 tolerance by bf16 rounding
    # through three chained matmuls (f32 accumulation).
    checks = [(1, jnp.float32, 1e-2), (2, jnp.float32, 1e-2), (1, jnp.bfloat16, 1.5e-1)]
    for stride, cdt, tol in checks:
        out = residual_block(x, cheb, theta, w_time, b_time, w_res, b_res,
                             time_strides=stride, compute_dtype=cdt)
        jax.block_until_ready(out)
        ref = reference(x, cheb, theta, w_time, b_time, w_res, b_res, s=stride)
        assert out.shape == ref.shape, (stride, out.shape, ref.shape)
        err = float(jnp.max(jnp.abs(out.astype(jnp.float32) - ref)))
        assert err < tol, f"stride={stride} dtype={cdt} max abs error {err}"

    print("KERNEL_OK")
</pallas_src>

<mosaic_0001>
module attributes {stable_mosaic.version = 11 : i64} {
  func.func @_residual_block_kernel(%arg0: i32, %arg1: memref<8x16x32xf32, #tpu.memory_space<vmem>>, %arg2: memref<3x128x128xf32, #tpu.memory_space<vmem>>, %arg3: memref<32x1024xf32, #tpu.memory_space<vmem>>, %arg4: memref<256x256xf32, #tpu.memory_space<vmem>>, %arg5: memref<1x256xf32, #tpu.memory_space<vmem>>, %arg6: memref<1x256xf32, #tpu.memory_space<vmem>>, %arg7: memref<8x16x256xf32, #tpu.memory_space<vmem>>) attributes {dimension_semantics = [#tpu.dimension_semantics<parallel>], iteration_bounds = array<i64: 1>, scalar_prefetch = 0 : i64, scratch_operands = 0 : i64, tpu.core_type = #tpu.core_type<tc>, window_params = [{transform_indices = @transform_0, window_bounds = array<i64: 8, 16, 32>}, {pipeline_mode = #tpu.pipeline_mode<synchronous>, transform_indices = @transform_1, window_bounds = array<i64: 3, 128, 128>}, {pipeline_mode = #tpu.pipeline_mode<synchronous>, transform_indices = @transform_2, window_bounds = array<i64: 32, 1024>}, {pipeline_mode = #tpu.pipeline_mode<synchronous>, transform_indices = @transform_3, window_bounds = array<i64: 256, 256>}, {pipeline_mode = #tpu.pipeline_mode<synchronous>, transform_indices = @transform_4, window_bounds = array<i64: 1, 256>}, {pipeline_mode = #tpu.pipeline_mode<synchronous>, transform_indices = @transform_5, window_bounds = array<i64: 1, 256>}, {transform_indices = @transform_6, window_bounds = array<i64: 8, 16, 256>}]} {
    %c0 = arith.constant 0 : index
    %c0_0 = arith.constant 0 : index
    %c0_1 = arith.constant 0 : index
    %0 = vector.load %arg1[%c0, %c0_0, %c0_1] : memref<8x16x32xf32, #tpu.memory_space<vmem>>, vector<8x16x32xf32>
    %1 = vector.shape_cast %0 : vector<8x16x32xf32> to vector<128x32xf32>
    %c0_2 = arith.constant 0 : index
    %c0_3 = arith.constant 0 : index
    %2 = vector.load %arg3[%c0_2, %c0_3] : memref<32x1024xf32, #tpu.memory_space<vmem>>, vector<32x1024xf32>
    %cst = arith.constant dense<0.000000e+00> : vector<128x1024xf32>
    %3 = tpu.matmul %1, %2, %cst {dimension_numbers = #tpu.dot_dimension_numbers<[1], [0], [0], [1], [0, 0, 1, 1], [], []>} : vector<128x32xf32>, vector<32x1024xf32>, vector<128x1024xf32> -> vector<128x1024xf32>
    %4 = vector.extract_strided_slice %3 {offsets = [0, 768], sizes = [128, 256], strides = [1, 1]} : vector<128x1024xf32> to vector<128x256xf32>
    %c0_4 = arith.constant 0 : index
    %c0_5 = arith.constant 0 : index
    %5 = vector.load %arg6[%c0_4, %c0_5] : memref<1x256xf32, #tpu.memory_space<vmem>>, vector<1x256xf32>
    %6 = vector.broadcast %5 : vector<1x256xf32> to vector<128x256xf32>
    %7 = arith.addf %4, %6 : vector<128x256xf32>
    %cst_6 = arith.constant 0.000000e+00 : f32
    %8 = vector.broadcast %cst_6 : f32 to vector<128x256xf32>
    %9 = vector.extract_strided_slice %3 {offsets = [0, 0], sizes = [128, 256], strides = [1, 1]} : vector<128x1024xf32> to vector<128x256xf32>
    %c0_7 = arith.constant 0 : index
    %c0_8 = arith.constant 0 : index
    %c0_9 = arith.constant 0 : index
    %10 = vector.load %arg2[%c0_7, %c0_8, %c0_9] : memref<3x128x128xf32, #tpu.memory_space<vmem>>, vector<1x128x128xf32>
    %11 = vector.shape_cast %10 : vector<1x128x128xf32> to vector<128x128xf32>
    %cst_10 = arith.constant dense<0.000000e+00> : vector<128x256xf32>
    %12 = tpu.matmul %11, %9, %cst_10 {dimension_numbers = #tpu.dot_dimension_numbers<[1], [0], [0], [1], [0, 0, 1, 1], [], []>} : vector<128x128xf32>, vector<128x256xf32>, vector<128x256xf32> -> vector<128x256xf32>
    %13 = arith.addf %8, %12 : vector<128x256xf32>
    %14 = vector.extract_strided_slice %3 {offsets = [0, 256], sizes = [128, 256], strides = [1, 1]} : vector<128x1024xf32> to vector<128x256xf32>
    %c1 = arith.constant 1 : index
    %c0_11 = arith.constant 0 : index
    %c0_12 = arith.constant 0 : index
    %15 = vector.load %arg2[%c1, %c0_11, %c0_12] : memref<3x128x128xf32, #tpu.memory_space<vmem>>, vector<1x128x128xf32>
    %16 = vector.shape_cast %15 : vector<1x128x128xf32> to vector<128x128xf32>
    %cst_13 = arith.constant dense<0.000000e+00> : vector<128x256xf32>
    %17 = tpu.matmul %16, %14, %cst_13 {dimension_numbers = #tpu.dot_dimension_numbers<[1], [0], [0], [1], [0, 0, 1, 1], [], []>} : vector<128x128xf32>, vector<128x256xf32>, vector<128x256xf32> -> vector<128x256xf32>
    %18 = arith.addf %13, %17 : vector<128x256xf32>
    %19 = vector.extract_strided_slice %3 {offsets = [0, 512], sizes = [128, 256], strides = [1, 1]} : vector<128x1024xf32> to vector<128x256xf32>
    %c2 = arith.constant 2 : index
    %c0_14 = arith.constant 0 : index
    %c0_15 = arith.constant 0 : index
    %20 = vector.load %arg2[%c2, %c0_14, %c0_15] : memref<3x128x128xf32, #tpu.memory_space<vmem>>, vector<1x128x128xf32>
    %21 = vector.shape_cast %20 : vector<1x128x128xf32> to vector<128x128xf32>
    %cst_16 = arith.constant dense<0.000000e+00> : vector<128x256xf32>
    %22 = tpu.matmul %21, %19, %cst_16 {dimension_numbers = #tpu.dot_dimension_numbers<[1], [0], [0], [1], [0, 0, 1, 1], [], []>} : vector<128x128xf32>, vector<128x256xf32>, vector<128x256xf32> -> vector<128x256xf32>
    %23 = arith.addf %18, %22 : vector<128x256xf32>
    %cst_17 = arith.constant 0.000000e+00 : f32
    %24 = vector.broadcast %cst_17 : f32 to vector<128x256xf32>
    %25 = arith.maximumf %23, %24 : vector<128x256xf32>
    %c0_18 = arith.constant 0 : index
    %c0_19 = arith.constant 0 : index
    %26 = vector.load %arg4[%c0_18, %c0_19] : memref<256x256xf32, #tpu.memory_space<vmem>>, vector<256x256xf32>
    %cst_20 = arith.constant dense<0.000000e+00> : vector<128x256xf32>
    %27 = tpu.matmul %25, %26, %cst_20 {dimension_numbers = #tpu.dot_dimension_numbers<[1], [0], [0], [1], [0, 0, 1, 1], [], []>} : vector<128x256xf32>, vector<256x256xf32>, vector<128x256xf32> -> vector<128x256xf32>
    %c0_21 = arith.constant 0 : index
    %c0_22 = arith.constant 0 : index
    %28 = vector.load %arg5[%c0_21, %c0_22] : memref<1x256xf32, #tpu.memory_space<vmem>>, vector<1x256xf32>
    %29 = vector.broadcast %28 : vector<1x256xf32> to vector<128x256xf32>
    %30 = arith.addf %27, %29 : vector<128x256xf32>
    %31 = math.absf %30 : vector<128x256xf32>
    %cst_23 = arith.constant 0.000000e+00 : f32
    %32 = vector.broadcast %cst_23 : f32 to vector<128x256xf32>
    %33 = arith.subf %32, %31 : vector<128x256xf32>
    %34 = math.exp %33 : vector<128x256xf32>
    %cst_24 = arith.constant 1.000000e+00 : f32
    %35 = vector.broadcast %cst_24 : f32 to vector<128x256xf32>
    %36 = arith.subf %35, %34 : vector<128x256xf32>
    %37 = arith.mulf %34, %34 : vector<128x256xf32>
    %cst_25 = arith.constant 1.000000e+00 : f32
    %38 = vector.broadcast %cst_25 : f32 to vector<128x256xf32>
    %39 = arith.addf %38, %37 : vector<128x256xf32>
    %40 = tpu.reciprocal %39 {approx = true} : vector<128x256xf32> -> vector<128x256xf32>
    %41 = arith.mulf %36, %40 : vector<128x256xf32>
    %cst_26 = arith.constant 0.000000e+00 : f32
    %42 = vector.broadcast %cst_26 : f32 to vector<128x256xf32>
    %43 = arith.cmpf oge, %30, %42 : vector<128x256xf32>
    %cst_27 = arith.constant 0.000000e+00 : f32
    %44 = vector.broadcast %cst_27 : f32 to vector<128x256xf32>
    %45 = arith.subf %44, %34 : vector<128x256xf32>
    %46 = arith.mulf %45, %41 : vector<128x256xf32>
    %47 = arith.select %43, %41, %46 : vector<128x256xi1>, vector<128x256xf32>
    %48 = arith.addf %7, %47 : vector<128x256xf32>
    %49 = vector.shape_cast %48 : vector<128x256xf32> to vector<8x16x256xf32>
    %c0_28 = arith.constant 0 : index
    %c0_29 = arith.constant 0 : index
    %c0_30 = arith.constant 0 : index
    %50 = vector.load %arg7[%c0_28, %c0_29, %c0_30] : memref<8x16x256xf32, #tpu.memory_space<vmem>>, vector<8x16x256xf32>
    tpu.vector_store %arg7[%c0_28, %c0_29, %c0_30], %49 {strides = array<i32>} : memref<8x16x256xf32, #tpu.memory_space<vmem>>, vector<8x16x256xf32>,
    return
  }
  func.func @transform_0(%arg0: i32) -> (i32, i32, i32) {
    %c0_i32 = arith.constant 0 : i32
    %c0_i32_0 = arith.constant 0 : i32
    %c0_i32_1 = arith.constant 0 : i32
    return %arg0, %c0_i32, %c0_i32_0 : i32, i32, i32
  }
  func.func @transform_1(%arg0: i32) -> (i32, i32, i32) {
    %c0_i32 = arith.constant 0 : i32
    %c0_i32_0 = arith.constant 0 : i32
    %c0_i32_1 = arith.constant 0 : i32
    %c0_i32_2 = arith.constant 0 : i32
    return %c0_i32, %c0_i32_0, %c0_i32_1 : i32, i32, i32
  }
  func.func @transform_2(%arg0: i32) -> (i32, i32) {
    %c0_i32 = arith.constant 0 : i32
    %c0_i32_0 = arith.constant 0 : i32
    %c0_i32_1 = arith.constant 0 : i32
    return %c0_i32, %c0_i32_0 : i32, i32
  }
  func.func @transform_3(%arg0: i32) -> (i32, i32) {
    %c0_i32 = arith.constant 0 : i32
    %c0_i32_0 = arith.constant 0 : i32
    %c0_i32_1 = arith.constant 0 : i32
    return %c0_i32, %c0_i32_0 : i32, i32
  }
  func.func @transform_4(%arg0: i32) -> (i32, i32) {
    %c0_i32 = arith.constant 0 : i32
    %c0_i32_0 = arith.constant 0 : i32
    %c0_i32_1 = arith.constant 0 : i32
    return %c0_i32, %c0_i32_0 : i32, i32
  }
  func.func @transform_5(%arg0: i32) -> (i32, i32) {
    %c0_i32 = arith.constant 0 : i32
    %c0_i32_0 = arith.constant 0 : i32
    %c0_i32_1 = arith.constant 0 : i32
    return %c0_i32, %c0_i32_0 : i32, i32
  }
  func.func @transform_6(%arg0: i32) -> (i32, i32, i32) {
    %c0_i32 = arith.constant 0 : i32
    %c0_i32_0 = arith.constant 0 : i32
    %c0_i32_1 = arith.constant 0 : i32
    return %arg0, %c0_i32, %c0_i32_0 : i32, i32, i32
  }
}

module attributes {stable_mosaic.version = 11 : i64} {
  func.func @_residual_block_kernel(%arg0: i32, %arg1: memref<8x16x32xf32, #tpu.memory_space<vmem>>, %arg2: memref<3x128x128xf32, #tpu.memory_space<vmem>>, %arg3: memref<32x1024xf32, #tpu.memory_space<vmem>>, %arg4: memref<256x256xf32, #tpu.memory_space<vmem>>, %arg5: memref<1x256xf32, #tpu.memory_space<vmem>>, %arg6: memref<1x256xf32, #tpu.memory_space<vmem>>, %arg7: memref<8x16x256xf32, #tpu.memory_space<vmem>>) attributes {dimension_semantics = [#tpu.dimension_semantics<parallel>], iteration_bounds = array<i64: 1>, scalar_prefetch = 0 : i64, scratch_operands = 0 : i64, tpu.core_type = #tpu.core_type<tc>, window_params = [{transform_indices = @transform_0, window_bounds = array<i64: 8, 16, 32>}, {pipeline_mode = #tpu.pipeline_mode<synchronous>, transform_indices = @transform_1, window_bounds = array<i64: 3, 128, 128>}, {pipeline_mode = #tpu.pipeline_mode<synchronous>, transform_indices = @transform_2, window_bounds = array<i64: 32, 1024>}, {pipeline_mode = #tpu.pipeline_mode<synchronous>, transform_indices = @transform_3, window_bounds = array<i64: 256, 256>}, {pipeline_mode = #tpu.pipeline_mode<synchronous>, transform_indices = @transform_4, window_bounds = array<i64: 1, 256>}, {pipeline_mode = #tpu.pipeline_mode<synchronous>, transform_indices = @transform_5, window_bounds = array<i64: 1, 256>}, {transform_indices = @transform_6, window_bounds = array<i64: 8, 16, 256>}]} {
    %c0 = arith.constant 0 : index
    %c0_0 = arith.constant 0 : index
    %c0_1 = arith.constant 0 : index
    %0 = vector.load %arg1[%c0, %c0_0, %c0_1] : memref<8x16x32xf32, #tpu.memory_space<vmem>>, vector<8x16x32xf32>
    %1 = vector.shape_cast %0 : vector<8x16x32xf32> to vector<128x32xf32>
    %c0_2 = arith.constant 0 : index
    %c0_3 = arith.constant 0 : index
    %2 = vector.load %arg3[%c0_2, %c0_3] : memref<32x1024xf32, #tpu.memory_space<vmem>>, vector<32x1024xf32>
    %cst = arith.constant dense<0.000000e+00> : vector<128x1024xf32>
    %3 = tpu.matmul %1, %2, %cst {dimension_numbers = #tpu.dot_dimension_numbers<[1], [0], [0], [1], [0, 0, 1, 1], [], []>} : vector<128x32xf32>, vector<32x1024xf32>, vector<128x1024xf32> -> vector<128x1024xf32>
    %4 = vector.extract_strided_slice %3 {offsets = [0, 768], sizes = [128, 256], strides = [1, 1]} : vector<128x1024xf32> to vector<128x256xf32>
    %c0_4 = arith.constant 0 : index
    %c0_5 = arith.constant 0 : index
    %5 = vector.load %arg6[%c0_4, %c0_5] : memref<1x256xf32, #tpu.memory_space<vmem>>, vector<1x256xf32>
    %6 = vector.broadcast %5 : vector<1x256xf32> to vector<128x256xf32>
    %7 = arith.addf %4, %6 : vector<128x256xf32>
    %cst_6 = arith.constant 0.000000e+00 : f32
    %8 = vector.broadcast %cst_6 : f32 to vector<128x256xf32>
    %9 = vector.extract_strided_slice %3 {offsets = [0, 0], sizes = [128, 256], strides = [1, 1]} : vector<128x1024xf32> to vector<128x256xf32>
    %c0_7 = arith.constant 0 : index
    %c0_8 = arith.constant 0 : index
    %c0_9 = arith.constant 0 : index
    %10 = vector.load %arg2[%c0_7, %c0_8, %c0_9] : memref<3x128x128xf32, #tpu.memory_space<vmem>>, vector<1x128x128xf32>
    %11 = vector.shape_cast %10 : vector<1x128x128xf32> to vector<128x128xf32>
    %cst_10 = arith.constant dense<0.000000e+00> : vector<128x256xf32>
    %12 = tpu.matmul %11, %9, %cst_10 {dimension_numbers = #tpu.dot_dimension_numbers<[1], [0], [0], [1], [0, 0, 1, 1], [], []>} : vector<128x128xf32>, vector<128x256xf32>, vector<128x256xf32> -> vector<128x256xf32>
    %13 = arith.addf %8, %12 : vector<128x256xf32>
    %14 = vector.extract_strided_slice %3 {offsets = [0, 256], sizes = [128, 256], strides = [1, 1]} : vector<128x1024xf32> to vector<128x256xf32>
    %c1 = arith.constant 1 : index
    %c0_11 = arith.constant 0 : index
    %c0_12 = arith.constant 0 : index
    %15 = vector.load %arg2[%c1, %c0_11, %c0_12] : memref<3x128x128xf32, #tpu.memory_space<vmem>>, vector<1x128x128xf32>
    %16 = vector.shape_cast %15 : vector<1x128x128xf32> to vector<128x128xf32>
    %cst_13 = arith.constant dense<0.000000e+00> : vector<128x256xf32>
    %17 = tpu.matmul %16, %14, %cst_13 {dimension_numbers = #tpu.dot_dimension_numbers<[1], [0], [0], [1], [0, 0, 1, 1], [], []>} : vector<128x128xf32>, vector<128x256xf32>, vector<128x256xf32> -> vector<128x256xf32>
    %18 = arith.addf %13, %17 : vector<128x256xf32>
    %19 = vector.extract_strided_slice %3 {offsets = [0, 512], sizes = [128, 256], strides = [1, 1]} : vector<128x1024xf32> to vector<128x256xf32>
    %c2 = arith.constant 2 : index
    %c0_14 = arith.constant 0 : index
    %c0_15 = arith.constant 0 : index
    %20 = vector.load %arg2[%c2, %c0_14, %c0_15] : memref<3x128x128xf32, #tpu.memory_space<vmem>>, vector<1x128x128xf32>
    %21 = vector.shape_cast %20 : vector<1x128x128xf32> to vector<128x128xf32>
    %cst_16 = arith.constant dense<0.000000e+00> : vector<128x256xf32>
    %22 = tpu.matmul %21, %19, %cst_16 {dimension_numbers = #tpu.dot_dimension_numbers<[1], [0], [0], [1], [0, 0, 1, 1], [], []>} : vector<128x128xf32>, vector<128x256xf32>, vector<128x256xf32> -> vector<128x256xf32>
    %23 = arith.addf %18, %22 : vector<128x256xf32>
    %cst_17 = arith.constant 0.000000e+00 : f32
    %24 = vector.broadcast %cst_17 : f32 to vector<128x256xf32>
    %25 = arith.maximumf %23, %24 : vector<128x256xf32>
    %c0_18 = arith.constant 0 : index
    %c0_19 = arith.constant 0 : index
    %26 = vector.load %arg4[%c0_18, %c0_19] : memref<256x256xf32, #tpu.memory_space<vmem>>, vector<256x256xf32>
    %cst_20 = arith.constant dense<0.000000e+00> : vector<128x256xf32>
    %27 = tpu.matmul %25, %26, %cst_20 {dimension_numbers = #tpu.dot_dimension_numbers<[1], [0], [0], [1], [0, 0, 1, 1], [], []>} : vector<128x256xf32>, vector<256x256xf32>, vector<128x256xf32> -> vector<128x256xf32>
    %c0_21 = arith.constant 0 : index
    %c0_22 = arith.constant 0 : index
    %28 = vector.load %arg5[%c0_21, %c0_22] : memref<1x256xf32, #tpu.memory_space<vmem>>, vector<1x256xf32>
    %29 = vector.broadcast %28 : vector<1x256xf32> to vector<128x256xf32>
    %30 = arith.addf %27, %29 : vector<128x256xf32>
    %31 = math.absf %30 : vector<128x256xf32>
    %cst_23 = arith.constant 0.000000e+00 : f32
    %32 = vector.broadcast %cst_23 : f32 to vector<128x256xf32>
    %33 = arith.subf %32, %31 : vector<128x256xf32>
    %34 = math.exp %33 : vector<128x256xf32>
    %cst_24 = arith.constant 1.000000e+00 : f32
    %35 = vector.broadcast %cst_24 : f32 to vector<128x256xf32>
    %36 = arith.subf %35, %34 : vector<128x256xf32>
    %37 = arith.mulf %34, %34 : vector<128x256xf32>
    %cst_25 = arith.constant 1.000000e+00 : f32
    %38 = vector.broadcast %cst_25 : f32 to vector<128x256xf32>
    %39 = arith.addf %38, %37 : vector<128x256xf32>
    %40 = tpu.reciprocal %39 {approx = true} : vector<128x256xf32> -> vector<128x256xf32>
    %41 = arith.mulf %36, %40 : vector<128x256xf32>
    %cst_26 = arith.constant 0.000000e+00 : f32
    %42 = vector.broadcast %cst_26 : f32 to vector<128x256xf32>
    %43 = arith.cmpf oge, %30, %42 : vector<128x256xf32>
    %cst_27 = arith.constant 0.000000e+00 : f32
    %44 = vector.broadcast %cst_27 : f32 to vector<128x256xf32>
    %45 = arith.subf %44, %34 : vector<128x256xf32>
    %46 = arith.mulf %45, %41 : vector<128x256xf32>
    %47 = arith.select %43, %41, %46 : vector<128x256xi1>, vector<128x256xf32>
    %48 = arith.addf %7, %47 : vector<128x256xf32>
    %49 = vector.shape_cast %48 : vector<128x256xf32> to vector<8x16x256xf32>
    %c0_28 = arith.constant 0 : index
    %c0_29 = arith.constant 0 : index
    %c0_30 = arith.constant 0 : index
    %50 = vector.load %arg7[%c0_28, %c0_29, %c0_30] : memref<8x16x256xf32, #tpu.memory_space<vmem>>, vector<8x16x256xf32>
    tpu.vector_store %arg7[%c0_28, %c0_29, %c0_30], %49 {strides = array<i32>} : memref<8x16x256xf32, #tpu.memory_space<vmem>>, vector<8x16x256xf32>,
    return
  }
  func.func @transform_0(%arg0: i32) -> (i32, i32, i32) {
    %c0_i32 = arith.constant 0 : i32
    %c0_i32_0 = arith.constant 0 : i32
    %c0_i32_1 = arith.constant 0 : i32
    return %arg0, %c0_i32, %c0_i32_0 : i32, i32, i32
  }
  func.func @transform_1(%arg0: i32) -> (i32, i32, i32) {
    %c0_i32 = arith.constant 0 : i32
    %c0_i32_0 = arith.constant 0 : i32
    %c0_i32_1 = arith.constant 0 : i32
    %c0_i32_2 = arith.constant 0 : i32
    return %c0_i32, %c0_i32_0, %c0_i32_1 : i32, i32, i32
  }
  func.func @transform_2(%arg0: i32) -> (i32, i32) {
    %c0_i32 = arith.constant 0 : i32
    %c0_i32_0 = arith.constant 0 : i32
    %c0_i32_1 = arith.constant 0 : i32
    return %c0_i32, %c0_i32_0 : i32, i32
  }
  func.func @transform_3(%arg0: i32) -> (i32, i32) {
    %c0_i32 = arith.constant 0 : i32
    %c0_i32_0 = arith.constant 0 : i32
    %c0_i32_1 = arith.constant 0 : i32
    return %c0_i32, %c0_i32_0 : i32, i32
  }
  func.func @transform_4(%arg0: i32) -> (i32, i32) {
    %c0_i32 = arith.constant 0 : i32
    %c0_i32_0 = arith.constant 0 : i32
    %c0_i32_1 = arith.constant 0 : i32
    return %c0_i32, %c0_i32_0 : i32, i32
  }
  func.func @transform_5(%arg0: i32) -> (i32, i32) {
    %c0_i32 = arith.constant 0 : i32
    %c0_i32_0 = arith.constant 0 : i32
    %c0_i32_1 = arith.constant 0 : i32
    return %c0_i32, %c0_i32_0 : i32, i32
  }
  func.func @transform_6(%arg0: i32) -> (i32, i32, i32) {
    %c0_i32 = arith.constant 0 : i32
    %c0_i32_0 = arith.constant 0 : i32
    %c0_i32_1 = arith.constant 0 : i32
    return %arg0, %c0_i32, %c0_i32_0 : i32, i32, i32
  }
}

</mosaic_0001>

<llo_original>
// kernel: tpu_custom_call.1
$region0: #{tpu_custom_call.1}
  #allocation0 [shape = 'u32[]', space=smem, size = 0x4, offset = 0x4, fixed_abs, tag = 'smem constant byte address 0x4 - core index']
  #allocation1 [shape = 'u32[144,128]{1,0:T(1,128)}', space=vmem, size = 0x12000, scoped, tag = 'internal scratch']
  %s0 = inlined_call_operand.hbm [shape: f32[8,16,32], index: 0, kind: input, shape index: {}]
  %s1 = inlined_call_operand.hbm [shape: f32[3,128,128], index: 1, kind: input, shape index: {}]
  %s2 = inlined_call_operand.hbm [shape: f32[32,1024], index: 2, kind: input, shape index: {}]
  %s3 = inlined_call_operand.hbm [shape: f32[256,256], index: 3, kind: input, shape index: {}]
  %s4 = inlined_call_operand.vmem [shape: f32[1,256], index: 4, kind: input, shape index: {}]
  %s5 = inlined_call_operand.vmem [shape: f32[1,256], index: 5, kind: input, shape index: {}]
  %s6 = inlined_call_operand.hbm [shape: f32[8,16,256], index: 6, kind: output, shape index: {}]
  %s7 = sld [smem:[#allocation0]]
  $region50: #{tpu_custom_call.1} parent=0
    _
  %s9 = ssub.s32 1, %s7
  %s10 = scalar_select 0, %s9, %s7
  $region1: #{tpu_custom_call.1} parent=0
    #allocation2 [shape = 'u8[65536]{0}', space=vmem, size = 0x10000, scoped, tag = 'input window, operand 0, single buffered']
    #allocation3 [shape = 's32[1]{0}', space=sflag, size = 0x4, scoped, tag = 'scoped memory for tpu_custom_call.1']
    #allocation4 [shape = 's32[1]{0}', space=sflag, size = 0x4, scoped, tag = 'scoped memory for tpu_custom_call.1']
    #allocation5 [shape = 'u8[196608]{0}', space=vmem, size = 0x30000, scoped, tag = 'input window, operand 1, single buffered']
    #allocation6 [shape = 's32[1]{0}', space=sflag, size = 0x4, scoped, tag = 'scoped memory for tpu_custom_call.1']
    #allocation7 [shape = 'u8[131072]{0}', space=vmem, size = 0x20000, scoped, tag = 'input window, operand 2, single buffered']
    #allocation8 [shape = 'u8[262144]{0}', space=vmem, size = 0x40000, scoped, tag = 'input window, operand 3, single buffered']
    #allocation9 [shape = 's32[1]{0}', space=sflag, size = 0x4, scoped, tag = 'scoped memory for tpu_custom_call.1']
    #allocation10 [shape = 'u8[131072]{0}', space=vmem, size = 0x20000, scoped, tag = 'output window, operand 0, single buffered']
    %11 = vsyncpa [#allocation3], 0
    %12 = vsyncpa [#allocation6], 0
    %13 = vsyncpa [#allocation9], 0
    %14 = vsyncpa [#allocation4], 0
    // Predicated region
    $region2: #{tpu_custom_call.1} parent=1 // pred_check
      _
    $region3: #{tpu_custom_call.1} parent=1 // pred_check_branch
      %16 = sbr.rel (0) target = $region5
    $region4: #{tpu_custom_call.1} parent=1 // pred_region
      %s18 = ssub.s32 2048, 2048
      %19 = vsyncadd [#allocation3], %s18
      %s20 = sshll.u32 [#allocation2], 4
      %s21 = int_to_ptr.vmem [resolvable:$true] %s20
      %26 = dma.hbm_to_vmem [thread:$0]  %s0, 2048, %s21, [#allocation3], 128, 128, 8
    $region5: #{tpu_custom_call.1} parent=1 // pred_fallthru
      _
    // Predicated region
    $region6: #{tpu_custom_call.1} parent=1 // pred_check
      _
    $region7: #{tpu_custom_call.1} parent=1 // pred_check_branch
      %28 = sbr.rel (0) target = $region9
    $region8: #{tpu_custom_call.1} parent=1 // pred_region
      %s30 = ssub.s32 6144, 6144
      %31 = vsyncadd [#allocation6], %s30
      %s32 = sshll.u32 [#allocation5], 4
      %s33 = int_to_ptr.vmem [resolvable:$true] %s32
      %38 = dma.hbm_to_vmem [thread:$0]  %s1, 6144, %s33, [#allocation6], 128, 128, 8
    $region9: #{tpu_custom_call.1} parent=1 // pred_fallthru
      _
    // Predicated region
    $region10: #{tpu_custom_call.1} parent=1 // pred_check
      _
    $region11: #{tpu_custom_call.1} parent=1 // pred_check_branch
      %40 = sbr.rel (0) target = $region13
    $region12: #{tpu_custom_call.1} parent=1 // pred_region
      %s42 = ssub.s32 4096, 4096
      %43 = vsyncadd [#allocation6], %s42
      %s44 = sshll.u32 [#allocation7], 4
      %s45 = int_to_ptr.vmem [resolvable:$true] %s44
      %50 = dma.hbm_to_vmem [thread:$0]  %s2, 4096, %s45, [#allocation6], 1024, 1024, 64
    $region13: #{tpu_custom_call.1} parent=1 // pred_fallthru
      _
    // Predicated region
    $region14: #{tpu_custom_call.1} parent=1 // pred_check
      _
    $region15: #{tpu_custom_call.1} parent=1 // pred_check_branch
      %52 = sbr.rel (0) target = $region17
    $region16: #{tpu_custom_call.1} parent=1 // pred_region
      %s54 = ssub.s32 8192, 8192
      %55 = vsyncadd [#allocation9], %s54
      %s56 = sshll.u32 [#allocation8], 4
      %s57 = int_to_ptr.vmem [resolvable:$true] %s56
      %62 = dma.hbm_to_vmem [thread:$0]  %s3, 8192, %s57, [#allocation9], 256, 256, 16
    $region17: #{tpu_custom_call.1} parent=1 // pred_fallthru
      _
    // Predicated region
    $region18: #{tpu_custom_call.1} parent=1 // pred_check
      _
    $region19: #{tpu_custom_call.1} parent=1 // pred_check_branch
      %64 = sbr.rel (0) target = $region21
    $region20: #{tpu_custom_call.1} parent=1 // pred_region
      _
    $region21: #{tpu_custom_call.1} parent=1 // pred_fallthru
      _
    // Predicated region
    $region22: #{tpu_custom_call.1} parent=1 // pred_check
      _
    $region23: #{tpu_custom_call.1} parent=1 // pred_check_branch
      %66 = sbr.rel (0) target = $region25
    $region24: #{tpu_custom_call.1} parent=1 // pred_region
      _
    $region25: #{tpu_custom_call.1} parent=1 // pred_fallthru
      _
    // Predicated region
    $region26: #{tpu_custom_call.1} parent=1 // pred_check
      _
    $region27: #{tpu_custom_call.1} parent=1 // pred_check_branch
      %68 = sbr.rel (0) target = $region29
    $region28: #{tpu_custom_call.1} parent=1 // pred_region
      %69 = dma.done [#allocation3], 2048
    $region29: #{tpu_custom_call.1} parent=1 // pred_fallthru
      _
    // Predicated region
    $region30: #{tpu_custom_call.1} parent=1 // pred_check
      _
    $region31: #{tpu_custom_call.1} parent=1 // pred_check_branch
      %71 = sbr.rel (0) target = $region33
    $region32: #{tpu_custom_call.1} parent=1 // pred_region
      %72 = dma.done [#allocation6], 6144
    $region33: #{tpu_custom_call.1} parent=1 // pred_fallthru
      _
    // Predicated region
    $region34: #{tpu_custom_call.1} parent=1 // pred_check
      _
    $region35: #{tpu_custom_call.1} parent=1 // pred_check_branch
      %74 = sbr.rel (0) target = $region37
    $region36: #{tpu_custom_call.1} parent=1 // pred_region
      %75 = dma.done [#allocation6], 4096
    $region37: #{tpu_custom_call.1} parent=1 // pred_fallthru
      _
    // Predicated region
    $region38: #{tpu_custom_call.1} parent=1 // pred_check
      _
    $region39: #{tpu_custom_call.1} parent=1 // pred_check_branch
      %77 = sbr.rel (0) target = $region41
    $region40: #{tpu_custom_call.1} parent=1 // pred_region
      %78 = dma.done [#allocation9], 8192
    $region41: #{tpu_custom_call.1} parent=1 // pred_fallthru
      _
    %v79 = vld [vmem:[#allocation2] sm:$0xff]
    %v80 = vld [vmem:[#allocation2 + $0x8] sm:$0xff]
    %v81 = vld [vmem:[#allocation2 + $0x10] sm:$0xff]
    %v82 = vld [vmem:[#allocation2 + $0x18] sm:$0xff]
    %v83 = vld [vmem:[#allocation2 + $0x20] sm:$0xff]
    %v84 = vld [vmem:[#allocation2 + $0x28] sm:$0xff]
    %v85 = vld [vmem:[#allocation2 + $0x30] sm:$0xff]
    %v86 = vld [vmem:[#allocation2 + $0x38] sm:$0xff]
    %v87 = vld [vmem:[#allocation2 + $0x40] sm:$0xff]
    %v88 = vld [vmem:[#allocation2 + $0x48] sm:$0xff]
    %v89 = vld [vmem:[#allocation2 + $0x50] sm:$0xff]
    %v90 = vld [vmem:[#allocation2 + $0x58] sm:$0xff]
    %v91 = vld [vmem:[#allocation2 + $0x60] sm:$0xff]
    %v92 = vld [vmem:[#allocation2 + $0x68] sm:$0xff]
    %v93 = vld [vmem:[#allocation2 + $0x70] sm:$0xff]
    %v94 = vld [vmem:[#allocation2 + $0x78] sm:$0xff]
    %v95 = vld [vmem:[#allocation7] sm:$0xff]
    %v96 = vld [vmem:[#allocation7 + $0x8] sm:$0xff]
    %v97 = vld [vmem:[#allocation7 + $0x10] sm:$0xff]
    %v98 = vld [vmem:[#allocation7 + $0x18] sm:$0xff]
    %v99 = vld [vmem:[#allocation7 + $0x20] sm:$0xff]
    %v100 = vld [vmem:[#allocation7 + $0x28] sm:$0xff]
    %v101 = vld [vmem:[#allocation7 + $0x30] sm:$0xff]
    %v102 = vld [vmem:[#allocation7 + $0x38] sm:$0xff]
    %v103 = vld [vmem:[#allocation7 + $0x40] sm:$0xff]
    %v104 = vld [vmem:[#allocation7 + $0x48] sm:$0xff]
    %v105 = vld [vmem:[#allocation7 + $0x50] sm:$0xff]
    %v106 = vld [vmem:[#allocation7 + $0x58] sm:$0xff]
    %v107 = vld [vmem:[#allocation7 + $0x60] sm:$0xff]
    %v108 = vld [vmem:[#allocation7 + $0x68] sm:$0xff]
    %v109 = vld [vmem:[#allocation7 + $0x70] sm:$0xff]
    %v110 = vld [vmem:[#allocation7 + $0x78] sm:$0xff]
    %v111 = vld [vmem:[#allocation7 + $0x80] sm:$0xff]
    %v112 = vld [vmem:[#allocation7 + $0x88] sm:$0xff]
    %v113 = vld [vmem:[#allocation7 + $0x90] sm:$0xff]
    %v114 = vld [vmem:[#allocation7 + $0x98] sm:$0xff]
    %v115 = vld [vmem:[#allocation7 + $0xa0] sm:$0xff]
    %v116 = vld [vmem:[#allocation7 + $0xa8] sm:$0xff]
    %v117 = vld [vmem:[#allocation7 + $0xb0] sm:$0xff]
    %v118 = vld [vmem:[#allocation7 + $0xb8] sm:$0xff]
    %v119 = vld [vmem:[#allocation7 + $0xc0] sm:$0xff]
    %v120 = vld [vmem:[#allocation7 + $0xc8] sm:$0xff]
    %v121 = vld [vmem:[#allocation7 + $0xd0] sm:$0xff]
    %v122 = vld [vmem:[#allocation7 + $0xd8] sm:$0xff]
    %v123 = vld [vmem:[#allocation7 + $0xe0] sm:$0xff]
    %v124 = vld [vmem:[#allocation7 + $0xe8] sm:$0xff]
    %v125 = vld [vmem:[#allocation7 + $0xf0] sm:$0xff]
    %v126 = vld [vmem:[#allocation7 + $0xf8] sm:$0xff]
    %vm127 = vcmask 261120
    %v129 = vsel %vm127, %v79, 0
    %v132 = vsel %vm127, %v80, 0
    %v135 = vsel %vm127, %v81, 0
    %v138 = vsel %vm127, %v82, 0
    %v141 = vsel %vm127, %v83, 0
    %v144 = vsel %vm127, %v84, 0
    %v147 = vsel %vm127, %v85, 0
    %v150 = vsel %vm127, %v86, 0
    %v153 = vsel %vm127, %v87, 0
    %v156 = vsel %vm127, %v88, 0
    %v159 = vsel %vm127, %v89, 0
    %v162 = vsel %vm127, %v90, 0
    %v165 = vsel %vm127, %v91, 0
    %v168 = vsel %vm127, %v92, 0
    %v171 = vsel %vm127, %v93, 0
    %v174 = vsel %vm127, %v94, 0
    %176 = vmatprep.subr.mxu0 0.0
    %177 = vmatpush1.msra.mxu0 0.0
    %178 = vmatprep.subr.mxu0 0.0
    %179 = vmatpush1.msra.mxu0 0.0
    %180 = vmatprep.subr.mxu0 0.0
    %181 = vmatpush1.msra.mxu0 0.0
    %182 = vmatprep.subr.mxu0 0.0
    %183 = vmatpush1.msra.mxu0 0.0
    %184 = vmatprep.subr.mxu0 0.0
    %185 = vmatpush1.msra.mxu0 0.0
    %186 = vmatprep.subr.mxu0 0.0
    %187 = vmatpush1.msra.mxu0 0.0
    %188 = vmatprep.subr.mxu0 0.0
    %189 = vmatpush1.msra.mxu0 0.0
    %190 = vmatprep.subr.mxu0 0.0
    %191 = vmatpush1.msra.mxu0 0.0
    %192 = vmatprep.subr.mxu0 0.0
    %193 = vmatpush1.msra.mxu0 0.0
    %194 = vmatprep.subr.mxu0 0.0
    %195 = vmatpush1.msra.mxu0 0.0
    %196 = vmatprep.subr.mxu0 0.0
    %197 = vmatpush1.msra.mxu0 0.0
    %198 = vmatprep.subr.mxu0 0.0
    %199 = vmatpush1.msra.mxu0 0.0
    %200 = vmatprep.subr.mxu0 %v120
    %201 = vmatpush1.msra.mxu0 %v119
    %202 = vmatprep.subr.mxu0 %v112
    %203 = vmatpush1.msra.mxu0 %v111
    %204 = vmatprep.subr.mxu0 %v104
    %205 = vmatpush1.msra.mxu0 %v103
    %206 = vmatprep.subr.mxu0 %v96
    %207 = vmatpush1.msra.mxu0 %v95
    %208 = vmatprep.subr.mxu0 0.0
    %209 = vmatpush2.msra.mxu0 0.0
    %210 = vmatprep.subr.mxu0 0.0
    %211 = vmatpush2.msra.mxu0 0.0
    %212 = vmatprep.subr.mxu0 0.0
    %213 = vmatpush2.msra.mxu0 0.0
    %214 = vmatprep.subr.mxu0 0.0
    %215 = vmatpush2.msra.mxu0 0.0
    %216 = vmatprep.subr.mxu0 0.0
    %217 = vmatpush2.msra.mxu0 0.0
    %218 = vmatprep.subr.mxu0 0.0
    %219 = vmatpush2.msra.mxu0 0.0
    %220 = vmatprep.subr.mxu0 0.0
    %221 = vmatpush2.msra.mxu0 0.0
    %222 = vmatprep.subr.mxu0 0.0
    %223 = vmatpush2.msra.mxu0 0.0
    %224 = vmatprep.subr.mxu0 0.0
    %225 = vmatpush2.msra.mxu0 0.0
    %226 = vmatprep.subr.mxu0 0.0
    %227 = vmatpush2.msra.mxu0 0.0
    %228 = vmatprep.subr.mxu0 0.0
    %229 = vmatpush2.msra.mxu0 0.0
    %230 = vmatprep.subr.mxu0 0.0
    %231 = vmatpush2.msra.mxu0 0.0
    %232 = vmatprep.subr.mxu0 0.0
    %233 = vmatpush2.msra.mxu0 0.0
    %234 = vmatprep.subr.mxu0 0.0
    %235 = vmatpush2.msra.mxu0 0.0
    %236 = vmatprep.subr.mxu0 0.0
    %237 = vmatpush2.msra.mxu0 0.0
    %238 = vmatprep.subr.mxu0 0.0
    %239 = vmatpush2.msra.mxu0 0.0
    %240 = vmatprep.mubr.f32.mxu0 0.0
    %241 = vmatmul.mubr.f32.gmra.mxu0 %v129
    %v242 = vpop.f32.mrf.mxu0
    %v243 = vadd.f32 0.0, %v242
    %v244 = vpop.f32.mrf.mxu0
    %v245 = vadd.f32 0.0, %v244
    %246 = vmatprep.mubr.f32.mxu0 0.0
    %247 = vmatmul.mubr.f32.gmra.mxu0 %v132
    %v248 = vpop.f32.mrf.mxu0
    %v249 = vadd.f32 0.0, %v248
    %v250 = vpop.f32.mrf.mxu0
    %v251 = vadd.f32 0.0, %v250
    %252 = vmatprep.mubr.f32.mxu0 0.0
    %253 = vmatmul.mubr.f32.gmra.mxu0 %v135
    %v254 = vpop.f32.mrf.mxu0
    %v255 = vadd.f32 0.0, %v254
    %v256 = vpop.f32.mrf.mxu0
    %v257 = vadd.f32 0.0, %v256
    %258 = vmatprep.mubr.f32.mxu0 0.0
    %259 = vmatmul.mubr.f32.gmra.mxu0 %v138
    %v260 = vpop.f32.mrf.mxu0
    %v261 = vadd.f32 0.0, %v260
    %v262 = vpop.f32.mrf.mxu0
    %v263 = vadd.f32 0.0, %v262
    %264 = vmatprep.mubr.f32.mxu0 0.0
    %265 = vmatmul.mubr.f32.gmra.mxu0 %v141
    %v266 = vpop.f32.mrf.mxu0
    %v267 = vadd.f32 0.0, %v266
    %v268 = vpop.f32.mrf.mxu0
    %v269 = vadd.f32 0.0, %v268
    %270 = vmatprep.mubr.f32.mxu0 0.0
    %271 = vmatmul.mubr.f32.gmra.mxu0 %v144
    %v272 = vpop.f32.mrf.mxu0
    %v273 = vadd.f32 0.0, %v272
    %v274 = vpop.f32.mrf.mxu0
    %v275 = vadd.f32 0.0, %v274
    %276 = vmatprep.mubr.f32.mxu0 0.0
    %277 = vmatmul.mubr.f32.gmra.mxu0 %v147
    %v278 = vpop.f32.mrf.mxu0
    %v279 = vadd.f32 0.0, %v278
    %v280 = vpop.f32.mrf.mxu0
    %v281 = vadd.f32 0.0, %v280
    %282 = vmatprep.mubr.f32.mxu0 0.0
    %283 = vmatmul.mubr.f32.gmra.mxu0 %v150
    %v284 = vpop.f32.mrf.mxu0
    %v285 = vadd.f32 0.0, %v284
    %v286 = vpop.f32.mrf.mxu0
    %v287 = vadd.f32 0.0, %v286
    %288 = vmatprep.mubr.f32.mxu0 0.0
    %289 = vmatmul.mubr.f32.gmra.mxu0 %v153
    %v290 = vpop.f32.mrf.mxu0
    %v291 = vadd.f32 0.0, %v290
    %v292 = vpop.f32.mrf.mxu0
    %v293 = vadd.f32 0.0, %v292
    %294 = vmatprep.mubr.f32.mxu0 0.0
    %295 = vmatmul.mubr.f32.gmra.mxu0 %v156
    %v296 = vpop.f32.mrf.mxu0
    %v297 = vadd.f32 0.0, %v296
    %v298 = vpop.f32.mrf.mxu0
    %v299 = vadd.f32 0.0, %v298
    %300 = vmatprep.mubr.f32.mxu0 0.0
    %301 = vmatmul.mubr.f32.gmra.mxu0 %v159
    %v302 = vpop.f32.mrf.mxu0
    %v303 = vadd.f32 0.0, %v302
    %v304 = vpop.f32.mrf.mxu0
    %v305 = vadd.f32 0.0, %v304
    %306 = vmatprep.mubr.f32.mxu0 0.0
    %307 = vmatmul.mubr.f32.gmra.mxu0 %v162
    %v308 = vpop.f32.mrf.mxu0
    %v309 = vadd.f32 0.0, %v308
    %v310 = vpop.f32.mrf.mxu0
    %v311 = vadd.f32 0.0, %v310
    %312 = vmatprep.mubr.f32.mxu0 0.0
    %313 = vmatmul.mubr.f32.gmra.mxu0 %v165
    %v314 = vpop.f32.mrf.mxu0
    %v315 = vadd.f32 0.0, %v314
    %v316 = vpop.f32.mrf.mxu0
    %v317 = vadd.f32 0.0, %v316
    %318 = vmatprep.mubr.f32.mxu0 0.0
    %319 = vmatmul.mubr.f32.gmra.mxu0 %v168
    %v320 = vpop.f32.mrf.mxu0
    %v321 = vadd.f32 0.0, %v320
    %v322 = vpop.f32.mrf.mxu0
    %v323 = vadd.f32 0.0, %v322
    %324 = vmatprep.mubr.f32.mxu0 0.0
    %325 = vmatmul.mubr.f32.gmra.mxu0 %v171
    %v326 = vpop.f32.mrf.mxu0
    %v327 = vadd.f32 0.0, %v326
    %v328 = vpop.f32.mrf.mxu0
    %v329 = vadd.f32 0.0, %v328
    %330 = vmatprep.mubr.f32.mxu0 0.0
    %331 = vmatmul.mubr.f32.gmra.mxu0 %v174
    %v332 = vpop.f32.mrf.mxu0
    %v333 = vadd.f32 0.0, %v332
    %v334 = vpop.f32.mrf.mxu0
    %v335 = vadd.f32 0.0, %v334
    %336 = vdwg.mxu0
    %337 = vmatprep.subr.mxu0 0.0
    %338 = vmatpush1.msra.mxu0 0.0
    %339 = vmatprep.subr.mxu0 0.0
    %340 = vmatpush1.msra.mxu0 0.0
    %341 = vmatprep.subr.mxu0 0.0
    %342 = vmatpush1.msra.mxu0 0.0
    %343 = vmatprep.subr.mxu0 0.0
    %344 = vmatpush1.msra.mxu0 0.0
    %345 = vmatprep.subr.mxu0 0.0
    %346 = vmatpush1.msra.mxu0 0.0
    %347 = vmatprep.subr.mxu0 0.0
    %348 = vmatpush1.msra.mxu0 0.0
    %349 = vmatprep.subr.mxu0 0.0
    %350 = vmatpush1.msra.mxu0 0.0
    %351 = vmatprep.subr.mxu0 0.0
    %352 = vmatpush1.msra.mxu0 0.0
    %353 = vmatprep.subr.mxu0 0.0
    %354 = vmatpush1.msra.mxu0 0.0
    %355 = vmatprep.subr.mxu0 0.0
    %356 = vmatpush1.msra.mxu0 0.0
    %357 = vmatprep.subr.mxu0 0.0
    %358 = vmatpush1.msra.mxu0 0.0
    %359 = vmatprep.subr.mxu0 0.0
    %360 = vmatpush1.msra.mxu0 0.0
    %361 = vmatprep.subr.mxu0 %v122
    %362 = vmatpush1.msra.mxu0 %v121
    %363 = vmatprep.subr.mxu0 %v114
    %364 = vmatpush1.msra.mxu0 %v113
    %365 = vmatprep.subr.mxu0 %v106
    %366 = vmatpush1.msra.mxu0 %v105
    %367 = vmatprep.subr.mxu0 %v98
    %368 = vmatpush1.msra.mxu0 %v97
    %369 = vmatprep.subr.mxu0 0.0
    %370 = vmatpush2.msra.mxu0 0.0
    %371 = vmatprep.subr.mxu0 0.0
    %372 = vmatpush2.msra.mxu0 0.0
    %373 = vmatprep.subr.mxu0 0.0
    %374 = vmatpush2.msra.mxu0 0.0
    %375 = vmatprep.subr.mxu0 0.0
    %376 = vmatpush2.msra.mxu0 0.0
    %377 = vmatprep.subr.mxu0 0.0
    %378 = vmatpush2.msra.mxu0 0.0
    %379 = vmatprep.subr.mxu0 0.0
    %380 = vmatpush2.msra.mxu0 0.0
    %381 = vmatprep.subr.mxu0 0.0
    %382 = vmatpush2.msra.mxu0 0.0
    %383 = vmatprep.subr.mxu0 0.0
    %384 = vmatpush2.msra.mxu0 0.0
    %385 = vmatprep.subr.mxu0 0.0
    %386 = vmatpush2.msra.mxu0 0.0
    %387 = vmatprep.subr.mxu0 0.0
    %388 = vmatpush2.msra.mxu0 0.0
    %389 = vmatprep.subr.mxu0 0.0
    %390 = vmatpush2.msra.mxu0 0.0
    %391 = vmatprep.subr.mxu0 0.0
    %392 = vmatpush2.msra.mxu0 0.0
    %393 = vmatprep.subr.mxu0 0.0
    %394 = vmatpush2.msra.mxu0 0.0
    %395 = vmatprep.subr.mxu0 0.0
    %396 = vmatpush2.msra.mxu0 0.0
    %397 = vmatprep.subr.mxu0 0.0
    %398 = vmatpush2.msra.mxu0 0.0
    %399 = vmatprep.subr.mxu0 0.0
    %400 = vmatpush2.msra.mxu0 0.0
    %401 = vmatprep.mubr.f32.mxu0 0.0
    %402 = vmatmul.mubr.f32.gmra.mxu0 %v129
    %v403 = vpop.f32.mrf.mxu0
    %v404 = vadd.f32 0.0, %v403
    %v405 = vpop.f32.mrf.mxu0
    %v406 = vadd.f32 0.0, %v405
    %407 = vmatprep.mubr.f32.mxu0 0.0
    %408 = vmatmul.mubr.f32.gmra.mxu0 %v132
    %v409 = vpop.f32.mrf.mxu0
    %v410 = vadd.f32 0.0, %v409
    %v411 = vpop.f32.mrf.mxu0
    %v412 = vadd.f32 0.0, %v411
    %413 = vmatprep.mubr.f32.mxu0 0.0
    %414 = vmatmul.mubr.f32.gmra.mxu0 %v135
    %v415 = vpop.f32.mrf.mxu0
    %v416 = vadd.f32 0.0, %v415
    %v417 = vpop.f32.mrf.mxu0
    %v418 = vadd.f32 0.0, %v417
    %419 = vmatprep.mubr.f32.mxu0 0.0
    %420 = vmatmul.mubr.f32.gmra.mxu0 %v138
    %v421 = vpop.f32.mrf.mxu0
    %v422 = vadd.f32 0.0, %v421
    %v423 = vpop.f32.mrf.mxu0
    %v424 = vadd.f32 0.0, %v423
    %425 = vmatprep.mubr.f32.mxu0 0.0
    %426 = vmatmul.mubr.f32.gmra.mxu0 %v141
    %v427 = vpop.f32.mrf.mxu0
    %v428 = vadd.f32 0.0, %v427
    %v429 = vpop.f32.mrf.mxu0
    %v430 = vadd.f32 0.0, %v429
    %431 = vmatprep.mubr.f32.mxu0 0.0
    %432 = vmatmul.mubr.f32.gmra.mxu0 %v144
    %v433 = vpop.f32.mrf.mxu0
    %v434 = vadd.f32 0.0, %v433
    %v435 = vpop.f32.mrf.mxu0
    %v436 = vadd.f32 0.0, %v435
    %437 = vmatprep.mubr.f32.mxu0 0.0
    %438 = vmatmul.mubr.f32.gmra.mxu0 %v147
    %v439 = vpop.f32.mrf.mxu0
    %v440 = vadd.f32 0.0, %v439
    %v441 = vpop.f32.mrf.mxu0
    %v442 = vadd.f32 0.0, %v441
    %443 = vmatprep.mubr.f32.mxu0 0.0
    %444 = vmatmul.mubr.f32.gmra.mxu0 %v150
    %v445 = vpop.f32.mrf.mxu0
    %v446 = vadd.f32 0.0, %v445
    %v447 = vpop.f32.mrf.mxu0
    %v448 = vadd.f32 0.0, %v447
    %449 = vmatprep.mubr.f32.mxu0 0.0
    %450 = vmatmul.mubr.f32.gmra.mxu0 %v153
    %v451 = vpop.f32.mrf.mxu0
    %v452 = vadd.f32 0.0, %v451
    %v453 = vpop.f32.mrf.mxu0
    %v454 = vadd.f32 0.0, %v453
    %455 = vmatprep.mubr.f32.mxu0 0.0
    %456 = vmatmul.mubr.f32.gmra.mxu0 %v156
    %v457 = vpop.f32.mrf.mxu0
    %v458 = vadd.f32 0.0, %v457
    %v459 = vpop.f32.mrf.mxu0
    %v460 = vadd.f32 0.0, %v459
    %461 = vmatprep.mubr.f32.mxu0 0.0
    %462 = vmatmul.mubr.f32.gmra.mxu0 %v159
    %v463 = vpop.f32.mrf.mxu0
    %v464 = vadd.f32 0.0, %v463
    %v465 = vpop.f32.mrf.mxu0
    %v466 = vadd.f32 0.0, %v465
    %467 = vmatprep.mubr.f32.mxu0 0.0
    %468 = vmatmul.mubr.f32.gmra.mxu0 %v162
    %v469 = vpop.f32.mrf.mxu0
    %v470 = vadd.f32 0.0, %v469
    %v471 = vpop.f32.mrf.mxu0
    %v472 = vadd.f32 0.0, %v471
    %473 = vmatprep.mubr.f32.mxu0 0.0
    %474 = vmatmul.mubr.f32.gmra.mxu0 %v165
    %v475 = vpop.f32.mrf.mxu0
    %v476 = vadd.f32 0.0, %v475
    %v477 = vpop.f32.mrf.mxu0
    %v478 = vadd.f32 0.0, %v477
    %479 = vmatprep.mubr.f32.mxu0 0.0
    %480 = vmatmul.mubr.f32.gmra.mxu0 %v168
    %v481 = vpop.f32.mrf.mxu0
    %v482 = vadd.f32 0.0, %v481
    %v483 = vpop.f32.mrf.mxu0
    %v484 = vadd.f32 0.0, %v483
    %485 = vmatprep.mubr.f32.mxu0 0.0
    %486 = vmatmul.mubr.f32.gmra.mxu0 %v171
    %v487 = vpop.f32.mrf.mxu0
    %v488 = vadd.f32 0.0, %v487
    %v489 = vpop.f32.mrf.mxu0
    %v490 = vadd.f32 0.0, %v489
    %491 = vmatprep.mubr.f32.mxu0 0.0
    %492 = vmatmul.mubr.f32.gmra.mxu0 %v174
    %v493 = vpop.f32.mrf.mxu0
    %v494 = vadd.f32 0.0, %v493
    %v495 = vpop.f32.mrf.mxu0
    %v496 = vadd.f32 0.0, %v495
    %497 = vdwg.mxu0
    %498 = vmatprep.subr.mxu0 0.0
    %499 = vmatpush1.msra.mxu0 0.0
    %500 = vmatprep.subr.mxu0 0.0
    %501 = vmatpush1.msra.mxu0 0.0
    %502 = vmatprep.subr.mxu0 0.0
    %503 = vmatpush1.msra.mxu0 0.0
    %504 = vmatprep.subr.mxu0 0.0
    %505 = vmatpush1.msra.mxu0 0.0
    %506 = vmatprep.subr.mxu0 0.0
    %507 = vmatpush1.msra.mxu0 0.0
    %508 = vmatprep.subr.mxu0 0.0
    %509 = vmatpush1.msra.mxu0 0.0
    %510 = vmatprep.subr.mxu0 0.0
    %511 = vmatpush1.msra.mxu0 0.0
    %512 = vmatprep.subr.mxu0 0.0
    %513 = vmatpush1.msra.mxu0 0.0
    %514 = vmatprep.subr.mxu0 0.0
    %515 = vmatpush1.msra.mxu0 0.0
    %516 = vmatprep.subr.mxu0 0.0
    %517 = vmatpush1.msra.mxu0 0.0
    %518 = vmatprep.subr.mxu0 0.0
    %519 = vmatpush1.msra.mxu0 0.0
    %520 = vmatprep.subr.mxu0 0.0
    %521 = vmatpush1.msra.mxu0 0.0
    %522 = vmatprep.subr.mxu0 %v124
    %523 = vmatpush1.msra.mxu0 %v123
    %524 = vmatprep.subr.mxu0 %v116
    %525 = vmatpush1.msra.mxu0 %v115
    %526 = vmatprep.subr.mxu0 %v108
    %527 = vmatpush1.msra.mxu0 %v107
    %528 = vmatprep.subr.mxu0 %v100
    %529 = vmatpush1.msra.mxu0 %v99
    %530 = vmatprep.subr.mxu0 0.0
    %531 = vmatpush2.msra.mxu0 0.0
    %532 = vmatprep.subr.mxu0 0.0
    %533 = vmatpush2.msra.mxu0 0.0
    %534 = vmatprep.subr.mxu0 0.0
    %535 = vmatpush2.msra.mxu0 0.0
    %536 = vmatprep.subr.mxu0 0.0
    %537 = vmatpush2.msra.mxu0 0.0
    %538 = vmatprep.subr.mxu0 0.0
    %539 = vmatpush2.msra.mxu0 0.0
    %540 = vmatprep.subr.mxu0 0.0
    %541 = vmatpush2.msra.mxu0 0.0
    %542 = vmatprep.subr.mxu0 0.0
    %543 = vmatpush2.msra.mxu0 0.0
    %544 = vmatprep.subr.mxu0 0.0
    %545 = vmatpush2.msra.mxu0 0.0
    %546 = vmatprep.subr.mxu0 0.0
    %547 = vmatpush2.msra.mxu0 0.0
    %548 = vmatprep.subr.mxu0 0.0
    %549 = vmatpush2.msra.mxu0 0.0
    %550 = vmatprep.subr.mxu0 0.0
    %551 = vmatpush2.msra.mxu0 0.0
    %552 = vmatprep.subr.mxu0 0.0
    %553 = vmatpush2.msra.mxu0 0.0
    %554 = vmatprep.subr.mxu0 0.0
    %555 = vmatpush2.msra.mxu0 0.0
    %556 = vmatprep.subr.mxu0 0.0
    %557 = vmatpush2.msra.mxu0 0.0
    %558 = vmatprep.subr.mxu0 0.0
    %559 = vmatpush2.msra.mxu0 0.0
    %560 = vmatprep.subr.mxu0 0.0
    %561 = vmatpush2.msra.mxu0 0.0
    %562 = vmatprep.mubr.f32.mxu0 0.0
    %563 = vmatmul.mubr.f32.gmra.mxu0 %v129
    %v564 = vpop.f32.mrf.mxu0
    %v565 = vadd.f32 0.0, %v564
    %v566 = vpop.f32.mrf.mxu0
    %v567 = vadd.f32 0.0, %v566
    %568 = vmatprep.mubr.f32.mxu0 0.0
    %569 = vmatmul.mubr.f32.gmra.mxu0 %v132
    %v570 = vpop.f32.mrf.mxu0
    %v571 = vadd.f32 0.0, %v570
    %v572 = vpop.f32.mrf.mxu0
    %v573 = vadd.f32 0.0, %v572
    %574 = vmatprep.mubr.f32.mxu0 0.0
    %575 = vmatmul.mubr.f32.gmra.mxu0 %v135
    %v576 = vpop.f32.mrf.mxu0
    %v577 = vadd.f32 0.0, %v576
    %v578 = vpop.f32.mrf.mxu0
    %v579 = vadd.f32 0.0, %v578
    %580 = vmatprep.mubr.f32.mxu0 0.0
    %581 = vmatmul.mubr.f32.gmra.mxu0 %v138
    %v582 = vpop.f32.mrf.mxu0
    %v583 = vadd.f32 0.0, %v582
    %v584 = vpop.f32.mrf.mxu0
    %v585 = vadd.f32 0.0, %v584
    %586 = vmatprep.mubr.f32.mxu0 0.0
    %587 = vmatmul.mubr.f32.gmra.mxu0 %v141
    %v588 = vpop.f32.mrf.mxu0
    %v589 = vadd.f32 0.0, %v588
    %v590 = vpop.f32.mrf.mxu0
    %v591 = vadd.f32 0.0, %v590
    %592 = vmatprep.mubr.f32.mxu0 0.0
    %593 = vmatmul.mubr.f32.gmra.mxu0 %v144
    %v594 = vpop.f32.mrf.mxu0
    %v595 = vadd.f32 0.0, %v594
    %v596 = vpop.f32.mrf.mxu0
    %v597 = vadd.f32 0.0, %v596
    %598 = vmatprep.mubr.f32.mxu0 0.0
    %599 = vmatmul.mubr.f32.gmra.mxu0 %v147
    %v600 = vpop.f32.mrf.mxu0
    %v601 = vadd.f32 0.0, %v600
    %v602 = vpop.f32.mrf.mxu0
    %v603 = vadd.f32 0.0, %v602
    %604 = vmatprep.mubr.f32.mxu0 0.0
    %605 = vmatmul.mubr.f32.gmra.mxu0 %v150
    %v606 = vpop.f32.mrf.mxu0
    %v607 = vadd.f32 0.0, %v606
    %v608 = vpop.f32.mrf.mxu0
    %v609 = vadd.f32 0.0, %v608
    %610 = vmatprep.mubr.f32.mxu0 0.0
    %611 = vmatmul.mubr.f32.gmra.mxu0 %v153
    %v612 = vpop.f32.mrf.mxu0
    %v613 = vadd.f32 0.0, %v612
    %v614 = vpop.f32.mrf.mxu0
    %v615 = vadd.f32 0.0, %v614
    %616 = vmatprep.mubr.f32.mxu0 0.0
    %617 = vmatmul.mubr.f32.gmra.mxu0 %v156
    %v618 = vpop.f32.mrf.mxu0
    %v619 = vadd.f32 0.0, %v618
    %v620 = vpop.f32.mrf.mxu0
    %v621 = vadd.f32 0.0, %v620
    %622 = vmatprep.mubr.f32.mxu0 0.0
    %623 = vmatmul.mubr.f32.gmra.mxu0 %v159
    %v624 = vpop.f32.mrf.mxu0
    %v625 = vadd.f32 0.0, %v624
    %v626 = vpop.f32.mrf.mxu0
    %v627 = vadd.f32 0.0, %v626
    %628 = vmatprep.mubr.f32.mxu0 0.0
    %629 = vmatmul.mubr.f32.gmra.mxu0 %v162
    %v630 = vpop.f32.mrf.mxu0
    %v631 = vadd.f32 0.0, %v630
    %v632 = vpop.f32.mrf.mxu0
    %v633 = vadd.f32 0.0, %v632
    %634 = vmatprep.mubr.f32.mxu0 0.0
    %635 = vmatmul.mubr.f32.gmra.mxu0 %v165
    %v636 = vpop.f32.mrf.mxu0
    %v637 = vadd.f32 0.0, %v636
    %v638 = vpop.f32.mrf.mxu0
    %v639 = vadd.f32 0.0, %v638
    %640 = vmatprep.mubr.f32.mxu0 0.0
    %641 = vmatmul.mubr.f32.gmra.mxu0 %v168
    %v642 = vpop.f32.mrf.mxu0
    %v643 = vadd.f32 0.0, %v642
    %v644 = vpop.f32.mrf.mxu0
    %v645 = vadd.f32 0.0, %v644
    %646 = vmatprep.mubr.f32.mxu0 0.0
    %647 = vmatmul.mubr.f32.gmra.mxu0 %v171
    %v648 = vpop.f32.mrf.mxu0
    %v649 = vadd.f32 0.0, %v648
    %v650 = vpop.f32.mrf.mxu0
    %v651 = vadd.f32 0.0, %v650
    %652 = vmatprep.mubr.f32.mxu0 0.0
    %653 = vmatmul.mubr.f32.gmra.mxu0 %v174
    %v654 = vpop.f32.mrf.mxu0
    %v655 = vadd.f32 0.0, %v654
    %v656 = vpop.f32.mrf.mxu0
    %v657 = vadd.f32 0.0, %v656
    %658 = vdwg.mxu0
    %659 = vmatprep.subr.mxu0 0.0
    %660 = vmatpush1.msra.mxu0 0.0
    %661 = vmatprep.subr.mxu0 0.0
    %662 = vmatpush1.msra.mxu0 0.0
    %663 = vmatprep.subr.mxu0 0.0
    %664 = vmatpush1.msra.mxu0 0.0
    %665 = vmatprep.subr.mxu0 0.0
    %666 = vmatpush1.msra.mxu0 0.0
    %667 = vmatprep.subr.mxu0 0.0
    %668 = vmatpush1.msra.mxu0 0.0
    %669 = vmatprep.subr.mxu0 0.0
    %670 = vmatpush1.msra.mxu0 0.0
    %671 = vmatprep.subr.mxu0 0.0
    %672 = vmatpush1.msra.mxu0 0.0
    %673 = vmatprep.subr.mxu0 0.0
    %674 = vmatpush1.msra.mxu0 0.0
    %675 = vmatprep.subr.mxu0 0.0
    %676 = vmatpush1.msra.mxu0 0.0
    %677 = vmatprep.subr.mxu0 0.0
    %678 = vmatpush1.msra.mxu0 0.0
    %679 = vmatprep.subr.mxu0 0.0
    %680 = vmatpush1.msra.mxu0 0.0
    %681 = vmatprep.subr.mxu0 0.0
    %682 = vmatpush1.msra.mxu0 0.0
    %683 = vmatprep.subr.mxu0 %v126
    %684 = vmatpush1.msra.mxu0 %v125
    %685 = vmatprep.subr.mxu0 %v118
    %686 = vmatpush1.msra.mxu0 %v117
    %687 = vmatprep.subr.mxu0 %v110
    %688 = vmatpush1.msra.mxu0 %v109
    %689 = vmatprep.subr.mxu0 %v102
    %690 = vmatpush1.msra.mxu0 %v101
    %691 = vmatprep.subr.mxu0 0.0
    %692 = vmatpush2.msra.mxu0 0.0
    %693 = vmatprep.subr.mxu0 0.0
    %694 = vmatpush2.msra.mxu0 0.0
    %695 = vmatprep.subr.mxu0 0.0
    %696 = vmatpush2.msra.mxu0 0.0
    %697 = vmatprep.subr.mxu0 0.0
    %698 = vmatpush2.msra.mxu0 0.0
    %699 = vmatprep.subr.mxu0 0.0
    %700 = vmatpush2.msra.mxu0 0.0
    %701 = vmatprep.subr.mxu0 0.0
    %702 = vmatpush2.msra.mxu0 0.0
    %703 = vmatprep.subr.mxu0 0.0
    %704 = vmatpush2.msra.mxu0 0.0
    %705 = vmatprep.subr.mxu0 0.0
    %706 = vmatpush2.msra.mxu0 0.0
    %707 = vmatprep.subr.mxu0 0.0
    %708 = vmatpush2.msra.mxu0 0.0
    %709 = vmatprep.subr.mxu0 0.0
    %710 = vmatpush2.msra.mxu0 0.0
    %711 = vmatprep.subr.mxu0 0.0
    %712 = vmatpush2.msra.mxu0 0.0
    %713 = vmatprep.subr.mxu0 0.0
    %714 = vmatpush2.msra.mxu0 0.0
    %715 = vmatprep.subr.mxu0 0.0
    %716 = vmatpush2.msra.mxu0 0.0
    %717 = vmatprep.subr.mxu0 0.0
    %718 = vmatpush2.msra.mxu0 0.0
    %719 = vmatprep.subr.mxu0 0.0
    %720 = vmatpush2.msra.mxu0 0.0
    %721 = vmatprep.subr.mxu0 0.0
    %722 = vmatpush2.msra.mxu0 0.0
    %723 = vmatprep.mubr.f32.mxu0 0.0
    %724 = vmatmul.mubr.f32.gmra.mxu0 %v129
    %v725 = vpop.f32.mrf.mxu0
    %v726 = vadd.f32 0.0, %v725
    %v727 = vpop.f32.mrf.mxu0
    %v728 = vadd.f32 0.0, %v727
    %729 = vmatprep.mubr.f32.mxu0 0.0
    %730 = vmatmul.mubr.f32.gmra.mxu0 %v132
    %v731 = vpop.f32.mrf.mxu0
    %v732 = vadd.f32 0.0, %v731
    %v733 = vpop.f32.mrf.mxu0
    %v734 = vadd.f32 0.0, %v733
    %735 = vmatprep.mubr.f32.mxu0 0.0
    %736 = vmatmul.mubr.f32.gmra.mxu0 %v135
    %v737 = vpop.f32.mrf.mxu0
    %v738 = vadd.f32 0.0, %v737
    %v739 = vpop.f32.mrf.mxu0
    %v740 = vadd.f32 0.0, %v739
    %741 = vmatprep.mubr.f32.mxu0 0.0
    %742 = vmatmul.mubr.f32.gmra.mxu0 %v138
    %v743 = vpop.f32.mrf.mxu0
    %v744 = vadd.f32 0.0, %v743
    %v745 = vpop.f32.mrf.mxu0
    %v746 = vadd.f32 0.0, %v745
    %747 = vmatprep.mubr.f32.mxu0 0.0
    %748 = vmatmul.mubr.f32.gmra.mxu0 %v141
    %v749 = vpop.f32.mrf.mxu0
    %v750 = vadd.f32 0.0, %v749
    %v751 = vpop.f32.mrf.mxu0
    %v752 = vadd.f32 0.0, %v751
    %753 = vmatprep.mubr.f32.mxu0 0.0
    %754 = vmatmul.mubr.f32.gmra.mxu0 %v144
    %v755 = vpop.f32.mrf.mxu0
    %v756 = vadd.f32 0.0, %v755
    %v757 = vpop.f32.mrf.mxu0
    %v758 = vadd.f32 0.0, %v757
    %759 = vmatprep.mubr.f32.mxu0 0.0
    %760 = vmatmul.mubr.f32.gmra.mxu0 %v147
    %v761 = vpop.f32.mrf.mxu0
    %v762 = vadd.f32 0.0, %v761
    %v763 = vpop.f32.mrf.mxu0
    %v764 = vadd.f32 0.0, %v763
    %765 = vmatprep.mubr.f32.mxu0 0.0
    %766 = vmatmul.mubr.f32.gmra.mxu0 %v150
    %v767 = vpop.f32.mrf.mxu0
    %v768 = vadd.f32 0.0, %v767
    %v769 = vpop.f32.mrf.mxu0
    %v770 = vadd.f32 0.0, %v769
    %771 = vmatprep.mubr.f32.mxu0 0.0
    %772 = vmatmul.mubr.f32.gmra.mxu0 %v153
    %v773 = vpop.f32.mrf.mxu0
    %v774 = vadd.f32 0.0, %v773
    %v775 = vpop.f32.mrf.mxu0
    %v776 = vadd.f32 0.0, %v775
    %777 = vmatprep.mubr.f32.mxu0 0.0
    %778 = vmatmul.mubr.f32.gmra.mxu0 %v156
    %v779 = vpop.f32.mrf.mxu0
    %v780 = vadd.f32 0.0, %v779
    %v781 = vpop.f32.mrf.mxu0
    %v782 = vadd.f32 0.0, %v781
    %783 = vmatprep.mubr.f32.mxu0 0.0
    %784 = vmatmul.mubr.f32.gmra.mxu0 %v159
    %v785 = vpop.f32.mrf.mxu0
    %v786 = vadd.f32 0.0, %v785
    %v787 = vpop.f32.mrf.mxu0
    %v788 = vadd.f32 0.0, %v787
    %789 = vmatprep.mubr.f32.mxu0 0.0
    %790 = vmatmul.mubr.f32.gmra.mxu0 %v162
    %v791 = vpop.f32.mrf.mxu0
    %v792 = vadd.f32 0.0, %v791
    %v793 = vpop.f32.mrf.mxu0
    %v794 = vadd.f32 0.0, %v793
    %795 = vmatprep.mubr.f32.mxu0 0.0
    %796 = vmatmul.mubr.f32.gmra.mxu0 %v165
    %v797 = vpop.f32.mrf.mxu0
    %v798 = vadd.f32 0.0, %v797
    %v799 = vpop.f32.mrf.mxu0
    %v800 = vadd.f32 0.0, %v799
    %801 = vmatprep.mubr.f32.mxu0 0.0
    %802 = vmatmul.mubr.f32.gmra.mxu0 %v168
    %v803 = vpop.f32.mrf.mxu0
    %v804 = vadd.f32 0.0, %v803
    %v805 = vpop.f32.mrf.mxu0
    %v806 = vadd.f32 0.0, %v805
    %807 = vmatprep.mubr.f32.mxu0 0.0
    %808 = vmatmul.mubr.f32.gmra.mxu0 %v171
    %v809 = vpop.f32.mrf.mxu0
    %v810 = vadd.f32 0.0, %v809
    %v811 = vpop.f32.mrf.mxu0
    %v812 = vadd.f32 0.0, %v811
    %813 = vmatprep.mubr.f32.mxu0 0.0
    %814 = vmatmul.mubr.f32.gmra.mxu0 %v174
    %v815 = vpop.f32.mrf.mxu0
    %v816 = vadd.f32 0.0, %v815
    %v817 = vpop.f32.mrf.mxu0
    %v818 = vadd.f32 0.0, %v817
    %819 = vdwg.mxu0
    %v820 = vld [vmem:[%s5] sm:$0x3]
    %v822 = vlaneseq
    %v823 = vshrl.u32 %v822, 7
    %v824 = vsub.s32 0, %v823
    %v825 = vrot.slane %v820, %v824
    %v826 = vlaneseq
    %v827 = vshrl.u32 %v826, 7
    %v828 = vsub.s32 1, %v827
    %v829 = vrot.slane %v820, %v828
    %v832 = vadd.f32 %v726, %v825
    %v833 = vadd.f32 %v728, %v829
    %v834 = vadd.f32 %v732, %v825
    %v835 = vadd.f32 %v734, %v829
    %v836 = vadd.f32 %v738, %v825
    %v837 = vadd.f32 %v740, %v829
    %v838 = vadd.f32 %v744, %v825
    %v839 = vadd.f32 %v746, %v829
    %v840 = vadd.f32 %v750, %v825
    %v841 = vadd.f32 %v752, %v829
    %v842 = vadd.f32 %v756, %v825
    %v843 = vadd.f32 %v758, %v829
    %v844 = vadd.f32 %v762, %v825
    %v845 = vadd.f32 %v764, %v829
    %v846 = vadd.f32 %v768, %v825
    %v847 = vadd.f32 %v770, %v829
    %v848 = vadd.f32 %v774, %v825
    %v849 = vadd.f32 %v776, %v829
    %v850 = vadd.f32 %v780, %v825
    %v851 = vadd.f32 %v782, %v829
    %v852 = vadd.f32 %v786, %v825
    %v853 = vadd.f32 %v788, %v829
    %v854 = vadd.f32 %v792, %v825
    %v855 = vadd.f32 %v794, %v829
    %v856 = vadd.f32 %v798, %v825
    %v857 = vadd.f32 %v800, %v829
    %v858 = vadd.f32 %v804, %v825
    %v859 = vadd.f32 %v806, %v829
    %v860 = vadd.f32 %v810, %v825
    %v861 = vadd.f32 %v812, %v829
    %v862 = vadd.f32 %v816, %v825
    %v863 = vadd.f32 %v818, %v829
    %v864 = vld [vmem:[#allocation5] sm:$0xff]
    %v865 = vld [vmem:[#allocation5 + $0x8] sm:$0xff]
    %v866 = vld [vmem:[#allocation5 + $0x10] sm:$0xff]
    %v867 = vld [vmem:[#allocation5 + $0x18] sm:$0xff]
    %v868 = vld [vmem:[#allocation5 + $0x20] sm:$0xff]
    %v869 = vld [vmem:[#allocation5 + $0x28] sm:$0xff]
    %v870 = vld [vmem:[#allocation5 + $0x30] sm:$0xff]
    %v871 = vld [vmem:[#allocation5 + $0x38] sm:$0xff]
    %v872 = vld [vmem:[#allocation5 + $0x40] sm:$0xff]
    %v873 = vld [vmem:[#allocation5 + $0x48] sm:$0xff]
    %v874 = vld [vmem:[#allocation5 + $0x50] sm:$0xff]
    %v875 = vld [vmem:[#allocation5 + $0x58] sm:$0xff]
    %v876 = vld [vmem:[#allocation5 + $0x60] sm:$0xff]
    %v877 = vld [vmem:[#allocation5 + $0x68] sm:$0xff]
    %v878 = vld [vmem:[#allocation5 + $0x70] sm:$0xff]
    %v879 = vld [vmem:[#allocation5 + $0x78] sm:$0xff]
    %s880 = scalar_lea.vmem [#allocation5], 128
    %v881 = vld [vmem:[%s880] sm:$0xff]
    %v882 = vld [vmem:[%s880 + $0x8] sm:$0xff]
    %v883 = vld [vmem:[%s880 + $0x10] sm:$0xff]
    %v884 = vld [vmem:[%s880 + $0x18] sm:$0xff]
    %v885 = vld [vmem:[%s880 + $0x20] sm:$0xff]
    %v886 = vld [vmem:[%s880 + $0x28] sm:$0xff]
    %v887 = vld [vmem:[%s880 + $0x30] sm:$0xff]
    %v888 = vld [vmem:[%s880 + $0x38] sm:$0xff]
    %v889 = vld [vmem:[%s880 + $0x40] sm:$0xff]
    %v890 = vld [vmem:[%s880 + $0x48] sm:$0xff]
    %v891 = vld [vmem:[%s880 + $0x50] sm:$0xff]
    %v892 = vld [vmem:[%s880 + $0x58] sm:$0xff]
    %v893 = vld [vmem:[%s880 + $0x60] sm:$0xff]
    %v894 = vld [vmem:[%s880 + $0x68] sm:$0xff]
    %v895 = vld [vmem:[%s880 + $0x70] sm:$0xff]
    %v896 = vld [vmem:[%s880 + $0x78] sm:$0xff]
    %897 = vmatprep.subr.mxu0 %v496
    %898 = vmatpush1.msra.mxu0 %v494
    %899 = vmatprep.subr.mxu0 %v490
    %900 = vmatpush1.msra.mxu0 %v488
    %901 = vmatprep.subr.mxu0 %v484
    %902 = vmatpush1.msra.mxu0 %v482
    %903 = vmatprep.subr.mxu0 %v478
    %904 = vmatpush1.msra.mxu0 %v476
    %905 = vmatprep.subr.mxu0 %v472
    %906 = vmatpush1.msra.mxu0 %v470
    %907 = vmatprep.subr.mxu0 %v466
    %908 = vmatpush1.msra.mxu0 %v464
    %909 = vmatprep.subr.mxu0 %v460
    %910 = vmatpush1.msra.mxu0 %v458
    %911 = vmatprep.subr.mxu0 %v454
    %912 = vmatpush1.msra.mxu0 %v452
    %913 = vmatprep.subr.mxu0 %v448
    %914 = vmatpush1.msra.mxu0 %v446
    %915 = vmatprep.subr.mxu0 %v442
    %916 = vmatpush1.msra.mxu0 %v440
    %917 = vmatprep.subr.mxu0 %v436
    %918 = vmatpush1.msra.mxu0 %v434
    %919 = vmatprep.subr.mxu0 %v430
    %920 = vmatpush1.msra.mxu0 %v428
    %921 = vmatprep.subr.mxu0 %v424
    %922 = vmatpush1.msra.mxu0 %v422
    %923 = vmatprep.subr.mxu0 %v418
    %924 = vmatpush1.msra.mxu0 %v416
    %925 = vmatprep.subr.mxu0 %v412
    %926 = vmatpush1.msra.mxu0 %v410
    %927 = vmatprep.subr.mxu0 %v406
    %928 = vmatpush1.msra.mxu0 %v404
    %929 = vmatprep.subr.mxu0 0.0
    %930 = vmatpush2.msra.mxu0 0.0
    %931 = vmatprep.subr.mxu0 0.0
    %932 = vmatpush2.msra.mxu0 0.0
    %933 = vmatprep.subr.mxu0 0.0
    %934 = vmatpush2.msra.mxu0 0.0
    %935 = vmatprep.subr.mxu0 0.0
    %936 = vmatpush2.msra.mxu0 0.0
    %937 = vmatprep.subr.mxu0 0.0
    %938 = vmatpush2.msra.mxu0 0.0
    %939 = vmatprep.subr.mxu0 0.0
    %940 = vmatpush2.msra.mxu0 0.0
    %941 = vmatprep.subr.mxu0 0.0
    %942 = vmatpush2.msra.mxu0 0.0
    %943 = vmatprep.subr.mxu0 0.0
    %944 = vmatpush2.msra.mxu0 0.0
    %945 = vmatprep.subr.mxu0 0.0
    %946 = vmatpush2.msra.mxu0 0.0
    %947 = vmatprep.subr.mxu0 0.0
    %948 = vmatpush2.msra.mxu0 0.0
    %949 = vmatprep.subr.mxu0 0.0
    %950 = vmatpush2.msra.mxu0 0.0
    %951 = vmatprep.subr.mxu0 0.0
    %952 = vmatpush2.msra.mxu0 0.0
    %953 = vmatprep.subr.mxu0 0.0
    %954 = vmatpush2.msra.mxu0 0.0
    %955 = vmatprep.subr.mxu0 0.0
    %956 = vmatpush2.msra.mxu0 0.0
    %957 = vmatprep.subr.mxu0 0.0
    %958 = vmatpush2.msra.mxu0 0.0
    %959 = vmatprep.subr.mxu0 0.0
    %960 = vmatpush2.msra.mxu0 0.0
    %961 = vmatprep.mubr.f32.mxu0 0.0
    %962 = vmatmul.mubr.f32.gmra.mxu0 %v881
    %v963 = vpop.f32.mrf.mxu0
    %v964 = vadd.f32 0.0, %v963
    %v965 = vpop.f32.mrf.mxu0
    %v966 = vadd.f32 0.0, %v965
    %967 = vmatprep.mubr.f32.mxu0 0.0
    %968 = vmatmul.mubr.f32.gmra.mxu0 %v882
    %v969 = vpop.f32.mrf.mxu0
    %v970 = vadd.f32 0.0, %v969
    %v971 = vpop.f32.mrf.mxu0
    %v972 = vadd.f32 0.0, %v971
    %973 = vmatprep.mubr.f32.mxu0 0.0
    %974 = vmatmul.mubr.f32.gmra.mxu0 %v883
    %v975 = vpop.f32.mrf.mxu0
    %v976 = vadd.f32 0.0, %v975
    %v977 = vpop.f32.mrf.mxu0
    %v978 = vadd.f32 0.0, %v977
    %979 = vmatprep.mubr.f32.mxu0 0.0
    %980 = vmatmul.mubr.f32.gmra.mxu0 %v884
    %v981 = vpop.f32.mrf.mxu0
    %v982 = vadd.f32 0.0, %v981
    %v983 = vpop.f32.mrf.mxu0
    %v984 = vadd.f32 0.0, %v983
    %985 = vmatprep.mubr.f32.mxu0 0.0
    %986 = vmatmul.mubr.f32.gmra.mxu0 %v885
    %v987 = vpop.f32.mrf.mxu0
    %v988 = vadd.f32 0.0, %v987
    %v989 = vpop.f32.mrf.mxu0
    %v990 = vadd.f32 0.0, %v989
    %991 = vmatprep.mubr.f32.mxu0 0.0
    %992 = vmatmul.mubr.f32.gmra.mxu0 %v886
    %v993 = vpop.f32.mrf.mxu0
    %v994 = vadd.f32 0.0, %v993
    %v995 = vpop.f32.mrf.mxu0
    %v996 = vadd.f32 0.0, %v995
    %997 = vmatprep.mubr.f32.mxu0 0.0
    %998 = vmatmul.mubr.f32.gmra.mxu0 %v887
    %v999 = vpop.f32.mrf.mxu0
    %v1000 = vadd.f32 0.0, %v999
    %v1001 = vpop.f32.mrf.mxu0
    %v1002 = vadd.f32 0.0, %v1001
    %1003 = vmatprep.mubr.f32.mxu0 0.0
    %1004 = vmatmul.mubr.f32.gmra.mxu0 %v888
    %v1005 = vpop.f32.mrf.mxu0
    %v1006 = vadd.f32 0.0, %v1005
    %v1007 = vpop.f32.mrf.mxu0
    %v1008 = vadd.f32 0.0, %v1007
    %1009 = vmatprep.mubr.f32.mxu0 0.0
    %1010 = vmatmul.mubr.f32.gmra.mxu0 %v889
    %v1011 = vpop.f32.mrf.mxu0
    %v1012 = vadd.f32 0.0, %v1011
    %v1013 = vpop.f32.mrf.mxu0
    %v1014 = vadd.f32 0.0, %v1013
    %1015 = vmatprep.mubr.f32.mxu0 0.0
    %1016 = vmatmul.mubr.f32.gmra.mxu0 %v890
    %v1017 = vpop.f32.mrf.mxu0
    %v1018 = vadd.f32 0.0, %v1017
    %v1019 = vpop.f32.mrf.mxu0
    %v1020 = vadd.f32 0.0, %v1019
    %1021 = vmatprep.mubr.f32.mxu0 0.0
    %1022 = vmatmul.mubr.f32.gmra.mxu0 %v891
    %v1023 = vpop.f32.mrf.mxu0
    %v1024 = vadd.f32 0.0, %v1023
    %v1025 = vpop.f32.mrf.mxu0
    %v1026 = vadd.f32 0.0, %v1025
    %1027 = vmatprep.mubr.f32.mxu0 0.0
    %1028 = vmatmul.mubr.f32.gmra.mxu0 %v892
    %v1029 = vpop.f32.mrf.mxu0
    %v1030 = vadd.f32 0.0, %v1029
    %v1031 = vpop.f32.mrf.mxu0
    %v1032 = vadd.f32 0.0, %v1031
    %1033 = vmatprep.mubr.f32.mxu0 0.0
    %1034 = vmatmul.mubr.f32.gmra.mxu0 %v893
    %v1035 = vpop.f32.mrf.mxu0
    %v1036 = vadd.f32 0.0, %v1035
    %v1037 = vpop.f32.mrf.mxu0
    %v1038 = vadd.f32 0.0, %v1037
    %1039 = vmatprep.mubr.f32.mxu0 0.0
    %1040 = vmatmul.mubr.f32.gmra.mxu0 %v894
    %v1041 = vpop.f32.mrf.mxu0
    %v1042 = vadd.f32 0.0, %v1041
    %v1043 = vpop.f32.mrf.mxu0
    %v1044 = vadd.f32 0.0, %v1043
    %1045 = vmatprep.mubr.f32.mxu0 0.0
    %1046 = vmatmul.mubr.f32.gmra.mxu0 %v895
    %v1047 = vpop.f32.mrf.mxu0
    %v1048 = vadd.f32 0.0, %v1047
    %v1049 = vpop.f32.mrf.mxu0
    %v1050 = vadd.f32 0.0, %v1049
    %1051 = vmatprep.mubr.f32.mxu0 0.0
    %1052 = vmatmul.mubr.f32.gmra.mxu0 %v896
    %v1053 = vpop.f32.mrf.mxu0
    %v1054 = vadd.f32 0.0, %v1053
    %v1055 = vpop.f32.mrf.mxu0
    %v1056 = vadd.f32 0.0, %v1055
    %1057 = vdwg.mxu0
    %1058 = vmatprep.subr.mxu0 %v335
    %1059 = vmatpush1.msra.mxu0 %v333
    %1060 = vmatprep.subr.mxu0 %v329
    %1061 = vmatpush1.msra.mxu0 %v327
    %1062 = vmatprep.subr.mxu0 %v323
    %1063 = vmatpush1.msra.mxu0 %v321
    %1064 = vmatprep.subr.mxu0 %v317
    %1065 = vmatpush1.msra.mxu0 %v315
    %1066 = vmatprep.subr.mxu0 %v311
    %1067 = vmatpush1.msra.mxu0 %v309
    %1068 = vmatprep.subr.mxu0 %v305
    %1069 = vmatpush1.msra.mxu0 %v303
    %1070 = vmatprep.subr.mxu0 %v299
    %1071 = vmatpush1.msra.mxu0 %v297
    %1072 = vmatprep.subr.mxu0 %v293
    %1073 = vmatpush1.msra.mxu0 %v291
    %1074 = vmatprep.subr.mxu0 %v287
    %1075 = vmatpush1.msra.mxu0 %v285
    %1076 = vmatprep.subr.mxu0 %v281
    %1077 = vmatpush1.msra.mxu0 %v279
    %1078 = vmatprep.subr.mxu0 %v275
    %1079 = vmatpush1.msra.mxu0 %v273
    %1080 = vmatprep.subr.mxu0 %v269
    %1081 = vmatpush1.msra.mxu0 %v267
    %1082 = vmatprep.subr.mxu0 %v263
    %1083 = vmatpush1.msra.mxu0 %v261
    %1084 = vmatprep.subr.mxu0 %v257
    %1085 = vmatpush1.msra.mxu0 %v255
    %1086 = vmatprep.subr.mxu0 %v251
    %1087 = vmatpush1.msra.mxu0 %v249
    %1088 = vmatprep.subr.mxu0 %v245
    %1089 = vmatpush1.msra.mxu0 %v243
    %1090 = vmatprep.subr.mxu0 0.0
    %1091 = vmatpush2.msra.mxu0 0.0
    %1092 = vmatprep.subr.mxu0 0.0
    %1093 = vmatpush2.msra.mxu0 0.0
    %1094 = vmatprep.subr.mxu0 0.0
    %1095 = vmatpush2.msra.mxu0 0.0
    %1096 = vmatprep.subr.mxu0 0.0
    %1097 = vmatpush2.msra.mxu0 0.0
    %1098 = vmatprep.subr.mxu0 0.0
    %1099 = vmatpush2.msra.mxu0 0.0
    %1100 = vmatprep.subr.mxu0 0.0
    %1101 = vmatpush2.msra.mxu0 0.0
    %1102 = vmatprep.subr.mxu0 0.0
    %1103 = vmatpush2.msra.mxu0 0.0
    %1104 = vmatprep.subr.mxu0 0.0
    %1105 = vmatpush2.msra.mxu0 0.0
    %1106 = vmatprep.subr.mxu0 0.0
    %1107 = vmatpush2.msra.mxu0 0.0
    %1108 = vmatprep.subr.mxu0 0.0
    %1109 = vmatpush2.msra.mxu0 0.0
    %1110 = vmatprep.subr.mxu0 0.0
    %1111 = vmatpush2.msra.mxu0 0.0
    %1112 = vmatprep.subr.mxu0 0.0
    %1113 = vmatpush2.msra.mxu0 0.0
    %1114 = vmatprep.subr.mxu0 0.0
    %1115 = vmatpush2.msra.mxu0 0.0
    %1116 = vmatprep.subr.mxu0 0.0
    %1117 = vmatpush2.msra.mxu0 0.0
    %1118 = vmatprep.subr.mxu0 0.0
    %1119 = vmatpush2.msra.mxu0 0.0
    %1120 = vmatprep.subr.mxu0 0.0
    %1121 = vmatpush2.msra.mxu0 0.0
    %1122 = vmatprep.mubr.f32.mxu0 0.0
    %1123 = vmatmul.mubr.f32.gmra.mxu0 %v864
    %v1124 = vpop.f32.mrf.mxu0
    %v1125 = vadd.f32 %v964, %v1124
    %v1126 = vpop.f32.mrf.mxu0
    %v1127 = vadd.f32 %v966, %v1126
    %1128 = vmatprep.mubr.f32.mxu0 0.0
    %1129 = vmatmul.mubr.f32.gmra.mxu0 %v865
    %v1130 = vpop.f32.mrf.mxu0
    %v1131 = vadd.f32 %v970, %v1130
    %v1132 = vpop.f32.mrf.mxu0
    %v1133 = vadd.f32 %v972, %v1132
    %1134 = vmatprep.mubr.f32.mxu0 0.0
    %1135 = vmatmul.mubr.f32.gmra.mxu0 %v866
    %v1136 = vpop.f32.mrf.mxu0
    %v1137 = vadd.f32 %v976, %v1136
    %v1138 = vpop.f32.mrf.mxu0
    %v1139 = vadd.f32 %v978, %v1138
    %1140 = vmatprep.mubr.f32.mxu0 0.0
    %1141 = vmatmul.mubr.f32.gmra.mxu0 %v867
    %v1142 = vpop.f32.mrf.mxu0
    %v1143 = vadd.f32 %v982, %v1142
    %v1144 = vpop.f32.mrf.mxu0
    %v1145 = vadd.f32 %v984, %v1144
    %1146 = vmatprep.mubr.f32.mxu0 0.0
    %1147 = vmatmul.mubr.f32.gmra.mxu0 %v868
    %v1148 = vpop.f32.mrf.mxu0
    %v1149 = vadd.f32 %v988, %v1148
    %v1150 = vpop.f32.mrf.mxu0
    %v1151 = vadd.f32 %v990, %v1150
    %1152 = vmatprep.mubr.f32.mxu0 0.0
    %1153 = vmatmul.mubr.f32.gmra.mxu0 %v869
    %v1154 = vpop.f32.mrf.mxu0
    %v1155 = vadd.f32 %v994, %v1154
    %v1156 = vpop.f32.mrf.mxu0
    %v1157 = vadd.f32 %v996, %v1156
    %1158 = vmatprep.mubr.f32.mxu0 0.0
    %1159 = vmatmul.mubr.f32.gmra.mxu0 %v870
    %v1160 = vpop.f32.mrf.mxu0
    %v1161 = vadd.f32 %v1000, %v1160
    %v1162 = vpop.f32.mrf.mxu0
    %v1163 = vadd.f32 %v1002, %v1162
    %1164 = vmatprep.mubr.f32.mxu0 0.0
    %1165 = vmatmul.mubr.f32.gmra.mxu0 %v871
    %v1166 = vpop.f32.mrf.mxu0
    %v1167 = vadd.f32 %v1006, %v1166
    %v1168 = vpop.f32.mrf.mxu0
    %v1169 = vadd.f32 %v1008, %v1168
    %1170 = vmatprep.mubr.f32.mxu0 0.0
    %1171 = vmatmul.mubr.f32.gmra.mxu0 %v872
    %v1172 = vpop.f32.mrf.mxu0
    %v1173 = vadd.f32 %v1012, %v1172
    %v1174 = vpop.f32.mrf.mxu0
    %v1175 = vadd.f32 %v1014, %v1174
    %1176 = vmatprep.mubr.f32.mxu0 0.0
    %1177 = vmatmul.mubr.f32.gmra.mxu0 %v873
    %v1178 = vpop.f32.mrf.mxu0
    %v1179 = vadd.f32 %v1018, %v1178
    %v1180 = vpop.f32.mrf.mxu0
    %v1181 = vadd.f32 %v1020, %v1180
    %1182 = vmatprep.mubr.f32.mxu0 0.0
    %1183 = vmatmul.mubr.f32.gmra.mxu0 %v874
    %v1184 = vpop.f32.mrf.mxu0
    %v1185 = vadd.f32 %v1024, %v1184
    %v1186 = vpop.f32.mrf.mxu0
    %v1187 = vadd.f32 %v1026, %v1186
    %1188 = vmatprep.mubr.f32.mxu0 0.0
    %1189 = vmatmul.mubr.f32.gmra.mxu0 %v875
    %v1190 = vpop.f32.mrf.mxu0
    %v1191 = vadd.f32 %v1030, %v1190
    %v1192 = vpop.f32.mrf.mxu0
    %v1193 = vadd.f32 %v1032, %v1192
    %1194 = vmatprep.mubr.f32.mxu0 0.0
    %1195 = vmatmul.mubr.f32.gmra.mxu0 %v876
    %v1196 = vpop.f32.mrf.mxu0
    %v1197 = vadd.f32 %v1036, %v1196
    %v1198 = vpop.f32.mrf.mxu0
    %v1199 = vadd.f32 %v1038, %v1198
    %1200 = vmatprep.mubr.f32.mxu0 0.0
    %1201 = vmatmul.mubr.f32.gmra.mxu0 %v877
    %v1202 = vpop.f32.mrf.mxu0
    %v1203 = vadd.f32 %v1042, %v1202
    %v1204 = vpop.f32.mrf.mxu0
    %v1205 = vadd.f32 %v1044, %v1204
    %1206 = vmatprep.mubr.f32.mxu0 0.0
    %1207 = vmatmul.mubr.f32.gmra.mxu0 %v878
    %v1208 = vpop.f32.mrf.mxu0
    %v1209 = vadd.f32 %v1048, %v1208
    %v1210 = vpop.f32.mrf.mxu0
    %v1211 = vadd.f32 %v1050, %v1210
    %1212 = vmatprep.mubr.f32.mxu0 0.0
    %1213 = vmatmul.mubr.f32.gmra.mxu0 %v879
    %v1214 = vpop.f32.mrf.mxu0
    %v1215 = vadd.f32 %v1054, %v1214
    %v1216 = vpop.f32.mrf.mxu0
    %v1217 = vadd.f32 %v1056, %v1216
    %1218 = vdwg.mxu0
    %s1219 = scalar_lea.vmem [#allocation5], 256
    %v1220 = vld [vmem:[%s1219] sm:$0xff]
    %v1221 = vld [vmem:[%s1219 + $0x8] sm:$0xff]
    %v1222 = vld [vmem:[%s1219 + $0x10] sm:$0xff]
    %v1223 = vld [vmem:[%s1219 + $0x18] sm:$0xff]
    %v1224 = vld [vmem:[%s1219 + $0x20] sm:$0xff]
    %v1225 = vld [vmem:[%s1219 + $0x28] sm:$0xff]
    %v1226 = vld [vmem:[%s1219 + $0x30] sm:$0xff]
    %v1227 = vld [vmem:[%s1219 + $0x38] sm:$0xff]
    %v1228 = vld [vmem:[%s1219 + $0x40] sm:$0xff]
    %v1229 = vld [vmem:[%s1219 + $0x48] sm:$0xff]
    %v1230 = vld [vmem:[%s1219 + $0x50] sm:$0xff]
    %v1231 = vld [vmem:[%s1219 + $0x58] sm:$0xff]
    %v1232 = vld [vmem:[%s1219 + $0x60] sm:$0xff]
    %v1233 = vld [vmem:[%s1219 + $0x68] sm:$0xff]
    %v1234 = vld [vmem:[%s1219 + $0x70] sm:$0xff]
    %v1235 = vld [vmem:[%s1219 + $0x78] sm:$0xff]
    %1236 = vmatprep.subr.mxu0 %v657
    %1237 = vmatpush1.msra.mxu0 %v655
    %1238 = vmatprep.subr.mxu0 %v651
    %1239 = vmatpush1.msra.mxu0 %v649
    %1240 = vmatprep.subr.mxu0 %v645
    %1241 = vmatpush1.msra.mxu0 %v643
    %1242 = vmatprep.subr.mxu0 %v639
    %1243 = vmatpush1.msra.mxu0 %v637
    %1244 = vmatprep.subr.mxu0 %v633
    %1245 = vmatpush1.msra.mxu0 %v631
    %1246 = vmatprep.subr.mxu0 %v627
    %1247 = vmatpush1.msra.mxu0 %v625
    %1248 = vmatprep.subr.mxu0 %v621
    %1249 = vmatpush1.msra.mxu0 %v619
    %1250 = vmatprep.subr.mxu0 %v615
    %1251 = vmatpush1.msra.mxu0 %v613
    %1252 = vmatprep.subr.mxu0 %v609
    %1253 = vmatpush1.msra.mxu0 %v607
    %1254 = vmatprep.subr.mxu0 %v603
    %1255 = vmatpush1.msra.mxu0 %v601
    %1256 = vmatprep.subr.mxu0 %v597
    %1257 = vmatpush1.msra.mxu0 %v595
    %1258 = vmatprep.subr.mxu0 %v591
    %1259 = vmatpush1.msra.mxu0 %v589
    %1260 = vmatprep.subr.mxu0 %v585
    %1261 = vmatpush1.msra.mxu0 %v583
    %1262 = vmatprep.subr.mxu0 %v579
    %1263 = vmatpush1.msra.mxu0 %v577
    %1264 = vmatprep.subr.mxu0 %v573
    %1265 = vmatpush1.msra.mxu0 %v571
    %1266 = vmatprep.subr.mxu0 %v567
    %1267 = vmatpush1.msra.mxu0 %v565
    %1268 = vmatprep.subr.mxu0 0.0
    %1269 = vmatpush2.msra.mxu0 0.0
    %1270 = vmatprep.subr.mxu0 0.0
    %1271 = vmatpush2.msra.mxu0 0.0
    %1272 = vmatprep.subr.mxu0 0.0
    %1273 = vmatpush2.msra.mxu0 0.0
    %1274 = vmatprep.subr.mxu0 0.0
    %1275 = vmatpush2.msra.mxu0 0.0
    %1276 = vmatprep.subr.mxu0 0.0
    %1277 = vmatpush2.msra.mxu0 0.0
    %1278 = vmatprep.subr.mxu0 0.0
    %1279 = vmatpush2.msra.mxu0 0.0
    %1280 = vmatprep.subr.mxu0 0.0
    %1281 = vmatpush2.msra.mxu0 0.0
    %1282 = vmatprep.subr.mxu0 0.0
    %1283 = vmatpush2.msra.mxu0 0.0
    %1284 = vmatprep.subr.mxu0 0.0
    %1285 = vmatpush2.msra.mxu0 0.0
    %1286 = vmatprep.subr.mxu0 0.0
    %1287 = vmatpush2.msra.mxu0 0.0
    %1288 = vmatprep.subr.mxu0 0.0
    %1289 = vmatpush2.msra.mxu0 0.0
    %1290 = vmatprep.subr.mxu0 0.0
    %1291 = vmatpush2.msra.mxu0 0.0
    %1292 = vmatprep.subr.mxu0 0.0
    %1293 = vmatpush2.msra.mxu0 0.0
    %1294 = vmatprep.subr.mxu0 0.0
    %1295 = vmatpush2.msra.mxu0 0.0
    %1296 = vmatprep.subr.mxu0 0.0
    %1297 = vmatpush2.msra.mxu0 0.0
    %1298 = vmatprep.subr.mxu0 0.0
    %1299 = vmatpush2.msra.mxu0 0.0
    %1300 = vmatprep.mubr.f32.mxu0 0.0
    %1301 = vmatmul.mubr.f32.gmra.mxu0 %v1220
    %v1302 = vpop.f32.mrf.mxu0
    %v1303 = vadd.f32 0.0, %v1302
    %v1304 = vpop.f32.mrf.mxu0
    %v1305 = vadd.f32 0.0, %v1304
    %1306 = vmatprep.mubr.f32.mxu0 0.0
    %1307 = vmatmul.mubr.f32.gmra.mxu0 %v1221
    %v1308 = vpop.f32.mrf.mxu0
    %v1309 = vadd.f32 0.0, %v1308
    %v1310 = vpop.f32.mrf.mxu0
    %v1311 = vadd.f32 0.0, %v1310
    %1312 = vmatprep.mubr.f32.mxu0 0.0
    %1313 = vmatmul.mubr.f32.gmra.mxu0 %v1222
    %v1314 = vpop.f32.mrf.mxu0
    %v1315 = vadd.f32 0.0, %v1314
    %v1316 = vpop.f32.mrf.mxu0
    %v1317 = vadd.f32 0.0, %v1316
    %1318 = vmatprep.mubr.f32.mxu0 0.0
    %1319 = vmatmul.mubr.f32.gmra.mxu0 %v1223
    %v1320 = vpop.f32.mrf.mxu0
    %v1321 = vadd.f32 0.0, %v1320
    %v1322 = vpop.f32.mrf.mxu0
    %v1323 = vadd.f32 0.0, %v1322
    %1324 = vmatprep.mubr.f32.mxu0 0.0
    %1325 = vmatmul.mubr.f32.gmra.mxu0 %v1224
    %v1326 = vpop.f32.mrf.mxu0
    %v1327 = vadd.f32 0.0, %v1326
    %v1328 = vpop.f32.mrf.mxu0
    %v1329 = vadd.f32 0.0, %v1328
    %1330 = vmatprep.mubr.f32.mxu0 0.0
    %1331 = vmatmul.mubr.f32.gmra.mxu0 %v1225
    %v1332 = vpop.f32.mrf.mxu0
    %v1333 = vadd.f32 0.0, %v1332
    %v1334 = vpop.f32.mrf.mxu0
    %v1335 = vadd.f32 0.0, %v1334
    %1336 = vmatprep.mubr.f32.mxu0 0.0
    %1337 = vmatmul.mubr.f32.gmra.mxu0 %v1226
    %v1338 = vpop.f32.mrf.mxu0
    %v1339 = vadd.f32 0.0, %v1338
    %v1340 = vpop.f32.mrf.mxu0
    %v1341 = vadd.f32 0.0, %v1340
    %1342 = vmatprep.mubr.f32.mxu0 0.0
    %1343 = vmatmul.mubr.f32.gmra.mxu0 %v1227
    %v1344 = vpop.f32.mrf.mxu0
    %v1345 = vadd.f32 0.0, %v1344
    %v1346 = vpop.f32.mrf.mxu0
    %v1347 = vadd.f32 0.0, %v1346
    %1348 = vmatprep.mubr.f32.mxu0 0.0
    %1349 = vmatmul.mubr.f32.gmra.mxu0 %v1228
    %v1350 = vpop.f32.mrf.mxu0
    %v1351 = vadd.f32 0.0, %v1350
    %v1352 = vpop.f32.mrf.mxu0
    %v1353 = vadd.f32 0.0, %v1352
    %1354 = vmatprep.mubr.f32.mxu0 0.0
    %1355 = vmatmul.mubr.f32.gmra.mxu0 %v1229
    %v1356 = vpop.f32.mrf.mxu0
    %v1357 = vadd.f32 0.0, %v1356
    %v1358 = vpop.f32.mrf.mxu0
    %v1359 = vadd.f32 0.0, %v1358
    %1360 = vmatprep.mubr.f32.mxu0 0.0
    %1361 = vmatmul.mubr.f32.gmra.mxu0 %v1230
    %v1362 = vpop.f32.mrf.mxu0
    %v1363 = vadd.f32 0.0, %v1362
    %v1364 = vpop.f32.mrf.mxu0
    %v1365 = vadd.f32 0.0, %v1364
    %1366 = vmatprep.mubr.f32.mxu0 0.0
    %1367 = vmatmul.mubr.f32.gmra.mxu0 %v1231
    %v1368 = vpop.f32.mrf.mxu0
    %v1369 = vadd.f32 0.0, %v1368
    %v1370 = vpop.f32.mrf.mxu0
    %v1371 = vadd.f32 0.0, %v1370
    %1372 = vmatprep.mubr.f32.mxu0 0.0
    %1373 = vmatmul.mubr.f32.gmra.mxu0 %v1232
    %v1374 = vpop.f32.mrf.mxu0
    %v1375 = vadd.f32 0.0, %v1374
    %v1376 = vpop.f32.mrf.mxu0
    %v1377 = vadd.f32 0.0, %v1376
    %1378 = vmatprep.mubr.f32.mxu0 0.0
    %1379 = vmatmul.mubr.f32.gmra.mxu0 %v1233
    %v1380 = vpop.f32.mrf.mxu0
    %v1381 = vadd.f32 0.0, %v1380
    %v1382 = vpop.f32.mrf.mxu0
    %v1383 = vadd.f32 0.0, %v1382
    %1384 = vmatprep.mubr.f32.mxu0 0.0
    %1385 = vmatmul.mubr.f32.gmra.mxu0 %v1234
    %v1386 = vpop.f32.mrf.mxu0
    %v1387 = vadd.f32 0.0, %v1386
    %v1388 = vpop.f32.mrf.mxu0
    %v1389 = vadd.f32 0.0, %v1388
    %1390 = vmatprep.mubr.f32.mxu0 0.0
    %1391 = vmatmul.mubr.f32.gmra.mxu0 %v1235
    %v1392 = vpop.f32.mrf.mxu0
    %v1393 = vadd.f32 0.0, %v1392
    %v1394 = vpop.f32.mrf.mxu0
    %v1395 = vadd.f32 0.0, %v1394
    %1396 = vdwg.mxu0
    %v1397 = vadd.f32 %v1125, %v1303
    %v1398 = vadd.f32 %v1127, %v1305
    %v1399 = vadd.f32 %v1131, %v1309
    %v1400 = vadd.f32 %v1133, %v1311
    %v1401 = vadd.f32 %v1137, %v1315
    %v1402 = vadd.f32 %v1139, %v1317
    %v1403 = vadd.f32 %v1143, %v1321
    %v1404 = vadd.f32 %v1145, %v1323
    %v1405 = vadd.f32 %v1149, %v1327
    %v1406 = vadd.f32 %v1151, %v1329
    %v1407 = vadd.f32 %v1155, %v1333
    %v1408 = vadd.f32 %v1157, %v1335
    %v1409 = vadd.f32 %v1161, %v1339
    %v1410 = vadd.f32 %v1163, %v1341
    %v1411 = vadd.f32 %v1167, %v1345
    %v1412 = vadd.f32 %v1169, %v1347
    %v1413 = vadd.f32 %v1173, %v1351
    %v1414 = vadd.f32 %v1175, %v1353
    %v1415 = vadd.f32 %v1179, %v1357
    %v1416 = vadd.f32 %v1181, %v1359
    %v1417 = vadd.f32 %v1185, %v1363
    %v1418 = vadd.f32 %v1187, %v1365
    %v1419 = vadd.f32 %v1191, %v1369
    %v1420 = vadd.f32 %v1193, %v1371
    %v1421 = vadd.f32 %v1197, %v1375
    %v1422 = vadd.f32 %v1199, %v1377
    %v1423 = vadd.f32 %v1203, %v1381
    %v1424 = vadd.f32 %v1205, %v1383
    %v1425 = vadd.f32 %v1209, %v1387
    %v1426 = vadd.f32 %v1211, %v1389
    %v1427 = vadd.f32 %v1215, %v1393
    %v1428 = vadd.f32 %v1217, %v1395
    %v1429 = vmax.f32 %v1397, 0.0
    %v1430 = vmax.f32 %v1398, 0.0
    %v1431 = vmax.f32 %v1399, 0.0
    %v1432 = vmax.f32 %v1400, 0.0
    %v1433 = vmax.f32 %v1401, 0.0
    %v1434 = vmax.f32 %v1402, 0.0
    %v1435 = vmax.f32 %v1403, 0.0
    %v1436 = vmax.f32 %v1404, 0.0
    %v1437 = vmax.f32 %v1405, 0.0
    %v1438 = vmax.f32 %v1406, 0.0
    %v1439 = vmax.f32 %v1407, 0.0
    %v1440 = vmax.f32 %v1408, 0.0
    %v1441 = vmax.f32 %v1409, 0.0
    %v1442 = vmax.f32 %v1410, 0.0
    %v1443 = vmax.f32 %v1411, 0.0
    %v1444 = vmax.f32 %v1412, 0.0
    %v1445 = vmax.f32 %v1413, 0.0
    %v1446 = vmax.f32 %v1414, 0.0
    %v1447 = vmax.f32 %v1415, 0.0
    %v1448 = vmax.f32 %v1416, 0.0
    %v1449 = vmax.f32 %v1417, 0.0
    %v1450 = vmax.f32 %v1418, 0.0
    %v1451 = vmax.f32 %v1419, 0.0
    %v1452 = vmax.f32 %v1420, 0.0
    %v1453 = vmax.f32 %v1421, 0.0
    %v1454 = vmax.f32 %v1422, 0.0
    %v1455 = vmax.f32 %v1423, 0.0
    %v1456 = vmax.f32 %v1424, 0.0
    %v1457 = vmax.f32 %v1425, 0.0
    %v1458 = vmax.f32 %v1426, 0.0
    %v1459 = vmax.f32 %v1427, 0.0
    %v1460 = vmax.f32 %v1428, 0.0
    %v1461 = vld [vmem:[#allocation8] sm:$0xff]
    %v1462 = vld [vmem:[#allocation8 + $0x8] sm:$0xff]
    %v1463 = vld [vmem:[#allocation8 + $0x10] sm:$0xff]
    %v1464 = vld [vmem:[#allocation8 + $0x18] sm:$0xff]
    %v1465 = vld [vmem:[#allocation8 + $0x20] sm:$0xff]
    %v1466 = vld [vmem:[#allocation8 + $0x28] sm:$0xff]
    %v1467 = vld [vmem:[#allocation8 + $0x30] sm:$0xff]
    %v1468 = vld [vmem:[#allocation8 + $0x38] sm:$0xff]
    %v1469 = vld [vmem:[#allocation8 + $0x40] sm:$0xff]
    %v1470 = vld [vmem:[#allocation8 + $0x48] sm:$0xff]
    %v1471 = vld [vmem:[#allocation8 + $0x50] sm:$0xff]
    %v1472 = vld [vmem:[#allocation8 + $0x58] sm:$0xff]
    %v1473 = vld [vmem:[#allocation8 + $0x60] sm:$0xff]
    %v1474 = vld [vmem:[#allocation8 + $0x68] sm:$0xff]
    %v1475 = vld [vmem:[#allocation8 + $0x70] sm:$0xff]
    %v1476 = vld [vmem:[#allocation8 + $0x78] sm:$0xff]
    %v1477 = vld [vmem:[#allocation8 + $0x80] sm:$0xff]
    %v1478 = vld [vmem:[#allocation8 + $0x88] sm:$0xff]
    %v1479 = vld [vmem:[#allocation8 + $0x90] sm:$0xff]
    %v1480 = vld [vmem:[#allocation8 + $0x98] sm:$0xff]
    %v1481 = vld [vmem:[#allocation8 + $0xa0] sm:$0xff]
    %v1482 = vld [vmem:[#allocation8 + $0xa8] sm:$0xff]
    %v1483 = vld [vmem:[#allocation8 + $0xb0] sm:$0xff]
    %v1484 = vld [vmem:[#allocation8 + $0xb8] sm:$0xff]
    %v1485 = vld [vmem:[#allocation8 + $0xc0] sm:$0xff]
    %v1486 = vld [vmem:[#allocation8 + $0xc8] sm:$0xff]
    %v1487 = vld [vmem:[#allocation8 + $0xd0] sm:$0xff]
    %v1488 = vld [vmem:[#allocation8 + $0xd8] sm:$0xff]
    %v1489 = vld [vmem:[#allocation8 + $0xe0] sm:$0xff]
    %v1490 = vld [vmem:[#allocation8 + $0xe8] sm:$0xff]
    %v1491 = vld [vmem:[#allocation8 + $0xf0] sm:$0xff]
    %v1492 = vld [vmem:[#allocation8 + $0xf8] sm:$0xff]
    %v1493 = vld [vmem:[#allocation8 + $0x100] sm:$0xff]
    %v1494 = vld [vmem:[#allocation8 + $0x108] sm:$0xff]
    %v1495 = vld [vmem:[#allocation8 + $0x110] sm:$0xff]
    %v1496 = vld [vmem:[#allocation8 + $0x118] sm:$0xff]
    %v1497 = vld [vmem:[#allocation8 + $0x120] sm:$0xff]
    %v1498 = vld [vmem:[#allocation8 + $0x128] sm:$0xff]
    %v1499 = vld [vmem:[#allocation8 + $0x130] sm:$0xff]
    %v1500 = vld [vmem:[#allocation8 + $0x138] sm:$0xff]
    %v1501 = vld [vmem:[#allocation8 + $0x140] sm:$0xff]
    %v1502 = vld [vmem:[#allocation8 + $0x148] sm:$0xff]
    %v1503 = vld [vmem:[#allocation8 + $0x150] sm:$0xff]
    %v1504 = vld [vmem:[#allocation8 + $0x158] sm:$0xff]
    %v1505 = vld [vmem:[#allocation8 + $0x160] sm:$0xff]
    %v1506 = vld [vmem:[#allocation8 + $0x168] sm:$0xff]
    %v1507 = vld [vmem:[#allocation8 + $0x170] sm:$0xff]
    %v1508 = vld [vmem:[#allocation8 + $0x178] sm:$0xff]
    %v1509 = vld [vmem:[#allocation8 + $0x180] sm:$0xff]
    %v1510 = vld [vmem:[#allocation8 + $0x188] sm:$0xff]
    %v1511 = vld [vmem:[#allocation8 + $0x190] sm:$0xff]
    %v1512 = vld [vmem:[#allocation8 + $0x198] sm:$0xff]
    %v1513 = vld [vmem:[#allocation8 + $0x1a0] sm:$0xff]
    %v1514 = vld [vmem:[#allocation8 + $0x1a8] sm:$0xff]
    %v1515 = vld [vmem:[#allocation8 + $0x1b0] sm:$0xff]
    %v1516 = vld [vmem:[#allocation8 + $0x1b8] sm:$0xff]
    %v1517 = vld [vmem:[#allocation8 + $0x1c0] sm:$0xff]
    %v1518 = vld [vmem:[#allocation8 + $0x1c8] sm:$0xff]
    %v1519 = vld [vmem:[#allocation8 + $0x1d0] sm:$0xff]
    %v1520 = vld [vmem:[#allocation8 + $0x1d8] sm:$0xff]
    %v1521 = vld [vmem:[#allocation8 + $0x1e0] sm:$0xff]
    %v1522 = vld [vmem:[#allocation8 + $0x1e8] sm:$0xff]
    %v1523 = vld [vmem:[#allocation8 + $0x1f0] sm:$0xff]
    %v1524 = vld [vmem:[#allocation8 + $0x1f8] sm:$0xff]
    %v1525 = vld [vmem:[%s4] sm:$0x3]
    %v1527 = vlaneseq
    %v1528 = vshrl.u32 %v1527, 7
    %v1529 = vsub.s32 0, %v1528
    %v1530 = vrot.slane %v1525, %v1529
    %v1531 = vlaneseq
    %v1532 = vshrl.u32 %v1531, 7
    %v1533 = vsub.s32 1, %v1532
    %v1534 = vrot.slane %v1525, %v1533
    %1537 = vmatprep.subr.mxu0 %v1492
    %1538 = vmatpush1.msra.mxu0 %v1491
    %1539 = vmatprep.subr.mxu0 %v1490
    %1540 = vmatpush1.msra.mxu0 %v1489
    %1541 = vmatprep.subr.mxu0 %v1488
    %1542 = vmatpush1.msra.mxu0 %v1487
    %1543 = vmatprep.subr.mxu0 %v1486
    %1544 = vmatpush1.msra.mxu0 %v1485
    %1545 = vmatprep.subr.mxu0 %v1484
    %1546 = vmatpush1.msra.mxu0 %v1483
    %1547 = vmatprep.subr.mxu0 %v1482
    %1548 = vmatpush1.msra.mxu0 %v1481
    %1549 = vmatprep.subr.mxu0 %v1480
    %1550 = vmatpush1.msra.mxu0 %v1479
    %1551 = vmatprep.subr.mxu0 %v1478
    %1552 = vmatpush1.msra.mxu0 %v1477
    %1553 = vmatprep.subr.mxu0 %v1476
    %1554 = vmatpush1.msra.mxu0 %v1475
    %1555 = vmatprep.subr.mxu0 %v1474
    %1556 = vmatpush1.msra.mxu0 %v1473
    %1557 = vmatprep.subr.mxu0 %v1472
    %1558 = vmatpush1.msra.mxu0 %v1471
    %1559 = vmatprep.subr.mxu0 %v1470
    %1560 = vmatpush1.msra.mxu0 %v1469
    %1561 = vmatprep.subr.mxu0 %v1468
    %1562 = vmatpush1.msra.mxu0 %v1467
    %1563 = vmatprep.subr.mxu0 %v1466
    %1564 = vmatpush1.msra.mxu0 %v1465
    %1565 = vmatprep.subr.mxu0 %v1464
    %1566 = vmatpush1.msra.mxu0 %v1463
    %1567 = vmatprep.subr.mxu0 %v1462
    %1568 = vmatpush1.msra.mxu0 %v1461
    %1569 = vmatprep.subr.mxu0 %v1524
    %1570 = vmatpush2.msra.mxu0 %v1523
    %1571 = vmatprep.subr.mxu0 %v1522
    %1572 = vmatpush2.msra.mxu0 %v1521
    %1573 = vmatprep.subr.mxu0 %v1520
    %1574 = vmatpush2.msra.mxu0 %v1519
    %1575 = vmatprep.subr.mxu0 %v1518
    %1576 = vmatpush2.msra.mxu0 %v1517
    %1577 = vmatprep.subr.mxu0 %v1516
    %1578 = vmatpush2.msra.mxu0 %v1515
    %1579 = vmatprep.subr.mxu0 %v1514
    %1580 = vmatpush2.msra.mxu0 %v1513
    %1581 = vmatprep.subr.mxu0 %v1512
    %1582 = vmatpush2.msra.mxu0 %v1511
    %1583 = vmatprep.subr.mxu0 %v1510
    %1584 = vmatpush2.msra.mxu0 %v1509
    %1585 = vmatprep.subr.mxu0 %v1508
    %1586 = vmatpush2.msra.mxu0 %v1507
    %1587 = vmatprep.subr.mxu0 %v1506
    %1588 = vmatpush2.msra.mxu0 %v1505
    %1589 = vmatprep.subr.mxu0 %v1504
    %1590 = vmatpush2.msra.mxu0 %v1503
    %1591 = vmatprep.subr.mxu0 %v1502
    %1592 = vmatpush2.msra.mxu0 %v1501
    %1593 = vmatprep.subr.mxu0 %v1500
    %1594 = vmatpush2.msra.mxu0 %v1499
    %1595 = vmatprep.subr.mxu0 %v1498
    %1596 = vmatpush2.msra.mxu0 %v1497
    %1597 = vmatprep.subr.mxu0 %v1496
    %1598 = vmatpush2.msra.mxu0 %v1495
    %1599 = vmatprep.subr.mxu0 %v1494
    %1600 = vmatpush2.msra.mxu0 %v1493
    %1601 = vmatprep.mubr.f32.mxu0 %v1430
    %1602 = vmatmul.mubr.f32.gmra.mxu0 %v1429
    %v1603 = vpop.f32.mrf.mxu0
    %v1604 = vadd.f32 %v1530, %v1603
    %v1605 = vpop.f32.mrf.mxu0
    %v1606 = vadd.f32 %v1534, %v1605
    %1607 = vmatprep.mubr.f32.mxu0 %v1432
    %1608 = vmatmul.mubr.f32.gmra.mxu0 %v1431
    %v1609 = vpop.f32.mrf.mxu0
    %v1610 = vadd.f32 %v1530, %v1609
    %v1611 = vpop.f32.mrf.mxu0
    %v1612 = vadd.f32 %v1534, %v1611
    %1613 = vmatprep.mubr.f32.mxu0 %v1434
    %1614 = vmatmul.mubr.f32.gmra.mxu0 %v1433
    %v1615 = vpop.f32.mrf.mxu0
    %v1616 = vadd.f32 %v1530, %v1615
    %v1617 = vpop.f32.mrf.mxu0
    %v1618 = vadd.f32 %v1534, %v1617
    %1619 = vmatprep.mubr.f32.mxu0 %v1436
    %1620 = vmatmul.mubr.f32.gmra.mxu0 %v1435
    %v1621 = vpop.f32.mrf.mxu0
    %v1622 = vadd.f32 %v1530, %v1621
    %v1623 = vpop.f32.mrf.mxu0
    %v1624 = vadd.f32 %v1534, %v1623
    %1625 = vmatprep.mubr.f32.mxu0 %v1438
    %1626 = vmatmul.mubr.f32.gmra.mxu0 %v1437
    %v1627 = vpop.f32.mrf.mxu0
    %v1628 = vadd.f32 %v1530, %v1627
    %v1629 = vpop.f32.mrf.mxu0
    %v1630 = vadd.f32 %v1534, %v1629
    %1631 = vmatprep.mubr.f32.mxu0 %v1440
    %1632 = vmatmul.mubr.f32.gmra.mxu0 %v1439
    %v1633 = vpop.f32.mrf.mxu0
    %v1634 = vadd.f32 %v1530, %v1633
    %v1635 = vpop.f32.mrf.mxu0
    %v1636 = vadd.f32 %v1534, %v1635
    %1637 = vmatprep.mubr.f32.mxu0 %v1442
    %1638 = vmatmul.mubr.f32.gmra.mxu0 %v1441
    %v1639 = vpop.f32.mrf.mxu0
    %v1640 = vadd.f32 %v1530, %v1639
    %v1641 = vpop.f32.mrf.mxu0
    %v1642 = vadd.f32 %v1534, %v1641
    %1643 = vmatprep.mubr.f32.mxu0 %v1444
    %1644 = vmatmul.mubr.f32.gmra.mxu0 %v1443
    %v1645 = vpop.f32.mrf.mxu0
    %v1646 = vadd.f32 %v1530, %v1645
    %v1647 = vpop.f32.mrf.mxu0
    %v1648 = vadd.f32 %v1534, %v1647
    %1649 = vmatprep.mubr.f32.mxu0 %v1446
    %1650 = vmatmul.mubr.f32.gmra.mxu0 %v1445
    %v1651 = vpop.f32.mrf.mxu0
    %v1652 = vadd.f32 %v1530, %v1651
    %v1653 = vpop.f32.mrf.mxu0
    %v1654 = vadd.f32 %v1534, %v1653
    %1655 = vmatprep.mubr.f32.mxu0 %v1448
    %1656 = vmatmul.mubr.f32.gmra.mxu0 %v1447
    %v1657 = vpop.f32.mrf.mxu0
    %v1658 = vadd.f32 %v1530, %v1657
    %v1659 = vpop.f32.mrf.mxu0
    %v1660 = vadd.f32 %v1534, %v1659
    %1661 = vmatprep.mubr.f32.mxu0 %v1450
    %1662 = vmatmul.mubr.f32.gmra.mxu0 %v1449
    %v1663 = vpop.f32.mrf.mxu0
    %v1664 = vadd.f32 %v1530, %v1663
    %v1665 = vpop.f32.mrf.mxu0
    %v1666 = vadd.f32 %v1534, %v1665
    %1667 = vmatprep.mubr.f32.mxu0 %v1452
    %1668 = vmatmul.mubr.f32.gmra.mxu0 %v1451
    %v1669 = vpop.f32.mrf.mxu0
    %v1670 = vadd.f32 %v1530, %v1669
    %v1671 = vpop.f32.mrf.mxu0
    %v1672 = vadd.f32 %v1534, %v1671
    %1673 = vmatprep.mubr.f32.mxu0 %v1454
    %1674 = vmatmul.mubr.f32.gmra.mxu0 %v1453
    %v1675 = vpop.f32.mrf.mxu0
    %v1676 = vadd.f32 %v1530, %v1675
    %v1677 = vpop.f32.mrf.mxu0
    %v1678 = vadd.f32 %v1534, %v1677
    %1679 = vmatprep.mubr.f32.mxu0 %v1456
    %1680 = vmatmul.mubr.f32.gmra.mxu0 %v1455
    %v1681 = vpop.f32.mrf.mxu0
    %v1682 = vadd.f32 %v1530, %v1681
    %v1683 = vpop.f32.mrf.mxu0
    %v1684 = vadd.f32 %v1534, %v1683
    %1685 = vmatprep.mubr.f32.mxu0 %v1458
    %1686 = vmatmul.mubr.f32.gmra.mxu0 %v1457
    %v1687 = vpop.f32.mrf.mxu0
    %v1688 = vadd.f32 %v1530, %v1687
    %v1689 = vpop.f32.mrf.mxu0
    %v1690 = vadd.f32 %v1534, %v1689
    %1691 = vmatprep.mubr.f32.mxu0 %v1460
    %1692 = vmatmul.mubr.f32.gmra.mxu0 %v1459
    %v1693 = vpop.f32.mrf.mxu0
    %v1694 = vadd.f32 %v1530, %v1693
    %v1695 = vpop.f32.mrf.mxu0
    %v1696 = vadd.f32 %v1534, %v1695
    %1697 = vdwg.mxu0
    %v1698 = vand.u32 2147483647, %v1604
    %v1699 = vand.u32 2147483647, %v1606
    %v1700 = vand.u32 2147483647, %v1610
    %v1701 = vand.u32 2147483647, %v1612
    %v1702 = vand.u32 2147483647, %v1616
    %v1703 = vand.u32 2147483647, %v1618
    %v1704 = vand.u32 2147483647, %v1622
    %v1705 = vand.u32 2147483647, %v1624
    %v1706 = vand.u32 2147483647, %v1628
    %v1707 = vand.u32 2147483647, %v1630
    %v1708 = vand.u32 2147483647, %v1634
    %v1709 = vand.u32 2147483647, %v1636
    %v1710 = vand.u32 2147483647, %v1640
    %v1711 = vand.u32 2147483647, %v1642
    %v1712 = vand.u32 2147483647, %v1646
    %v1713 = vand.u32 2147483647, %v1648
    %v1714 = vand.u32 2147483647, %v1652
    %v1715 = vand.u32 2147483647, %v1654
    %v1716 = vand.u32 2147483647, %v1658
    %v1717 = vand.u32 2147483647, %v1660
    %v1718 = vand.u32 2147483647, %v1664
    %v1719 = vand.u32 2147483647, %v1666
    %v1720 = vand.u32 2147483647, %v1670
    %v1721 = vand.u32 2147483647, %v1672
    %v1722 = vand.u32 2147483647, %v1676
    %v1723 = vand.u32 2147483647, %v1678
    %v1724 = vand.u32 2147483647, %v1682
    %v1725 = vand.u32 2147483647, %v1684
    %v1726 = vand.u32 2147483647, %v1688
    %v1727 = vand.u32 2147483647, %v1690
    %v1728 = vand.u32 2147483647, %v1694
    %v1729 = vand.u32 2147483647, %v1696
    %v1730 = vsub.f32 0.0, %v1698
    %v1731 = vsub.f32 0.0, %v1699
    %v1732 = vsub.f32 0.0, %v1700
    %v1733 = vsub.f32 0.0, %v1701
    %v1734 = vsub.f32 0.0, %v1702
    %v1735 = vsub.f32 0.0, %v1703
    %v1736 = vsub.f32 0.0, %v1704
    %v1737 = vsub.f32 0.0, %v1705
    %v1738 = vsub.f32 0.0, %v1706
    %v1739 = vsub.f32 0.0, %v1707
    %v1740 = vsub.f32 0.0, %v1708
    %v1741 = vsub.f32 0.0, %v1709
    %v1742 = vsub.f32 0.0, %v1710
    %v1743 = vsub.f32 0.0, %v1711
    %v1744 = vsub.f32 0.0, %v1712
    %v1745 = vsub.f32 0.0, %v1713
    %v1746 = vsub.f32 0.0, %v1714
    %v1747 = vsub.f32 0.0, %v1715
    %v1748 = vsub.f32 0.0, %v1716
    %v1749 = vsub.f32 0.0, %v1717
    %v1750 = vsub.f32 0.0, %v1718
    %v1751 = vsub.f32 0.0, %v1719
    %v1752 = vsub.f32 0.0, %v1720
    %v1753 = vsub.f32 0.0, %v1721
    %v1754 = vsub.f32 0.0, %v1722
    %v1755 = vsub.f32 0.0, %v1723
    %v1756 = vsub.f32 0.0, %v1724
    %v1757 = vsub.f32 0.0, %v1725
    %v1758 = vsub.f32 0.0, %v1726
    %v1759 = vsub.f32 0.0, %v1727
    %v1760 = vsub.f32 0.0, %v1728
    %v1761 = vsub.f32 0.0, %v1729
    %v1762 = vmul.f32 %v1730, 1.442695
    %v1763 = vpow.pop %v1762
    %v1764 = vmul.f32 %v1731, 1.442695
    %v1765 = vpow.pop %v1764
    %v1766 = vmul.f32 %v1732, 1.442695
    %v1767 = vpow.pop %v1766
    %v1768 = vmul.f32 %v1733, 1.442695
    %v1769 = vpow.pop %v1768
    %v1770 = vmul.f32 %v1734, 1.442695
    %v1771 = vpow.pop %v1770
    %v1772 = vmul.f32 %v1735, 1.442695
    %v1773 = vpow.pop %v1772
    %v1774 = vmul.f32 %v1736, 1.442695
    %v1775 = vpow.pop %v1774
    %v1776 = vmul.f32 %v1737, 1.442695
    %v1777 = vpow.pop %v1776
    %v1778 = vmul.f32 %v1738, 1.442695
    %v1779 = vpow.pop %v1778
    %v1780 = vmul.f32 %v1739, 1.442695
    %v1781 = vpow.pop %v1780
    %v1782 = vmul.f32 %v1740, 1.442695
    %v1783 = vpow.pop %v1782
    %v1784 = vmul.f32 %v1741, 1.442695
    %v1785 = vpow.pop %v1784
    %v1786 = vmul.f32 %v1742, 1.442695
    %v1787 = vpow.pop %v1786
    %v1788 = vmul.f32 %v1743, 1.442695
    %v1789 = vpow.pop %v1788
    %v1790 = vmul.f32 %v1744, 1.442695
    %v1791 = vpow.pop %v1790
    %v1792 = vmul.f32 %v1745, 1.442695
    %v1793 = vpow.pop %v1792
    %v1794 = vmul.f32 %v1746, 1.442695
    %v1795 = vpow.pop %v1794
    %v1796 = vmul.f32 %v1747, 1.442695
    %v1797 = vpow.pop %v1796
    %v1798 = vmul.f32 %v1748, 1.442695
    %v1799 = vpow.pop %v1798
    %v1800 = vmul.f32 %v1749, 1.442695
    %v1801 = vpow.pop %v1800
    %v1802 = vmul.f32 %v1750, 1.442695
    %v1803 = vpow.pop %v1802
    %v1804 = vmul.f32 %v1751, 1.442695
    %v1805 = vpow.pop %v1804
    %v1806 = vmul.f32 %v1752, 1.442695
    %v1807 = vpow.pop %v1806
    %v1808 = vmul.f32 %v1753, 1.442695
    %v1809 = vpow.pop %v1808
    %v1810 = vmul.f32 %v1754, 1.442695
    %v1811 = vpow.pop %v1810
    %v1812 = vmul.f32 %v1755, 1.442695
    %v1813 = vpow.pop %v1812
    %v1814 = vmul.f32 %v1756, 1.442695
    %v1815 = vpow.pop %v1814
    %v1816 = vmul.f32 %v1757, 1.442695
    %v1817 = vpow.pop %v1816
    %v1818 = vmul.f32 %v1758, 1.442695
    %v1819 = vpow.pop %v1818
    %v1820 = vmul.f32 %v1759, 1.442695
    %v1821 = vpow.pop %v1820
    %v1822 = vmul.f32 %v1760, 1.442695
    %v1823 = vpow.pop %v1822
    %v1824 = vmul.f32 %v1761, 1.442695
    %v1825 = vpow.pop %v1824
    %v1826 = vsub.f32 1.0, %v1763
    %v1827 = vsub.f32 1.0, %v1765
    %v1828 = vsub.f32 1.0, %v1767
    %v1829 = vsub.f32 1.0, %v1769
    %v1830 = vsub.f32 1.0, %v1771
    %v1831 = vsub.f32 1.0, %v1773
    %v1832 = vsub.f32 1.0, %v1775
    %v1833 = vsub.f32 1.0, %v1777
    %v1834 = vsub.f32 1.0, %v1779
    %v1835 = vsub.f32 1.0, %v1781
    %v1836 = vsub.f32 1.0, %v1783
    %v1837 = vsub.f32 1.0, %v1785
    %v1838 = vsub.f32 1.0, %v1787
    %v1839 = vsub.f32 1.0, %v1789
    %v1840 = vsub.f32 1.0, %v1791
    %v1841 = vsub.f32 1.0, %v1793
    %v1842 = vsub.f32 1.0, %v1795
    %v1843 = vsub.f32 1.0, %v1797
    %v1844 = vsub.f32 1.0, %v1799
    %v1845 = vsub.f32 1.0, %v1801
    %v1846 = vsub.f32 1.0, %v1803
    %v1847 = vsub.f32 1.0, %v1805
    %v1848 = vsub.f32 1.0, %v1807
    %v1849 = vsub.f32 1.0, %v1809
    %v1850 = vsub.f32 1.0, %v1811
    %v1851 = vsub.f32 1.0, %v1813
    %v1852 = vsub.f32 1.0, %v1815
    %v1853 = vsub.f32 1.0, %v1817
    %v1854 = vsub.f32 1.0, %v1819
    %v1855 = vsub.f32 1.0, %v1821
    %v1856 = vsub.f32 1.0, %v1823
    %v1857 = vsub.f32 1.0, %v1825
    %v1858 = vmul.f32 %v1763, %v1763
    %v1859 = vmul.f32 %v1765, %v1765
    %v1860 = vmul.f32 %v1767, %v1767
    %v1861 = vmul.f32 %v1769, %v1769
    %v1862 = vmul.f32 %v1771, %v1771
    %v1863 = vmul.f32 %v1773, %v1773
    %v1864 = vmul.f32 %v1775, %v1775
    %v1865 = vmul.f32 %v1777, %v1777
    %v1866 = vmul.f32 %v1779, %v1779
    %v1867 = vmul.f32 %v1781, %v1781
    %v1868 = vmul.f32 %v1783, %v1783
    %v1869 = vmul.f32 %v1785, %v1785
    %v1870 = vmul.f32 %v1787, %v1787
    %v1871 = vmul.f32 %v1789, %v1789
    %v1872 = vmul.f32 %v1791, %v1791
    %v1873 = vmul.f32 %v1793, %v1793
    %v1874 = vmul.f32 %v1795, %v1795
    %v1875 = vmul.f32 %v1797, %v1797
    %v1876 = vmul.f32 %v1799, %v1799
    %v1877 = vmul.f32 %v1801, %v1801
    %v1878 = vmul.f32 %v1803, %v1803
    %v1879 = vmul.f32 %v1805, %v1805
    %v1880 = vmul.f32 %v1807, %v1807
    %v1881 = vmul.f32 %v1809, %v1809
    %v1882 = vmul.f32 %v1811, %v1811
    %v1883 = vmul.f32 %v1813, %v1813
    %v1884 = vmul.f32 %v1815, %v1815
    %v1885 = vmul.f32 %v1817, %v1817
    %v1886 = vmul.f32 %v1819, %v1819
    %v1887 = vmul.f32 %v1821, %v1821
    %v1888 = vmul.f32 %v1823, %v1823
    %v1889 = vmul.f32 %v1825, %v1825
    %v1890 = vadd.f32 %v1858, 1.0
    %v1891 = vadd.f32 %v1859, 1.0
    %v1892 = vadd.f32 %v1860, 1.0
    %v1893 = vadd.f32 %v1861, 1.0
    %v1894 = vadd.f32 %v1862, 1.0
    %v1895 = vadd.f32 %v1863, 1.0
    %v1896 = vadd.f32 %v1864, 1.0
    %v1897 = vadd.f32 %v1865, 1.0
    %v1898 = vadd.f32 %v1866, 1.0
    %v1899 = vadd.f32 %v1867, 1.0
    %v1900 = vadd.f32 %v1868, 1.0
    %v1901 = vadd.f32 %v1869, 1.0
    %v1902 = vadd.f32 %v1870, 1.0
    %v1903 = vadd.f32 %v1871, 1.0
    %v1904 = vadd.f32 %v1872, 1.0
    %v1905 = vadd.f32 %v1873, 1.0
    %v1906 = vadd.f32 %v1874, 1.0
    %v1907 = vadd.f32 %v1875, 1.0
    %v1908 = vadd.f32 %v1876, 1.0
    %v1909 = vadd.f32 %v1877, 1.0
    %v1910 = vadd.f32 %v1878, 1.0
    %v1911 = vadd.f32 %v1879, 1.0
    %v1912 = vadd.f32 %v1880, 1.0
    %v1913 = vadd.f32 %v1881, 1.0
    %v1914 = vadd.f32 %v1882, 1.0
    %v1915 = vadd.f32 %v1883, 1.0
    %v1916 = vadd.f32 %v1884, 1.0
    %v1917 = vadd.f32 %v1885, 1.0
    %v1918 = vadd.f32 %v1886, 1.0
    %v1919 = vadd.f32 %v1887, 1.0
    %v1920 = vadd.f32 %v1888, 1.0
    %v1921 = vadd.f32 %v1889, 1.0
    %v1922 = vrcp.pop %v1890
    %v1923 = vrcp.pop %v1891
    %v1924 = vrcp.pop %v1892
    %v1925 = vrcp.pop %v1893
    %v1926 = vrcp.pop %v1894
    %v1927 = vrcp.pop %v1895
    %v1928 = vrcp.pop %v1896
    %v1929 = vrcp.pop %v1897
    %v1930 = vrcp.pop %v1898
    %v1931 = vrcp.pop %v1899
    %v1932 = vrcp.pop %v1900
    %v1933 = vrcp.pop %v1901
    %v1934 = vrcp.pop %v1902
    %v1935 = vrcp.pop %v1903
    %v1936 = vrcp.pop %v1904
    %v1937 = vrcp.pop %v1905
    %v1938 = vrcp.pop %v1906
    %v1939 = vrcp.pop %v1907
    %v1940 = vrcp.pop %v1908
    %v1941 = vrcp.pop %v1909
    %v1942 = vrcp.pop %v1910
    %v1943 = vrcp.pop %v1911
    %v1944 = vrcp.pop %v1912
    %v1945 = vrcp.pop %v1913
    %v1946 = vrcp.pop %v1914
    %v1947 = vrcp.pop %v1915
    %v1948 = vrcp.pop %v1916
    %v1949 = vrcp.pop %v1917
    %v1950 = vrcp.pop %v1918
    %v1951 = vrcp.pop %v1919
    %v1952 = vrcp.pop %v1920
    %v1953 = vrcp.pop %v1921
    %v1954 = vmul.f32 %v1826, %v1922
    %v1955 = vmul.f32 %v1827, %v1923
    %v1956 = vmul.f32 %v1828, %v1924
    %v1957 = vmul.f32 %v1829, %v1925
    %v1958 = vmul.f32 %v1830, %v1926
    %v1959 = vmul.f32 %v1831, %v1927
    %v1960 = vmul.f32 %v1832, %v1928
    %v1961 = vmul.f32 %v1833, %v1929
    %v1962 = vmul.f32 %v1834, %v1930
    %v1963 = vmul.f32 %v1835, %v1931
    %v1964 = vmul.f32 %v1836, %v1932
    %v1965 = vmul.f32 %v1837, %v1933
    %v1966 = vmul.f32 %v1838, %v1934
    %v1967 = vmul.f32 %v1839, %v1935
    %v1968 = vmul.f32 %v1840, %v1936
    %v1969 = vmul.f32 %v1841, %v1937
    %v1970 = vmul.f32 %v1842, %v1938
    %v1971 = vmul.f32 %v1843, %v1939
    %v1972 = vmul.f32 %v1844, %v1940
    %v1973 = vmul.f32 %v1845, %v1941
    %v1974 = vmul.f32 %v1846, %v1942
    %v1975 = vmul.f32 %v1847, %v1943
    %v1976 = vmul.f32 %v1848, %v1944
    %v1977 = vmul.f32 %v1849, %v1945
    %v1978 = vmul.f32 %v1850, %v1946
    %v1979 = vmul.f32 %v1851, %v1947
    %v1980 = vmul.f32 %v1852, %v1948
    %v1981 = vmul.f32 %v1853, %v1949
    %v1982 = vmul.f32 %v1854, %v1950
    %v1983 = vmul.f32 %v1855, %v1951
    %v1984 = vmul.f32 %v1856, %v1952
    %v1985 = vmul.f32 %v1857, %v1953
    %vm1986 = vcmp.ge.f32.partialorder %v1604, 0.0
    %vm1987 = vcmp.ge.f32.partialorder %v1606, 0.0
    %vm1988 = vcmp.ge.f32.partialorder %v1610, 0.0
    %vm1989 = vcmp.ge.f32.partialorder %v1612, 0.0
    %vm1990 = vcmp.ge.f32.partialorder %v1616, 0.0
    %vm1991 = vcmp.ge.f32.partialorder %v1618, 0.0
    %vm1992 = vcmp.ge.f32.partialorder %v1622, 0.0
    %vm1993 = vcmp.ge.f32.partialorder %v1624, 0.0
    %vm1994 = vcmp.ge.f32.partialorder %v1628, 0.0
    %vm1995 = vcmp.ge.f32.partialorder %v1630, 0.0
    %vm1996 = vcmp.ge.f32.partialorder %v1634, 0.0
    %vm1997 = vcmp.ge.f32.partialorder %v1636, 0.0
    %vm1998 = vcmp.ge.f32.partialorder %v1640, 0.0
    %vm1999 = vcmp.ge.f32.partialorder %v1642, 0.0
    %vm2000 = vcmp.ge.f32.partialorder %v1646, 0.0
    %vm2001 = vcmp.ge.f32.partialorder %v1648, 0.0
    %vm2002 = vcmp.ge.f32.partialorder %v1652, 0.0
    %vm2003 = vcmp.ge.f32.partialorder %v1654, 0.0
    %vm2004 = vcmp.ge.f32.partialorder %v1658, 0.0
    %vm2005 = vcmp.ge.f32.partialorder %v1660, 0.0
    %vm2006 = vcmp.ge.f32.partialorder %v1664, 0.0
    %vm2007 = vcmp.ge.f32.partialorder %v1666, 0.0
    %vm2008 = vcmp.ge.f32.partialorder %v1670, 0.0
    %vm2009 = vcmp.ge.f32.partialorder %v1672, 0.0
    %vm2010 = vcmp.ge.f32.partialorder %v1676, 0.0
    %vm2011 = vcmp.ge.f32.partialorder %v1678, 0.0
    %vm2012 = vcmp.ge.f32.partialorder %v1682, 0.0
    %vm2013 = vcmp.ge.f32.partialorder %v1684, 0.0
    %vm2014 = vcmp.ge.f32.partialorder %v1688, 0.0
    %vm2015 = vcmp.ge.f32.partialorder %v1690, 0.0
    %vm2016 = vcmp.ge.f32.partialorder %v1694, 0.0
    %vm2017 = vcmp.ge.f32.partialorder %v1696, 0.0
    %v2018 = vsub.f32 0.0, %v1763
    %v2019 = vsub.f32 0.0, %v1765
    %v2020 = vsub.f32 0.0, %v1767
    %v2021 = vsub.f32 0.0, %v1769
    %v2022 = vsub.f32 0.0, %v1771
    %v2023 = vsub.f32 0.0, %v1773
    %v2024 = vsub.f32 0.0, %v1775
    %v2025 = vsub.f32 0.0, %v1777
    %v2026 = vsub.f32 0.0, %v1779
    %v2027 = vsub.f32 0.0, %v1781
    %v2028 = vsub.f32 0.0, %v1783
    %v2029 = vsub.f32 0.0, %v1785
    %v2030 = vsub.f32 0.0, %v1787
    %v2031 = vsub.f32 0.0, %v1789
    %v2032 = vsub.f32 0.0, %v1791
    %v2033 = vsub.f32 0.0, %v1793
    %v2034 = vsub.f32 0.0, %v1795
    %v2035 = vsub.f32 0.0, %v1797
    %v2036 = vsub.f32 0.0, %v1799
    %v2037 = vsub.f32 0.0, %v1801
    %v2038 = vsub.f32 0.0, %v1803
    %v2039 = vsub.f32 0.0, %v1805
    %v2040 = vsub.f32 0.0, %v1807
    %v2041 = vsub.f32 0.0, %v1809
    %v2042 = vsub.f32 0.0, %v1811
    %v2043 = vsub.f32 0.0, %v1813
    %v2044 = vsub.f32 0.0, %v1815
    %v2045 = vsub.f32 0.0, %v1817
    %v2046 = vsub.f32 0.0, %v1819
    %v2047 = vsub.f32 0.0, %v1821
    %v2048 = vsub.f32 0.0, %v1823
    %v2049 = vsub.f32 0.0, %v1825
    %v2050 = vmul.f32 %v2018, %v1954
    %v2051 = vmul.f32 %v2019, %v1955
    %v2052 = vmul.f32 %v2020, %v1956
    %v2053 = vmul.f32 %v2021, %v1957
    %v2054 = vmul.f32 %v2022, %v1958
    %v2055 = vmul.f32 %v2023, %v1959
    %v2056 = vmul.f32 %v2024, %v1960
    %v2057 = vmul.f32 %v2025, %v1961
    %v2058 = vmul.f32 %v2026, %v1962
    %v2059 = vmul.f32 %v2027, %v1963
    %v2060 = vmul.f32 %v2028, %v1964
    %v2061 = vmul.f32 %v2029, %v1965
    %v2062 = vmul.f32 %v2030, %v1966
    %v2063 = vmul.f32 %v2031, %v1967
    %v2064 = vmul.f32 %v2032, %v1968
    %v2065 = vmul.f32 %v2033, %v1969
    %v2066 = vmul.f32 %v2034, %v1970
    %v2067 = vmul.f32 %v2035, %v1971
    %v2068 = vmul.f32 %v2036, %v1972
    %v2069 = vmul.f32 %v2037, %v1973
    %v2070 = vmul.f32 %v2038, %v1974
    %v2071 = vmul.f32 %v2039, %v1975
    %v2072 = vmul.f32 %v2040, %v1976
    %v2073 = vmul.f32 %v2041, %v1977
    %v2074 = vmul.f32 %v2042, %v1978
    %v2075 = vmul.f32 %v2043, %v1979
    %v2076 = vmul.f32 %v2044, %v1980
    %v2077 = vmul.f32 %v2045, %v1981
    %v2078 = vmul.f32 %v2046, %v1982
    %v2079 = vmul.f32 %v2047, %v1983
    %v2080 = vmul.f32 %v2048, %v1984
    %v2081 = vmul.f32 %v2049, %v1985
    %v2082 = vsel %vm1986, %v1954, %v2050
    %v2083 = vsel %vm1987, %v1955, %v2051
    %v2084 = vsel %vm1988, %v1956, %v2052
    %v2085 = vsel %vm1989, %v1957, %v2053
    %v2086 = vsel %vm1990, %v1958, %v2054
    %v2087 = vsel %vm1991, %v1959, %v2055
    %v2088 = vsel %vm1992, %v1960, %v2056
    %v2089 = vsel %vm1993, %v1961, %v2057
    %v2090 = vsel %vm1994, %v1962, %v2058
    %v2091 = vsel %vm1995, %v1963, %v2059
    %v2092 = vsel %vm1996, %v1964, %v2060
    %v2093 = vsel %vm1997, %v1965, %v2061
    %v2094 = vsel %vm1998, %v1966, %v2062
    %v2095 = vsel %vm1999, %v1967, %v2063
    %v2096 = vsel %vm2000, %v1968, %v2064
    %v2097 = vsel %vm2001, %v1969, %v2065
    %v2098 = vsel %vm2002, %v1970, %v2066
    %v2099 = vsel %vm2003, %v1971, %v2067
    %v2100 = vsel %vm2004, %v1972, %v2068
    %v2101 = vsel %vm2005, %v1973, %v2069
    %v2102 = vsel %vm2006, %v1974, %v2070
    %v2103 = vsel %vm2007, %v1975, %v2071
    %v2104 = vsel %vm2008, %v1976, %v2072
    %v2105 = vsel %vm2009, %v1977, %v2073
    %v2106 = vsel %vm2010, %v1978, %v2074
    %v2107 = vsel %vm2011, %v1979, %v2075
    %v2108 = vsel %vm2012, %v1980, %v2076
    %v2109 = vsel %vm2013, %v1981, %v2077
    %v2110 = vsel %vm2014, %v1982, %v2078
    %v2111 = vsel %vm2015, %v1983, %v2079
    %v2112 = vsel %vm2016, %v1984, %v2080
    %v2113 = vsel %vm2017, %v1985, %v2081
    %v2114 = vadd.f32 %v832, %v2082
    %v2115 = vadd.f32 %v833, %v2083
    %v2116 = vadd.f32 %v834, %v2084
    %v2117 = vadd.f32 %v835, %v2085
    %v2118 = vadd.f32 %v836, %v2086
    %v2119 = vadd.f32 %v837, %v2087
    %v2120 = vadd.f32 %v838, %v2088
    %v2121 = vadd.f32 %v839, %v2089
    %v2122 = vadd.f32 %v840, %v2090
    %v2123 = vadd.f32 %v841, %v2091
    %v2124 = vadd.f32 %v842, %v2092
    %v2125 = vadd.f32 %v843, %v2093
    %v2126 = vadd.f32 %v844, %v2094
    %v2127 = vadd.f32 %v845, %v2095
    %v2128 = vadd.f32 %v846, %v2096
    %v2129 = vadd.f32 %v847, %v2097
    %v2130 = vadd.f32 %v848, %v2098
    %v2131 = vadd.f32 %v849, %v2099
    %v2132 = vadd.f32 %v850, %v2100
    %v2133 = vadd.f32 %v851, %v2101
    %v2134 = vadd.f32 %v852, %v2102
    %v2135 = vadd.f32 %v853, %v2103
    %v2136 = vadd.f32 %v854, %v2104
    %v2137 = vadd.f32 %v855, %v2105
    %v2138 = vadd.f32 %v856, %v2106
    %v2139 = vadd.f32 %v857, %v2107
    %v2140 = vadd.f32 %v858, %v2108
    %v2141 = vadd.f32 %v859, %v2109
    %v2142 = vadd.f32 %v860, %v2110
    %v2143 = vadd.f32 %v861, %v2111
    %v2144 = vadd.f32 %v862, %v2112
    %v2145 = vadd.f32 %v863, %v2113
    %2146 = vst [vmem:[#allocation10] sm:$0xff] %v2114
    %2147 = vst [vmem:[#allocation10 + $0x8] sm:$0xff] %v2115
    %2148 = vst [vmem:[#allocation10 + $0x10] sm:$0xff] %v2116
    %2149 = vst [vmem:[#allocation10 + $0x18] sm:$0xff] %v2117
    %2150 = vst [vmem:[#allocation10 + $0x20] sm:$0xff] %v2118
    %2151 = vst [vmem:[#allocation10 + $0x28] sm:$0xff] %v2119
    %2152 = vst [vmem:[#allocation10 + $0x30] sm:$0xff] %v2120
    %2153 = vst [vmem:[#allocation10 + $0x38] sm:$0xff] %v2121
    %2154 = vst [vmem:[#allocation10 + $0x40] sm:$0xff] %v2122
    %2155 = vst [vmem:[#allocation10 + $0x48] sm:$0xff] %v2123
    %2156 = vst [vmem:[#allocation10 + $0x50] sm:$0xff] %v2124
    %2157 = vst [vmem:[#allocation10 + $0x58] sm:$0xff] %v2125
    %2158 = vst [vmem:[#allocation10 + $0x60] sm:$0xff] %v2126
    %2159 = vst [vmem:[#allocation10 + $0x68] sm:$0xff] %v2127
    %2160 = vst [vmem:[#allocation10 + $0x70] sm:$0xff] %v2128
    %2161 = vst [vmem:[#allocation10 + $0x78] sm:$0xff] %v2129
    %2162 = vst [vmem:[#allocation10 + $0x80] sm:$0xff] %v2130
    %2163 = vst [vmem:[#allocation10 + $0x88] sm:$0xff] %v2131
    %2164 = vst [vmem:[#allocation10 + $0x90] sm:$0xff] %v2132
    %2165 = vst [vmem:[#allocation10 + $0x98] sm:$0xff] %v2133
    %2166 = vst [vmem:[#allocation10 + $0xa0] sm:$0xff] %v2134
    %2167 = vst [vmem:[#allocation10 + $0xa8] sm:$0xff] %v2135
    %2168 = vst [vmem:[#allocation10 + $0xb0] sm:$0xff] %v2136
    %2169 = vst [vmem:[#allocation10 + $0xb8] sm:$0xff] %v2137
    %2170 = vst [vmem:[#allocation10 + $0xc0] sm:$0xff] %v2138
    %2171 = vst [vmem:[#allocation10 + $0xc8] sm:$0xff] %v2139
    %2172 = vst [vmem:[#allocation10 + $0xd0] sm:$0xff] %v2140
    %2173 = vst [vmem:[#allocation10 + $0xd8] sm:$0xff] %v2141
    %2174 = vst [vmem:[#allocation10 + $0xe0] sm:$0xff] %v2142
    %2175 = vst [vmem:[#allocation10 + $0xe8] sm:$0xff] %v2143
    %2176 = vst [vmem:[#allocation10 + $0xf0] sm:$0xff] %v2144
    %2177 = vst [vmem:[#allocation10 + $0xf8] sm:$0xff] %v2145
    // Predicated region
    $region42: #{tpu_custom_call.1} parent=1 // pred_check
      _
    $region43: #{tpu_custom_call.1} parent=1 // pred_check_branch
      %2179 = sbr.rel (0) target = $region45
    $region44: #{tpu_custom_call.1} parent=1 // pred_region
      %s2181 = ssub.s32 4096, 4096
      %2182 = vsyncadd [#allocation4], %s2181
      %s2183 = sshll.u32 [#allocation10], 4
      %s2184 = int_to_ptr.vmem [resolvable:$true] %s2183
      %2189 = dma.vmem_to_hbm [thread:$0]  %s2184, 4096, %s6, [#allocation4], 256, 256, 16
    $region45: #{tpu_custom_call.1} parent=1 // pred_fallthru
      _
    // Predicated region
    $region46: #{tpu_custom_call.1} parent=1 // pred_check
      _
    $region47: #{tpu_custom_call.1} parent=1 // pred_check_branch
      %2191 = sbr.rel (0) target = $region49
    $region48: #{tpu_custom_call.1} parent=1 // pred_region
      %2192 = dma.done [#allocation4], 4096
    $region49: #{tpu_custom_call.1} parent=1 // pred_fallthru
      _
    %2193 = vsyncpa [#allocation3], 1
    %2194 = vsyncpa [#allocation6], 1
    %2195 = vsyncpa [#allocation9], 1
    %2196 = vsyncpa [#allocation4], 1

// kernel: tpu_custom_call.1
$region0: #{tpu_custom_call.1}
  #allocation0 [shape = 'u32[]', space=smem, size = 0x4, offset = 0x4, fixed_abs, tag = 'smem constant byte address 0x4 - core index']
  #allocation1 [shape = 'u32[144,128]{1,0:T(1,128)}', space=vmem, size = 0x12000, scoped, tag = 'internal scratch']
  %s0 = inlined_call_operand.hbm [shape: f32[8,16,32], index: 0, kind: input, shape index: {}]
  %s1 = inlined_call_operand.hbm [shape: f32[3,128,128], index: 1, kind: input, shape index: {}]
  %s2 = inlined_call_operand.hbm [shape: f32[32,1024], index: 2, kind: input, shape index: {}]
  %s3 = inlined_call_operand.hbm [shape: f32[256,256], index: 3, kind: input, shape index: {}]
  %s4 = inlined_call_operand.vmem [shape: f32[1,256], index: 4, kind: input, shape index: {}]
  %s5 = inlined_call_operand.vmem [shape: f32[1,256], index: 5, kind: input, shape index: {}]
  %s6 = inlined_call_operand.hbm [shape: f32[8,16,256], index: 6, kind: output, shape index: {}]
  %s7 = sld [smem:[#allocation0]]
  $region50: #{tpu_custom_call.1} parent=0
    _
  %s9 = ssub.s32 1, %s7
  %s10 = scalar_select 0, %s9, %s7
  $region1: #{tpu_custom_call.1} parent=0
    #allocation2 [shape = 'u8[65536]{0}', space=vmem, size = 0x10000, scoped, tag = 'input window, operand 0, single buffered']
    #allocation3 [shape = 's32[1]{0}', space=sflag, size = 0x4, scoped, tag = 'scoped memory for tpu_custom_call.1']
    #allocation4 [shape = 's32[1]{0}', space=sflag, size = 0x4, scoped, tag = 'scoped memory for tpu_custom_call.1']
    #allocation5 [shape = 'u8[196608]{0}', space=vmem, size = 0x30000, scoped, tag = 'input window, operand 1, single buffered']
    #allocation6 [shape = 's32[1]{0}', space=sflag, size = 0x4, scoped, tag = 'scoped memory for tpu_custom_call.1']
    #allocation7 [shape = 'u8[131072]{0}', space=vmem, size = 0x20000, scoped, tag = 'input window, operand 2, single buffered']
    #allocation8 [shape = 'u8[262144]{0}', space=vmem, size = 0x40000, scoped, tag = 'input window, operand 3, single buffered']
    #allocation9 [shape = 's32[1]{0}', space=sflag, size = 0x4, scoped, tag = 'scoped memory for tpu_custom_call.1']
    #allocation10 [shape = 'u8[131072]{0}', space=vmem, size = 0x20000, scoped, tag = 'output window, operand 0, single buffered']
    %11 = vsyncpa [#allocation3], 0
    %12 = vsyncpa [#allocation6], 0
    %13 = vsyncpa [#allocation9], 0
    %14 = vsyncpa [#allocation4], 0
    // Predicated region
    $region2: #{tpu_custom_call.1} parent=1 // pred_check
      _
    $region3: #{tpu_custom_call.1} parent=1 // pred_check_branch
      %16 = sbr.rel (0) target = $region5
    $region4: #{tpu_custom_call.1} parent=1 // pred_region
      %s18 = ssub.s32 2048, 2048
      %19 = vsyncadd [#allocation3], %s18
      %s20 = sshll.u32 [#allocation2], 4
      %s21 = int_to_ptr.vmem [resolvable:$true] %s20
      %26 = dma.hbm_to_vmem [thread:$0]  %s0, 2048, %s21, [#allocation3], 128, 128, 8
    $region5: #{tpu_custom_call.1} parent=1 // pred_fallthru
      _
    // Predicated region
    $region6: #{tpu_custom_call.1} parent=1 // pred_check
      _
    $region7: #{tpu_custom_call.1} parent=1 // pred_check_branch
      %28 = sbr.rel (0) target = $region9
    $region8: #{tpu_custom_call.1} parent=1 // pred_region
      %s30 = ssub.s32 6144, 6144
      %31 = vsyncadd [#allocation6], %s30
      %s32 = sshll.u32 [#allocation5], 4
      %s33 = int_to_ptr.vmem [resolvable:$true] %s32
      %38 = dma.hbm_to_vmem [thread:$0]  %s1, 6144, %s33, [#allocation6], 128, 128, 8
    $region9: #{tpu_custom_call.1} parent=1 // pred_fallthru
      _
    // Predicated region
    $region10: #{tpu_custom_call.1} parent=1 // pred_check
      _
    $region11: #{tpu_custom_call.1} parent=1 // pred_check_branch
      %40 = sbr.rel (0) target = $region13
    $region12: #{tpu_custom_call.1} parent=1 // pred_region
      %s42 = ssub.s32 4096, 4096
      %43 = vsyncadd [#allocation6], %s42
      %s44 = sshll.u32 [#allocation7], 4
      %s45 = int_to_ptr.vmem [resolvable:$true] %s44
      %50 = dma.hbm_to_vmem [thread:$0]  %s2, 4096, %s45, [#allocation6], 1024, 1024, 64
    $region13: #{tpu_custom_call.1} parent=1 // pred_fallthru
      _
    // Predicated region
    $region14: #{tpu_custom_call.1} parent=1 // pred_check
      _
    $region15: #{tpu_custom_call.1} parent=1 // pred_check_branch
      %52 = sbr.rel (0) target = $region17
    $region16: #{tpu_custom_call.1} parent=1 // pred_region
      %s54 = ssub.s32 8192, 8192
      %55 = vsyncadd [#allocation9], %s54
      %s56 = sshll.u32 [#allocation8], 4
      %s57 = int_to_ptr.vmem [resolvable:$true] %s56
      %62 = dma.hbm_to_vmem [thread:$0]  %s3, 8192, %s57, [#allocation9], 256, 256, 16
    $region17: #{tpu_custom_call.1} parent=1 // pred_fallthru
      _
    // Predicated region
    $region18: #{tpu_custom_call.1} parent=1 // pred_check
      _
    $region19: #{tpu_custom_call.1} parent=1 // pred_check_branch
      %64 = sbr.rel (0) target = $region21
    $region20: #{tpu_custom_call.1} parent=1 // pred_region
      _
    $region21: #{tpu_custom_call.1} parent=1 // pred_fallthru
      _
    // Predicated region
    $region22: #{tpu_custom_call.1} parent=1 // pred_check
      _
    $region23: #{tpu_custom_call.1} parent=1 // pred_check_branch
      %66 = sbr.rel (0) target = $region25
    $region24: #{tpu_custom_call.1} parent=1 // pred_region
      _
    $region25: #{tpu_custom_call.1} parent=1 // pred_fallthru
      _
    // Predicated region
    $region26: #{tpu_custom_call.1} parent=1 // pred_check
      _
    $region27: #{tpu_custom_call.1} parent=1 // pred_check_branch
      %68 = sbr.rel (0) target = $region29
    $region28: #{tpu_custom_call.1} parent=1 // pred_region
      %69 = dma.done [#allocation3], 2048
    $region29: #{tpu_custom_call.1} parent=1 // pred_fallthru
      _
    // Predicated region
    $region30: #{tpu_custom_call.1} parent=1 // pred_check
      _
    $region31: #{tpu_custom_call.1} parent=1 // pred_check_branch
      %71 = sbr.rel (0) target = $region33
    $region32: #{tpu_custom_call.1} parent=1 // pred_region
      %72 = dma.done [#allocation6], 6144
    $region33: #{tpu_custom_call.1} parent=1 // pred_fallthru
      _
    // Predicated region
    $region34: #{tpu_custom_call.1} parent=1 // pred_check
      _
    $region35: #{tpu_custom_call.1} parent=1 // pred_check_branch
      %74 = sbr.rel (0) target = $region37
    $region36: #{tpu_custom_call.1} parent=1 // pred_region
      %75 = dma.done [#allocation6], 4096
    $region37: #{tpu_custom_call.1} parent=1 // pred_fallthru
      _
    // Predicated region
    $region38: #{tpu_custom_call.1} parent=1 // pred_check
      _
    $region39: #{tpu_custom_call.1} parent=1 // pred_check_branch
      %77 = sbr.rel (0) target = $region41
    $region40: #{tpu_custom_call.1} parent=1 // pred_region
      %78 = dma.done [#allocation9], 8192
    $region41: #{tpu_custom_call.1} parent=1 // pred_fallthru
      _
    %v79 = vld [vmem:[#allocation2] sm:$0xff]
    %v80 = vld [vmem:[#allocation2 + $0x8] sm:$0xff]
    %v81 = vld [vmem:[#allocation2 + $0x10] sm:$0xff]
    %v82 = vld [vmem:[#allocation2 + $0x18] sm:$0xff]
    %v83 = vld [vmem:[#allocation2 + $0x20] sm:$0xff]
    %v84 = vld [vmem:[#allocation2 + $0x28] sm:$0xff]
    %v85 = vld [vmem:[#allocation2 + $0x30] sm:$0xff]
    %v86 = vld [vmem:[#allocation2 + $0x38] sm:$0xff]
    %v87 = vld [vmem:[#allocation2 + $0x40] sm:$0xff]
    %v88 = vld [vmem:[#allocation2 + $0x48] sm:$0xff]
    %v89 = vld [vmem:[#allocation2 + $0x50] sm:$0xff]
    %v90 = vld [vmem:[#allocation2 + $0x58] sm:$0xff]
    %v91 = vld [vmem:[#allocation2 + $0x60] sm:$0xff]
    %v92 = vld [vmem:[#allocation2 + $0x68] sm:$0xff]
    %v93 = vld [vmem:[#allocation2 + $0x70] sm:$0xff]
    %v94 = vld [vmem:[#allocation2 + $0x78] sm:$0xff]
    %v95 = vld [vmem:[#allocation7] sm:$0xff]
    %v96 = vld [vmem:[#allocation7 + $0x8] sm:$0xff]
    %v97 = vld [vmem:[#allocation7 + $0x10] sm:$0xff]
    %v98 = vld [vmem:[#allocation7 + $0x18] sm:$0xff]
    %v99 = vld [vmem:[#allocation7 + $0x20] sm:$0xff]
    %v100 = vld [vmem:[#allocation7 + $0x28] sm:$0xff]
    %v101 = vld [vmem:[#allocation7 + $0x30] sm:$0xff]
    %v102 = vld [vmem:[#allocation7 + $0x38] sm:$0xff]
    %v103 = vld [vmem:[#allocation7 + $0x40] sm:$0xff]
    %v104 = vld [vmem:[#allocation7 + $0x48] sm:$0xff]
    %v105 = vld [vmem:[#allocation7 + $0x50] sm:$0xff]
    %v106 = vld [vmem:[#allocation7 + $0x58] sm:$0xff]
    %v107 = vld [vmem:[#allocation7 + $0x60] sm:$0xff]
    %v108 = vld [vmem:[#allocation7 + $0x68] sm:$0xff]
    %v109 = vld [vmem:[#allocation7 + $0x70] sm:$0xff]
    %v110 = vld [vmem:[#allocation7 + $0x78] sm:$0xff]
    %v111 = vld [vmem:[#allocation7 + $0x80] sm:$0xff]
    %v112 = vld [vmem:[#allocation7 + $0x88] sm:$0xff]
    %v113 = vld [vmem:[#allocation7 + $0x90] sm:$0xff]
    %v114 = vld [vmem:[#allocation7 + $0x98] sm:$0xff]
    %v115 = vld [vmem:[#allocation7 + $0xa0] sm:$0xff]
    %v116 = vld [vmem:[#allocation7 + $0xa8] sm:$0xff]
    %v117 = vld [vmem:[#allocation7 + $0xb0] sm:$0xff]
    %v118 = vld [vmem:[#allocation7 + $0xb8] sm:$0xff]
    %v119 = vld [vmem:[#allocation7 + $0xc0] sm:$0xff]
    %v120 = vld [vmem:[#allocation7 + $0xc8] sm:$0xff]
    %v121 = vld [vmem:[#allocation7 + $0xd0] sm:$0xff]
    %v122 = vld [vmem:[#allocation7 + $0xd8] sm:$0xff]
    %v123 = vld [vmem:[#allocation7 + $0xe0] sm:$0xff]
    %v124 = vld [vmem:[#allocation7 + $0xe8] sm:$0xff]
    %v125 = vld [vmem:[#allocation7 + $0xf0] sm:$0xff]
    %v126 = vld [vmem:[#allocation7 + $0xf8] sm:$0xff]
    %vm127 = vcmask 261120
    %v129 = vsel %vm127, %v79, 0
    %v132 = vsel %vm127, %v80, 0
    %v135 = vsel %vm127, %v81, 0
    %v138 = vsel %vm127, %v82, 0
    %v141 = vsel %vm127, %v83, 0
    %v144 = vsel %vm127, %v84, 0
    %v147 = vsel %vm127, %v85, 0
    %v150 = vsel %vm127, %v86, 0
    %v153 = vsel %vm127, %v87, 0
    %v156 = vsel %vm127, %v88, 0
    %v159 = vsel %vm127, %v89, 0
    %v162 = vsel %vm127, %v90, 0
    %v165 = vsel %vm127, %v91, 0
    %v168 = vsel %vm127, %v92, 0
    %v171 = vsel %vm127, %v93, 0
    %v174 = vsel %vm127, %v94, 0
    %176 = vmatprep.subr.mxu0 0.0
    %177 = vmatpush1.msra.mxu0 0.0
    %178 = vmatprep.subr.mxu0 0.0
    %179 = vmatpush1.msra.mxu0 0.0
    %180 = vmatprep.subr.mxu0 0.0
    %181 = vmatpush1.msra.mxu0 0.0
    %182 = vmatprep.subr.mxu0 0.0
    %183 = vmatpush1.msra.mxu0 0.0
    %184 = vmatprep.subr.mxu0 0.0
    %185 = vmatpush1.msra.mxu0 0.0
    %186 = vmatprep.subr.mxu0 0.0
    %187 = vmatpush1.msra.mxu0 0.0
    %188 = vmatprep.subr.mxu0 0.0
    %189 = vmatpush1.msra.mxu0 0.0
    %190 = vmatprep.subr.mxu0 0.0
    %191 = vmatpush1.msra.mxu0 0.0
    %192 = vmatprep.subr.mxu0 0.0
    %193 = vmatpush1.msra.mxu0 0.0
    %194 = vmatprep.subr.mxu0 0.0
    %195 = vmatpush1.msra.mxu0 0.0
    %196 = vmatprep.subr.mxu0 0.0
    %197 = vmatpush1.msra.mxu0 0.0
    %198 = vmatprep.subr.mxu0 0.0
    %199 = vmatpush1.msra.mxu0 0.0
    %200 = vmatprep.subr.mxu0 %v120
    %201 = vmatpush1.msra.mxu0 %v119
    %202 = vmatprep.subr.mxu0 %v112
    %203 = vmatpush1.msra.mxu0 %v111
    %204 = vmatprep.subr.mxu0 %v104
    %205 = vmatpush1.msra.mxu0 %v103
    %206 = vmatprep.subr.mxu0 %v96
    %207 = vmatpush1.msra.mxu0 %v95
    %208 = vmatprep.subr.mxu0 0.0
    %209 = vmatpush2.msra.mxu0 0.0
    %210 = vmatprep.subr.mxu0 0.0
    %211 = vmatpush2.msra.mxu0 0.0
    %212 = vmatprep.subr.mxu0 0.0
    %213 = vmatpush2.msra.mxu0 0.0
    %214 = vmatprep.subr.mxu0 0.0
    %215 = vmatpush2.msra.mxu0 0.0
    %216 = vmatprep.subr.mxu0 0.0
    %217 = vmatpush2.msra.mxu0 0.0
    %218 = vmatprep.subr.mxu0 0.0
    %219 = vmatpush2.msra.mxu0 0.0
    %220 = vmatprep.subr.mxu0 0.0
    %221 = vmatpush2.msra.mxu0 0.0
    %222 = vmatprep.subr.mxu0 0.0
    %223 = vmatpush2.msra.mxu0 0.0
    %224 = vmatprep.subr.mxu0 0.0
    %225 = vmatpush2.msra.mxu0 0.0
    %226 = vmatprep.subr.mxu0 0.0
    %227 = vmatpush2.msra.mxu0 0.0
    %228 = vmatprep.subr.mxu0 0.0
    %229 = vmatpush2.msra.mxu0 0.0
    %230 = vmatprep.subr.mxu0 0.0
    %231 = vmatpush2.msra.mxu0 0.0
    %232 = vmatprep.subr.mxu0 0.0
    %233 = vmatpush2.msra.mxu0 0.0
    %234 = vmatprep.subr.mxu0 0.0
    %235 = vmatpush2.msra.mxu0 0.0
    %236 = vmatprep.subr.mxu0 0.0
    %237 = vmatpush2.msra.mxu0 0.0
    %238 = vmatprep.subr.mxu0 0.0
    %239 = vmatpush2.msra.mxu0 0.0
    %240 = vmatprep.mubr.f32.mxu0 0.0
    %241 = vmatmul.mubr.f32.gmra.mxu0 %v129
    %v242 = vpop.f32.mrf.mxu0
    %v243 = vadd.f32 0.0, %v242
    %v244 = vpop.f32.mrf.mxu0
    %v245 = vadd.f32 0.0, %v244
    %246 = vmatprep.mubr.f32.mxu0 0.0
    %247 = vmatmul.mubr.f32.gmra.mxu0 %v132
    %v248 = vpop.f32.mrf.mxu0
    %v249 = vadd.f32 0.0, %v248
    %v250 = vpop.f32.mrf.mxu0
    %v251 = vadd.f32 0.0, %v250
    %252 = vmatprep.mubr.f32.mxu0 0.0
    %253 = vmatmul.mubr.f32.gmra.mxu0 %v135
    %v254 = vpop.f32.mrf.mxu0
    %v255 = vadd.f32 0.0, %v254
    %v256 = vpop.f32.mrf.mxu0
    %v257 = vadd.f32 0.0, %v256
    %258 = vmatprep.mubr.f32.mxu0 0.0
    %259 = vmatmul.mubr.f32.gmra.mxu0 %v138
    %v260 = vpop.f32.mrf.mxu0
    %v261 = vadd.f32 0.0, %v260
    %v262 = vpop.f32.mrf.mxu0
    %v263 = vadd.f32 0.0, %v262
    %264 = vmatprep.mubr.f32.mxu0 0.0
    %265 = vmatmul.mubr.f32.gmra.mxu0 %v141
    %v266 = vpop.f32.mrf.mxu0
    %v267 = vadd.f32 0.0, %v266
    %v268 = vpop.f32.mrf.mxu0
    %v269 = vadd.f32 0.0, %v268
    %270 = vmatprep.mubr.f32.mxu0 0.0
    %271 = vmatmul.mubr.f32.gmra.mxu0 %v144
    %v272 = vpop.f32.mrf.mxu0
    %v273 = vadd.f32 0.0, %v272
    %v274 = vpop.f32.mrf.mxu0
    %v275 = vadd.f32 0.0, %v274
    %276 = vmatprep.mubr.f32.mxu0 0.0
    %277 = vmatmul.mubr.f32.gmra.mxu0 %v147
    %v278 = vpop.f32.mrf.mxu0
    %v279 = vadd.f32 0.0, %v278
    %v280 = vpop.f32.mrf.mxu0
    %v281 = vadd.f32 0.0, %v280
    %282 = vmatprep.mubr.f32.mxu0 0.0
    %283 = vmatmul.mubr.f32.gmra.mxu0 %v150
    %v284 = vpop.f32.mrf.mxu0
    %v285 = vadd.f32 0.0, %v284
    %v286 = vpop.f32.mrf.mxu0
    %v287 = vadd.f32 0.0, %v286
    %288 = vmatprep.mubr.f32.mxu0 0.0
    %289 = vmatmul.mubr.f32.gmra.mxu0 %v153
    %v290 = vpop.f32.mrf.mxu0
    %v291 = vadd.f32 0.0, %v290
    %v292 = vpop.f32.mrf.mxu0
    %v293 = vadd.f32 0.0, %v292
    %294 = vmatprep.mubr.f32.mxu0 0.0
    %295 = vmatmul.mubr.f32.gmra.mxu0 %v156
    %v296 = vpop.f32.mrf.mxu0
    %v297 = vadd.f32 0.0, %v296
    %v298 = vpop.f32.mrf.mxu0
    %v299 = vadd.f32 0.0, %v298
    %300 = vmatprep.mubr.f32.mxu0 0.0
    %301 = vmatmul.mubr.f32.gmra.mxu0 %v159
    %v302 = vpop.f32.mrf.mxu0
    %v303 = vadd.f32 0.0, %v302
    %v304 = vpop.f32.mrf.mxu0
    %v305 = vadd.f32 0.0, %v304
    %306 = vmatprep.mubr.f32.mxu0 0.0
    %307 = vmatmul.mubr.f32.gmra.mxu0 %v162
    %v308 = vpop.f32.mrf.mxu0
    %v309 = vadd.f32 0.0, %v308
    %v310 = vpop.f32.mrf.mxu0
    %v311 = vadd.f32 0.0, %v310
    %312 = vmatprep.mubr.f32.mxu0 0.0
    %313 = vmatmul.mubr.f32.gmra.mxu0 %v165
    %v314 = vpop.f32.mrf.mxu0
    %v315 = vadd.f32 0.0, %v314
    %v316 = vpop.f32.mrf.mxu0
    %v317 = vadd.f32 0.0, %v316
    %318 = vmatprep.mubr.f32.mxu0 0.0
    %319 = vmatmul.mubr.f32.gmra.mxu0 %v168
    %v320 = vpop.f32.mrf.mxu0
    %v321 = vadd.f32 0.0, %v320
    %v322 = vpop.f32.mrf.mxu0
    %v323 = vadd.f32 0.0, %v322
    %324 = vmatprep.mubr.f32.mxu0 0.0
    %325 = vmatmul.mubr.f32.gmra.mxu0 %v171
    %v326 = vpop.f32.mrf.mxu0
    %v327 = vadd.f32 0.0, %v326
    %v328 = vpop.f32.mrf.mxu0
    %v329 = vadd.f32 0.0, %v328
    %330 = vmatprep.mubr.f32.mxu0 0.0
    %331 = vmatmul.mubr.f32.gmra.mxu0 %v174
    %v332 = vpop.f32.mrf.mxu0
    %v333 = vadd.f32 0.0, %v332
    %v334 = vpop.f32.mrf.mxu0
    %v335 = vadd.f32 0.0, %v334
    %336 = vdwg.mxu0
    %337 = vmatprep.subr.mxu0 0.0
    %338 = vmatpush1.msra.mxu0 0.0
    %339 = vmatprep.subr.mxu0 0.0
    %340 = vmatpush1.msra.mxu0 0.0
    %341 = vmatprep.subr.mxu0 0.0
    %342 = vmatpush1.msra.mxu0 0.0
    %343 = vmatprep.subr.mxu0 0.0
    %344 = vmatpush1.msra.mxu0 0.0
    %345 = vmatprep.subr.mxu0 0.0
    %346 = vmatpush1.msra.mxu0 0.0
    %347 = vmatprep.subr.mxu0 0.0
    %348 = vmatpush1.msra.mxu0 0.0
    %349 = vmatprep.subr.mxu0 0.0
    %350 = vmatpush1.msra.mxu0 0.0
    %351 = vmatprep.subr.mxu0 0.0
    %352 = vmatpush1.msra.mxu0 0.0
    %353 = vmatprep.subr.mxu0 0.0
    %354 = vmatpush1.msra.mxu0 0.0
    %355 = vmatprep.subr.mxu0 0.0
    %356 = vmatpush1.msra.mxu0 0.0
    %357 = vmatprep.subr.mxu0 0.0
    %358 = vmatpush1.msra.mxu0 0.0
    %359 = vmatprep.subr.mxu0 0.0
    %360 = vmatpush1.msra.mxu0 0.0
    %361 = vmatprep.subr.mxu0 %v122
    %362 = vmatpush1.msra.mxu0 %v121
    %363 = vmatprep.subr.mxu0 %v114
    %364 = vmatpush1.msra.mxu0 %v113
    %365 = vmatprep.subr.mxu0 %v106
    %366 = vmatpush1.msra.mxu0 %v105
    %367 = vmatprep.subr.mxu0 %v98
    %368 = vmatpush1.msra.mxu0 %v97
    %369 = vmatprep.subr.mxu0 0.0
    %370 = vmatpush2.msra.mxu0 0.0
    %371 = vmatprep.subr.mxu0 0.0
    %372 = vmatpush2.msra.mxu0 0.0
    %373 = vmatprep.subr.mxu0 0.0
    %374 = vmatpush2.msra.mxu0 0.0
    %375 = vmatprep.subr.mxu0 0.0
    %376 = vmatpush2.msra.mxu0 0.0
    %377 = vmatprep.subr.mxu0 0.0
    %378 = vmatpush2.msra.mxu0 0.0
    %379 = vmatprep.subr.mxu0 0.0
    %380 = vmatpush2.msra.mxu0 0.0
    %381 = vmatprep.subr.mxu0 0.0
    %382 = vmatpush2.msra.mxu0 0.0
    %383 = vmatprep.subr.mxu0 0.0
    %384 = vmatpush2.msra.mxu0 0.0
    %385 = vmatprep.subr.mxu0 0.0
    %386 = vmatpush2.msra.mxu0 0.0
    %387 = vmatprep.subr.mxu0 0.0
    %388 = vmatpush2.msra.mxu0 0.0
    %389 = vmatprep.subr.mxu0 0.0
    %390 = vmatpush2.msra.mxu0 0.0
    %391 = vmatprep.subr.mxu0 0.0
    %392 = vmatpush2.msra.mxu0 0.0
    %393 = vmatprep.subr.mxu0 0.0
    %394 = vmatpush2.msra.mxu0 0.0
    %395 = vmatprep.subr.mxu0 0.0
    %396 = vmatpush2.msra.mxu0 0.0
    %397 = vmatprep.subr.mxu0 0.0
    %398 = vmatpush2.msra.mxu0 0.0
    %399 = vmatprep.subr.mxu0 0.0
    %400 = vmatpush2.msra.mxu0 0.0
    %401 = vmatprep.mubr.f32.mxu0 0.0
    %402 = vmatmul.mubr.f32.gmra.mxu0 %v129
    %v403 = vpop.f32.mrf.mxu0
    %v404 = vadd.f32 0.0, %v403
    %v405 = vpop.f32.mrf.mxu0
    %v406 = vadd.f32 0.0, %v405
    %407 = vmatprep.mubr.f32.mxu0 0.0
    %408 = vmatmul.mubr.f32.gmra.mxu0 %v132
    %v409 = vpop.f32.mrf.mxu0
    %v410 = vadd.f32 0.0, %v409
    %v411 = vpop.f32.mrf.mxu0
    %v412 = vadd.f32 0.0, %v411
    %413 = vmatprep.mubr.f32.mxu0 0.0
    %414 = vmatmul.mubr.f32.gmra.mxu0 %v135
    %v415 = vpop.f32.mrf.mxu0
    %v416 = vadd.f32 0.0, %v415
    %v417 = vpop.f32.mrf.mxu0
    %v418 = vadd.f32 0.0, %v417
    %419 = vmatprep.mubr.f32.mxu0 0.0
    %420 = vmatmul.mubr.f32.gmra.mxu0 %v138
    %v421 = vpop.f32.mrf.mxu0
    %v422 = vadd.f32 0.0, %v421
    %v423 = vpop.f32.mrf.mxu0
    %v424 = vadd.f32 0.0, %v423
    %425 = vmatprep.mubr.f32.mxu0 0.0
    %426 = vmatmul.mubr.f32.gmra.mxu0 %v141
    %v427 = vpop.f32.mrf.mxu0
    %v428 = vadd.f32 0.0, %v427
    %v429 = vpop.f32.mrf.mxu0
    %v430 = vadd.f32 0.0, %v429
    %431 = vmatprep.mubr.f32.mxu0 0.0
    %432 = vmatmul.mubr.f32.gmra.mxu0 %v144
    %v433 = vpop.f32.mrf.mxu0
    %v434 = vadd.f32 0.0, %v433
    %v435 = vpop.f32.mrf.mxu0
    %v436 = vadd.f32 0.0, %v435
    %437 = vmatprep.mubr.f32.mxu0 0.0
    %438 = vmatmul.mubr.f32.gmra.mxu0 %v147
    %v439 = vpop.f32.mrf.mxu0
    %v440 = vadd.f32 0.0, %v439
    %v441 = vpop.f32.mrf.mxu0
    %v442 = vadd.f32 0.0, %v441
    %443 = vmatprep.mubr.f32.mxu0 0.0
    %444 = vmatmul.mubr.f32.gmra.mxu0 %v150
    %v445 = vpop.f32.mrf.mxu0
    %v446 = vadd.f32 0.0, %v445
    %v447 = vpop.f32.mrf.mxu0
    %v448 = vadd.f32 0.0, %v447
    %449 = vmatprep.mubr.f32.mxu0 0.0
    %450 = vmatmul.mubr.f32.gmra.mxu0 %v153
    %v451 = vpop.f32.mrf.mxu0
    %v452 = vadd.f32 0.0, %v451
    %v453 = vpop.f32.mrf.mxu0
    %v454 = vadd.f32 0.0, %v453
    %455 = vmatprep.mubr.f32.mxu0 0.0
    %456 = vmatmul.mubr.f32.gmra.mxu0 %v156
    %v457 = vpop.f32.mrf.mxu0
    %v458 = vadd.f32 0.0, %v457
    %v459 = vpop.f32.mrf.mxu0
    %v460 = vadd.f32 0.0, %v459
    %461 = vmatprep.mubr.f32.mxu0 0.0
    %462 = vmatmul.mubr.f32.gmra.mxu0 %v159
    %v463 = vpop.f32.mrf.mxu0
    %v464 = vadd.f32 0.0, %v463
    %v465 = vpop.f32.mrf.mxu0
    %v466 = vadd.f32 0.0, %v465
    %467 = vmatprep.mubr.f32.mxu0 0.0
    %468 = vmatmul.mubr.f32.gmra.mxu0 %v162
    %v469 = vpop.f32.mrf.mxu0
    %v470 = vadd.f32 0.0, %v469
    %v471 = vpop.f32.mrf.mxu0
    %v472 = vadd.f32 0.0, %v471
    %473 = vmatprep.mubr.f32.mxu0 0.0
    %474 = vmatmul.mubr.f32.gmra.mxu0 %v165
    %v475 = vpop.f32.mrf.mxu0
    %v476 = vadd.f32 0.0, %v475
    %v477 = vpop.f32.mrf.mxu0
    %v478 = vadd.f32 0.0, %v477
    %479 = vmatprep.mubr.f32.mxu0 0.0
    %480 = vmatmul.mubr.f32.gmra.mxu0 %v168
    %v481 = vpop.f32.mrf.mxu0
    %v482 = vadd.f32 0.0, %v481
    %v483 = vpop.f32.mrf.mxu0
    %v484 = vadd.f32 0.0, %v483
    %485 = vmatprep.mubr.f32.mxu0 0.0
    %486 = vmatmul.mubr.f32.gmra.mxu0 %v171
    %v487 = vpop.f32.mrf.mxu0
    %v488 = vadd.f32 0.0, %v487
    %v489 = vpop.f32.mrf.mxu0
    %v490 = vadd.f32 0.0, %v489
    %491 = vmatprep.mubr.f32.mxu0 0.0
    %492 = vmatmul.mubr.f32.gmra.mxu0 %v174
    %v493 = vpop.f32.mrf.mxu0
    %v494 = vadd.f32 0.0, %v493
    %v495 = vpop.f32.mrf.mxu0
    %v496 = vadd.f32 0.0, %v495
    %497 = vdwg.mxu0
    %498 = vmatprep.subr.mxu0 0.0
    %499 = vmatpush1.msra.mxu0 0.0
    %500 = vmatprep.subr.mxu0 0.0
    %501 = vmatpush1.msra.mxu0 0.0
    %502 = vmatprep.subr.mxu0 0.0
    %503 = vmatpush1.msra.mxu0 0.0
    %504 = vmatprep.subr.mxu0 0.0
    %505 = vmatpush1.msra.mxu0 0.0
    %506 = vmatprep.subr.mxu0 0.0
    %507 = vmatpush1.msra.mxu0 0.0
    %508 = vmatprep.subr.mxu0 0.0
    %509 = vmatpush1.msra.mxu0 0.0
    %510 = vmatprep.subr.mxu0 0.0
    %511 = vmatpush1.msra.mxu0 0.0
    %512 = vmatprep.subr.mxu0 0.0
    %513 = vmatpush1.msra.mxu0 0.0
    %514 = vmatprep.subr.mxu0 0.0
    %515 = vmatpush1.msra.mxu0 0.0
    %516 = vmatprep.subr.mxu0 0.0
    %517 = vmatpush1.msra.mxu0 0.0
    %518 = vmatprep.subr.mxu0 0.0
    %519 = vmatpush1.msra.mxu0 0.0
    %520 = vmatprep.subr.mxu0 0.0
    %521 = vmatpush1.msra.mxu0 0.0
    %522 = vmatprep.subr.mxu0 %v124
    %523 = vmatpush1.msra.mxu0 %v123
    %524 = vmatprep.subr.mxu0 %v116
    %525 = vmatpush1.msra.mxu0 %v115
    %526 = vmatprep.subr.mxu0 %v108
    %527 = vmatpush1.msra.mxu0 %v107
    %528 = vmatprep.subr.mxu0 %v100
    %529 = vmatpush1.msra.mxu0 %v99
    %530 = vmatprep.subr.mxu0 0.0
    %531 = vmatpush2.msra.mxu0 0.0
    %532 = vmatprep.subr.mxu0 0.0
    %533 = vmatpush2.msra.mxu0 0.0
    %534 = vmatprep.subr.mxu0 0.0
    %535 = vmatpush2.msra.mxu0 0.0
    %536 = vmatprep.subr.mxu0 0.0
    %537 = vmatpush2.msra.mxu0 0.0
    %538 = vmatprep.subr.mxu0 0.0
    %539 = vmatpush2.msra.mxu0 0.0
    %540 = vmatprep.subr.mxu0 0.0
    %541 = vmatpush2.msra.mxu0 0.0
    %542 = vmatprep.subr.mxu0 0.0
    %543 = vmatpush2.msra.mxu0 0.0
    %544 = vmatprep.subr.mxu0 0.0
    %545 = vmatpush2.msra.mxu0 0.0
    %546 = vmatprep.subr.mxu0 0.0
    %547 = vmatpush2.msra.mxu0 0.0
    %548 = vmatprep.subr.mxu0 0.0
    %549 = vmatpush2.msra.mxu0 0.0
    %550 = vmatprep.subr.mxu0 0.0
    %551 = vmatpush2.msra.mxu0 0.0
    %552 = vmatprep.subr.mxu0 0.0
    %553 = vmatpush2.msra.mxu0 0.0
    %554 = vmatprep.subr.mxu0 0.0
    %555 = vmatpush2.msra.mxu0 0.0
    %556 = vmatprep.subr.mxu0 0.0
    %557 = vmatpush2.msra.mxu0 0.0
    %558 = vmatprep.subr.mxu0 0.0
    %559 = vmatpush2.msra.mxu0 0.0
    %560 = vmatprep.subr.mxu0 0.0
    %561 = vmatpush2.msra.mxu0 0.0
    %562 = vmatprep.mubr.f32.mxu0 0.0
    %563 = vmatmul.mubr.f32.gmra.mxu0 %v129
    %v564 = vpop.f32.mrf.mxu0
    %v565 = vadd.f32 0.0, %v564
    %v566 = vpop.f32.mrf.mxu0
    %v567 = vadd.f32 0.0, %v566
    %568 = vmatprep.mubr.f32.mxu0 0.0
    %569 = vmatmul.mubr.f32.gmra.mxu0 %v132
    %v570 = vpop.f32.mrf.mxu0
    %v571 = vadd.f32 0.0, %v570
    %v572 = vpop.f32.mrf.mxu0
    %v573 = vadd.f32 0.0, %v572
    %574 = vmatprep.mubr.f32.mxu0 0.0
    %575 = vmatmul.mubr.f32.gmra.mxu0 %v135
    %v576 = vpop.f32.mrf.mxu0
    %v577 = vadd.f32 0.0, %v576
    %v578 = vpop.f32.mrf.mxu0
    %v579 = vadd.f32 0.0, %v578
    %580 = vmatprep.mubr.f32.mxu0 0.0
    %581 = vmatmul.mubr.f32.gmra.mxu0 %v138
    %v582 = vpop.f32.mrf.mxu0
    %v583 = vadd.f32 0.0, %v582
    %v584 = vpop.f32.mrf.mxu0
    %v585 = vadd.f32 0.0, %v584
    %586 = vmatprep.mubr.f32.mxu0 0.0
    %587 = vmatmul.mubr.f32.gmra.mxu0 %v141
    %v588 = vpop.f32.mrf.mxu0
    %v589 = vadd.f32 0.0, %v588
    %v590 = vpop.f32.mrf.mxu0
    %v591 = vadd.f32 0.0, %v590
    %592 = vmatprep.mubr.f32.mxu0 0.0
    %593 = vmatmul.mubr.f32.gmra.mxu0 %v144
    %v594 = vpop.f32.mrf.mxu0
    %v595 = vadd.f32 0.0, %v594
    %v596 = vpop.f32.mrf.mxu0
    %v597 = vadd.f32 0.0, %v596
    %598 = vmatprep.mubr.f32.mxu0 0.0
    %599 = vmatmul.mubr.f32.gmra.mxu0 %v147
    %v600 = vpop.f32.mrf.mxu0
    %v601 = vadd.f32 0.0, %v600
    %v602 = vpop.f32.mrf.mxu0
    %v603 = vadd.f32 0.0, %v602
    %604 = vmatprep.mubr.f32.mxu0 0.0
    %605 = vmatmul.mubr.f32.gmra.mxu0 %v150
    %v606 = vpop.f32.mrf.mxu0
    %v607 = vadd.f32 0.0, %v606
    %v608 = vpop.f32.mrf.mxu0
    %v609 = vadd.f32 0.0, %v608
    %610 = vmatprep.mubr.f32.mxu0 0.0
    %611 = vmatmul.mubr.f32.gmra.mxu0 %v153
    %v612 = vpop.f32.mrf.mxu0
    %v613 = vadd.f32 0.0, %v612
    %v614 = vpop.f32.mrf.mxu0
    %v615 = vadd.f32 0.0, %v614
    %616 = vmatprep.mubr.f32.mxu0 0.0
    %617 = vmatmul.mubr.f32.gmra.mxu0 %v156
    %v618 = vpop.f32.mrf.mxu0
    %v619 = vadd.f32 0.0, %v618
    %v620 = vpop.f32.mrf.mxu0
    %v621 = vadd.f32 0.0, %v620
    %622 = vmatprep.mubr.f32.mxu0 0.0
    %623 = vmatmul.mubr.f32.gmra.mxu0 %v159
    %v624 = vpop.f32.mrf.mxu0
    %v625 = vadd.f32 0.0, %v624
    %v626 = vpop.f32.mrf.mxu0
    %v627 = vadd.f32 0.0, %v626
    %628 = vmatprep.mubr.f32.mxu0 0.0
    %629 = vmatmul.mubr.f32.gmra.mxu0 %v162
    %v630 = vpop.f32.mrf.mxu0
    %v631 = vadd.f32 0.0, %v630
    %v632 = vpop.f32.mrf.mxu0
    %v633 = vadd.f32 0.0, %v632
    %634 = vmatprep.mubr.f32.mxu0 0.0
    %635 = vmatmul.mubr.f32.gmra.mxu0 %v165
    %v636 = vpop.f32.mrf.mxu0
    %v637 = vadd.f32 0.0, %v636
    %v638 = vpop.f32.mrf.mxu0
    %v639 = vadd.f32 0.0, %v638
    %640 = vmatprep.mubr.f32.mxu0 0.0
    %641 = vmatmul.mubr.f32.gmra.mxu0 %v168
    %v642 = vpop.f32.mrf.mxu0
    %v643 = vadd.f32 0.0, %v642
    %v644 = vpop.f32.mrf.mxu0
    %v645 = vadd.f32 0.0, %v644
    %646 = vmatprep.mubr.f32.mxu0 0.0
    %647 = vmatmul.mubr.f32.gmra.mxu0 %v171
    %v648 = vpop.f32.mrf.mxu0
    %v649 = vadd.f32 0.0, %v648
    %v650 = vpop.f32.mrf.mxu0
    %v651 = vadd.f32 0.0, %v650
    %652 = vmatprep.mubr.f32.mxu0 0.0
    %653 = vmatmul.mubr.f32.gmra.mxu0 %v174
    %v654 = vpop.f32.mrf.mxu0
    %v655 = vadd.f32 0.0, %v654
    %v656 = vpop.f32.mrf.mxu0
    %v657 = vadd.f32 0.0, %v656
    %658 = vdwg.mxu0
    %659 = vmatprep.subr.mxu0 0.0
    %660 = vmatpush1.msra.mxu0 0.0
    %661 = vmatprep.subr.mxu0 0.0
    %662 = vmatpush1.msra.mxu0 0.0
    %663 = vmatprep.subr.mxu0 0.0
    %664 = vmatpush1.msra.mxu0 0.0
    %665 = vmatprep.subr.mxu0 0.0
    %666 = vmatpush1.msra.mxu0 0.0
    %667 = vmatprep.subr.mxu0 0.0
    %668 = vmatpush1.msra.mxu0 0.0
    %669 = vmatprep.subr.mxu0 0.0
    %670 = vmatpush1.msra.mxu0 0.0
    %671 = vmatprep.subr.mxu0 0.0
    %672 = vmatpush1.msra.mxu0 0.0
    %673 = vmatprep.subr.mxu0 0.0
    %674 = vmatpush1.msra.mxu0 0.0
    %675 = vmatprep.subr.mxu0 0.0
    %676 = vmatpush1.msra.mxu0 0.0
    %677 = vmatprep.subr.mxu0 0.0
    %678 = vmatpush1.msra.mxu0 0.0
    %679 = vmatprep.subr.mxu0 0.0
    %680 = vmatpush1.msra.mxu0 0.0
    %681 = vmatprep.subr.mxu0 0.0
    %682 = vmatpush1.msra.mxu0 0.0
    %683 = vmatprep.subr.mxu0 %v126
    %684 = vmatpush1.msra.mxu0 %v125
    %685 = vmatprep.subr.mxu0 %v118
    %686 = vmatpush1.msra.mxu0 %v117
    %687 = vmatprep.subr.mxu0 %v110
    %688 = vmatpush1.msra.mxu0 %v109
    %689 = vmatprep.subr.mxu0 %v102
    %690 = vmatpush1.msra.mxu0 %v101
    %691 = vmatprep.subr.mxu0 0.0
    %692 = vmatpush2.msra.mxu0 0.0
    %693 = vmatprep.subr.mxu0 0.0
    %694 = vmatpush2.msra.mxu0 0.0
    %695 = vmatprep.subr.mxu0 0.0
    %696 = vmatpush2.msra.mxu0 0.0
    %697 = vmatprep.subr.mxu0 0.0
    %698 = vmatpush2.msra.mxu0 0.0
    %699 = vmatprep.subr.mxu0 0.0
    %700 = vmatpush2.msra.mxu0 0.0
    %701 = vmatprep.subr.mxu0 0.0
    %702 = vmatpush2.msra.mxu0 0.0
    %703 = vmatprep.subr.mxu0 0.0
    %704 = vmatpush2.msra.mxu0 0.0
    %705 = vmatprep.subr.mxu0 0.0
    %706 = vmatpush2.msra.mxu0 0.0
    %707 = vmatprep.subr.mxu0 0.0
    %708 = vmatpush2.msra.mxu0 0.0
    %709 = vmatprep.subr.mxu0 0.0
    %710 = vmatpush2.msra.mxu0 0.0
    %711 = vmatprep.subr.mxu0 0.0
    %712 = vmatpush2.msra.mxu0 0.0
    %713 = vmatprep.subr.mxu0 0.0
    %714 = vmatpush2.msra.mxu0 0.0
    %715 = vmatprep.subr.mxu0 0.0
    %716 = vmatpush2.msra.mxu0 0.0
    %717 = vmatprep.subr.mxu0 0.0
    %718 = vmatpush2.msra.mxu0 0.0
    %719 = vmatprep.subr.mxu0 0.0
    %720 = vmatpush2.msra.mxu0 0.0
    %721 = vmatprep.subr.mxu0 0.0
    %722 = vmatpush2.msra.mxu0 0.0
    %723 = vmatprep.mubr.f32.mxu0 0.0
    %724 = vmatmul.mubr.f32.gmra.mxu0 %v129
    %v725 = vpop.f32.mrf.mxu0
    %v726 = vadd.f32 0.0, %v725
    %v727 = vpop.f32.mrf.mxu0
    %v728 = vadd.f32 0.0, %v727
    %729 = vmatprep.mubr.f32.mxu0 0.0
    %730 = vmatmul.mubr.f32.gmra.mxu0 %v132
    %v731 = vpop.f32.mrf.mxu0
    %v732 = vadd.f32 0.0, %v731
    %v733 = vpop.f32.mrf.mxu0
    %v734 = vadd.f32 0.0, %v733
    %735 = vmatprep.mubr.f32.mxu0 0.0
    %736 = vmatmul.mubr.f32.gmra.mxu0 %v135
    %v737 = vpop.f32.mrf.mxu0
    %v738 = vadd.f32 0.0, %v737
    %v739 = vpop.f32.mrf.mxu0
    %v740 = vadd.f32 0.0, %v739
    %741 = vmatprep.mubr.f32.mxu0 0.0
    %742 = vmatmul.mubr.f32.gmra.mxu0 %v138
    %v743 = vpop.f32.mrf.mxu0
    %v744 = vadd.f32 0.0, %v743
    %v745 = vpop.f32.mrf.mxu0
    %v746 = vadd.f32 0.0, %v745
    %747 = vmatprep.mubr.f32.mxu0 0.0
    %748 = vmatmul.mubr.f32.gmra.mxu0 %v141
    %v749 = vpop.f32.mrf.mxu0
    %v750 = vadd.f32 0.0, %v749
    %v751 = vpop.f32.mrf.mxu0
    %v752 = vadd.f32 0.0, %v751
    %753 = vmatprep.mubr.f32.mxu0 0.0
    %754 = vmatmul.mubr.f32.gmra.mxu0 %v144
    %v755 = vpop.f32.mrf.mxu0
    %v756 = vadd.f32 0.0, %v755
    %v757 = vpop.f32.mrf.mxu0
    %v758 = vadd.f32 0.0, %v757
    %759 = vmatprep.mubr.f32.mxu0 0.0
    %760 = vmatmul.mubr.f32.gmra.mxu0 %v147
    %v761 = vpop.f32.mrf.mxu0
    %v762 = vadd.f32 0.0, %v761
    %v763 = vpop.f32.mrf.mxu0
    %v764 = vadd.f32 0.0, %v763
    %765 = vmatprep.mubr.f32.mxu0 0.0
    %766 = vmatmul.mubr.f32.gmra.mxu0 %v150
    %v767 = vpop.f32.mrf.mxu0
    %v768 = vadd.f32 0.0, %v767
    %v769 = vpop.f32.mrf.mxu0
    %v770 = vadd.f32 0.0, %v769
    %771 = vmatprep.mubr.f32.mxu0 0.0
    %772 = vmatmul.mubr.f32.gmra.mxu0 %v153
    %v773 = vpop.f32.mrf.mxu0
    %v774 = vadd.f32 0.0, %v773
    %v775 = vpop.f32.mrf.mxu0
    %v776 = vadd.f32 0.0, %v775
    %777 = vmatprep.mubr.f32.mxu0 0.0
    %778 = vmatmul.mubr.f32.gmra.mxu0 %v156
    %v779 = vpop.f32.mrf.mxu0
    %v780 = vadd.f32 0.0, %v779
    %v781 = vpop.f32.mrf.mxu0
    %v782 = vadd.f32 0.0, %v781
    %783 = vmatprep.mubr.f32.mxu0 0.0
    %784 = vmatmul.mubr.f32.gmra.mxu0 %v159
    %v785 = vpop.f32.mrf.mxu0
    %v786 = vadd.f32 0.0, %v785
    %v787 = vpop.f32.mrf.mxu0
    %v788 = vadd.f32 0.0, %v787
    %789 = vmatprep.mubr.f32.mxu0 0.0
    %790 = vmatmul.mubr.f32.gmra.mxu0 %v162
    %v791 = vpop.f32.mrf.mxu0
    %v792 = vadd.f32 0.0, %v791
    %v793 = vpop.f32.mrf.mxu0
    %v794 = vadd.f32 0.0, %v793
    %795 = vmatprep.mubr.f32.mxu0 0.0
    %796 = vmatmul.mubr.f32.gmra.mxu0 %v165
    %v797 = vpop.f32.mrf.mxu0
    %v798 = vadd.f32 0.0, %v797
    %v799 = vpop.f32.mrf.mxu0
    %v800 = vadd.f32 0.0, %v799
    %801 = vmatprep.mubr.f32.mxu0 0.0
    %802 = vmatmul.mubr.f32.gmra.mxu0 %v168
    %v803 = vpop.f32.mrf.mxu0
    %v804 = vadd.f32 0.0, %v803
    %v805 = vpop.f32.mrf.mxu0
    %v806 = vadd.f32 0.0, %v805
    %807 = vmatprep.mubr.f32.mxu0 0.0
    %808 = vmatmul.mubr.f32.gmra.mxu0 %v171
    %v809 = vpop.f32.mrf.mxu0
    %v810 = vadd.f32 0.0, %v809
    %v811 = vpop.f32.mrf.mxu0
    %v812 = vadd.f32 0.0, %v811
    %813 = vmatprep.mubr.f32.mxu0 0.0
    %814 = vmatmul.mubr.f32.gmra.mxu0 %v174
    %v815 = vpop.f32.mrf.mxu0
    %v816 = vadd.f32 0.0, %v815
    %v817 = vpop.f32.mrf.mxu0
    %v818 = vadd.f32 0.0, %v817
    %819 = vdwg.mxu0
    %v820 = vld [vmem:[%s5] sm:$0x3]
    %v822 = vlaneseq
    %v823 = vshrl.u32 %v822, 7
    %v824 = vsub.s32 0, %v823
    %v825 = vrot.slane %v820, %v824
    %v826 = vlaneseq
    %v827 = vshrl.u32 %v826, 7
    %v828 = vsub.s32 1, %v827
    %v829 = vrot.slane %v820, %v828
    %v832 = vadd.f32 %v726, %v825
    %v833 = vadd.f32 %v728, %v829
    %v834 = vadd.f32 %v732, %v825
    %v835 = vadd.f32 %v734, %v829
    %v836 = vadd.f32 %v738, %v825
    %v837 = vadd.f32 %v740, %v829
    %v838 = vadd.f32 %v744, %v825
    %v839 = vadd.f32 %v746, %v829
    %v840 = vadd.f32 %v750, %v825
    %v841 = vadd.f32 %v752, %v829
    %v842 = vadd.f32 %v756, %v825
    %v843 = vadd.f32 %v758, %v829
    %v844 = vadd.f32 %v762, %v825
    %v845 = vadd.f32 %v764, %v829
    %v846 = vadd.f32 %v768, %v825
    %v847 = vadd.f32 %v770, %v829
    %v848 = vadd.f32 %v774, %v825
    %v849 = vadd.f32 %v776, %v829
    %v850 = vadd.f32 %v780, %v825
    %v851 = vadd.f32 %v782, %v829
    %v852 = vadd.f32 %v786, %v825
    %v853 = vadd.f32 %v788, %v829
    %v854 = vadd.f32 %v792, %v825
    %v855 = vadd.f32 %v794, %v829
    %v856 = vadd.f32 %v798, %v825
    %v857 = vadd.f32 %v800, %v829
    %v858 = vadd.f32 %v804, %v825
    %v859 = vadd.f32 %v806, %v829
    %v860 = vadd.f32 %v810, %v825
    %v861 = vadd.f32 %v812, %v829
    %v862 = vadd.f32 %v816, %v825
    %v863 = vadd.f32 %v818, %v829
    %v864 = vld [vmem:[#allocation5] sm:$0xff]
    %v865 = vld [vmem:[#allocation5 + $0x8] sm:$0xff]
    %v866 = vld [vmem:[#allocation5 + $0x10] sm:$0xff]
    %v867 = vld [vmem:[#allocation5 + $0x18] sm:$0xff]
    %v868 = vld [vmem:[#allocation5 + $0x20] sm:$0xff]
    %v869 = vld [vmem:[#allocation5 + $0x28] sm:$0xff]
    %v870 = vld [vmem:[#allocation5 + $0x30] sm:$0xff]
    %v871 = vld [vmem:[#allocation5 + $0x38] sm:$0xff]
    %v872 = vld [vmem:[#allocation5 + $0x40] sm:$0xff]
    %v873 = vld [vmem:[#allocation5 + $0x48] sm:$0xff]
    %v874 = vld [vmem:[#allocation5 + $0x50] sm:$0xff]
    %v875 = vld [vmem:[#allocation5 + $0x58] sm:$0xff]
    %v876 = vld [vmem:[#allocation5 + $0x60] sm:$0xff]
    %v877 = vld [vmem:[#allocation5 + $0x68] sm:$0xff]
    %v878 = vld [vmem:[#allocation5 + $0x70] sm:$0xff]
    %v879 = vld [vmem:[#allocation5 + $0x78] sm:$0xff]
    %s880 = scalar_lea.vmem [#allocation5], 128
    %v881 = vld [vmem:[%s880] sm:$0xff]
    %v882 = vld [vmem:[%s880 + $0x8] sm:$0xff]
    %v883 = vld [vmem:[%s880 + $0x10] sm:$0xff]
    %v884 = vld [vmem:[%s880 + $0x18] sm:$0xff]
    %v885 = vld [vmem:[%s880 + $0x20] sm:$0xff]
    %v886 = vld [vmem:[%s880 + $0x28] sm:$0xff]
    %v887 = vld [vmem:[%s880 + $0x30] sm:$0xff]
    %v888 = vld [vmem:[%s880 + $0x38] sm:$0xff]
    %v889 = vld [vmem:[%s880 + $0x40] sm:$0xff]
    %v890 = vld [vmem:[%s880 + $0x48] sm:$0xff]
    %v891 = vld [vmem:[%s880 + $0x50] sm:$0xff]
    %v892 = vld [vmem:[%s880 + $0x58] sm:$0xff]
    %v893 = vld [vmem:[%s880 + $0x60] sm:$0xff]
    %v894 = vld [vmem:[%s880 + $0x68] sm:$0xff]
    %v895 = vld [vmem:[%s880 + $0x70] sm:$0xff]
    %v896 = vld [vmem:[%s880 + $0x78] sm:$0xff]
    %897 = vmatprep.subr.mxu0 %v496
    %898 = vmatpush1.msra.mxu0 %v494
    %899 = vmatprep.subr.mxu0 %v490
    %900 = vmatpush1.msra.mxu0 %v488
    %901 = vmatprep.subr.mxu0 %v484
    %902 = vmatpush1.msra.mxu0 %v482
    %903 = vmatprep.subr.mxu0 %v478
    %904 = vmatpush1.msra.mxu0 %v476
    %905 = vmatprep.subr.mxu0 %v472
    %906 = vmatpush1.msra.mxu0 %v470
    %907 = vmatprep.subr.mxu0 %v466
    %908 = vmatpush1.msra.mxu0 %v464
    %909 = vmatprep.subr.mxu0 %v460
    %910 = vmatpush1.msra.mxu0 %v458
    %911 = vmatprep.subr.mxu0 %v454
    %912 = vmatpush1.msra.mxu0 %v452
    %913 = vmatprep.subr.mxu0 %v448
    %914 = vmatpush1.msra.mxu0 %v446
    %915 = vmatprep.subr.mxu0 %v442
    %916 = vmatpush1.msra.mxu0 %v440
    %917 = vmatprep.subr.mxu0 %v436
    %918 = vmatpush1.msra.mxu0 %v434
    %919 = vmatprep.subr.mxu0 %v430
    %920 = vmatpush1.msra.mxu0 %v428
    %921 = vmatprep.subr.mxu0 %v424
    %922 = vmatpush1.msra.mxu0 %v422
    %923 = vmatprep.subr.mxu0 %v418
    %924 = vmatpush1.msra.mxu0 %v416
    %925 = vmatprep.subr.mxu0 %v412
    %926 = vmatpush1.msra.mxu0 %v410
    %927 = vmatprep.subr.mxu0 %v406
    %928 = vmatpush1.msra.mxu0 %v404
    %929 = vmatprep.subr.mxu0 0.0
    %930 = vmatpush2.msra.mxu0 0.0
    %931 = vmatprep.subr.mxu0 0.0
    %932 = vmatpush2.msra.mxu0 0.0
    %933 = vmatprep.subr.mxu0 0.0
    %934 = vmatpush2.msra.mxu0 0.0
    %935 = vmatprep.subr.mxu0 0.0
    %936 = vmatpush2.msra.mxu0 0.0
    %937 = vmatprep.subr.mxu0 0.0
    %938 = vmatpush2.msra.mxu0 0.0
    %939 = vmatprep.subr.mxu0 0.0
    %940 = vmatpush2.msra.mxu0 0.0
    %941 = vmatprep.subr.mxu0 0.0
    %942 = vmatpush2.msra.mxu0 0.0
    %943 = vmatprep.subr.mxu0 0.0
    %944 = vmatpush2.msra.mxu0 0.0
    %945 = vmatprep.subr.mxu0 0.0
    %946 = vmatpush2.msra.mxu0 0.0
    %947 = vmatprep.subr.mxu0 0.0
    %948 = vmatpush2.msra.mxu0 0.0
    %949 = vmatprep.subr.mxu0 0.0
    %950 = vmatpush2.msra.mxu0 0.0
    %951 = vmatprep.subr.mxu0 0.0
    %952 = vmatpush2.msra.mxu0 0.0
    %953 = vmatprep.subr.mxu0 0.0
    %954 = vmatpush2.msra.mxu0 0.0
    %955 = vmatprep.subr.mxu0 0.0
    %956 = vmatpush2.msra.mxu0 0.0
    %957 = vmatprep.subr.mxu0 0.0
    %958 = vmatpush2.msra.mxu0 0.0
    %959 = vmatprep.subr.mxu0 0.0
    %960 = vmatpush2.msra.mxu0 0.0
    %961 = vmatprep.mubr.f32.mxu0 0.0
    %962 = vmatmul.mubr.f32.gmra.mxu0 %v881
    %v963 = vpop.f32.mrf.mxu0
    %v964 = vadd.f32 0.0, %v963
    %v965 = vpop.f32.mrf.mxu0
    %v966 = vadd.f32 0.0, %v965
    %967 = vmatprep.mubr.f32.mxu0 0.0
    %968 = vmatmul.mubr.f32.gmra.mxu0 %v882
    %v969 = vpop.f32.mrf.mxu0
    %v970 = vadd.f32 0.0, %v969
    %v971 = vpop.f32.mrf.mxu0
    %v972 = vadd.f32 0.0, %v971
    %973 = vmatprep.mubr.f32.mxu0 0.0
    %974 = vmatmul.mubr.f32.gmra.mxu0 %v883
    %v975 = vpop.f32.mrf.mxu0
    %v976 = vadd.f32 0.0, %v975
    %v977 = vpop.f32.mrf.mxu0
    %v978 = vadd.f32 0.0, %v977
    %979 = vmatprep.mubr.f32.mxu0 0.0
    %980 = vmatmul.mubr.f32.gmra.mxu0 %v884
    %v981 = vpop.f32.mrf.mxu0
    %v982 = vadd.f32 0.0, %v981
    %v983 = vpop.f32.mrf.mxu0
    %v984 = vadd.f32 0.0, %v983
    %985 = vmatprep.mubr.f32.mxu0 0.0
    %986 = vmatmul.mubr.f32.gmra.mxu0 %v885
    %v987 = vpop.f32.mrf.mxu0
    %v988 = vadd.f32 0.0, %v987
    %v989 = vpop.f32.mrf.mxu0
    %v990 = vadd.f32 0.0, %v989
    %991 = vmatprep.mubr.f32.mxu0 0.0
    %992 = vmatmul.mubr.f32.gmra.mxu0 %v886
    %v993 = vpop.f32.mrf.mxu0
    %v994 = vadd.f32 0.0, %v993
    %v995 = vpop.f32.mrf.mxu0
    %v996 = vadd.f32 0.0, %v995
    %997 = vmatprep.mubr.f32.mxu0 0.0
    %998 = vmatmul.mubr.f32.gmra.mxu0 %v887
    %v999 = vpop.f32.mrf.mxu0
    %v1000 = vadd.f32 0.0, %v999
    %v1001 = vpop.f32.mrf.mxu0
    %v1002 = vadd.f32 0.0, %v1001
    %1003 = vmatprep.mubr.f32.mxu0 0.0
    %1004 = vmatmul.mubr.f32.gmra.mxu0 %v888
    %v1005 = vpop.f32.mrf.mxu0
    %v1006 = vadd.f32 0.0, %v1005
    %v1007 = vpop.f32.mrf.mxu0
    %v1008 = vadd.f32 0.0, %v1007
    %1009 = vmatprep.mubr.f32.mxu0 0.0
    %1010 = vmatmul.mubr.f32.gmra.mxu0 %v889
    %v1011 = vpop.f32.mrf.mxu0
    %v1012 = vadd.f32 0.0, %v1011
    %v1013 = vpop.f32.mrf.mxu0
    %v1014 = vadd.f32 0.0, %v1013
    %1015 = vmatprep.mubr.f32.mxu0 0.0
    %1016 = vmatmul.mubr.f32.gmra.mxu0 %v890
    %v1017 = vpop.f32.mrf.mxu0
    %v1018 = vadd.f32 0.0, %v1017
    %v1019 = vpop.f32.mrf.mxu0
    %v1020 = vadd.f32 0.0, %v1019
    %1021 = vmatprep.mubr.f32.mxu0 0.0
    %1022 = vmatmul.mubr.f32.gmra.mxu0 %v891
    %v1023 = vpop.f32.mrf.mxu0
    %v1024 = vadd.f32 0.0, %v1023
    %v1025 = vpop.f32.mrf.mxu0
    %v1026 = vadd.f32 0.0, %v1025
    %1027 = vmatprep.mubr.f32.mxu0 0.0
    %1028 = vmatmul.mubr.f32.gmra.mxu0 %v892
    %v1029 = vpop.f32.mrf.mxu0
    %v1030 = vadd.f32 0.0, %v1029
    %v1031 = vpop.f32.mrf.mxu0
    %v1032 = vadd.f32 0.0, %v1031
    %1033 = vmatprep.mubr.f32.mxu0 0.0
    %1034 = vmatmul.mubr.f32.gmra.mxu0 %v893
    %v1035 = vpop.f32.mrf.mxu0
    %v1036 = vadd.f32 0.0, %v1035
    %v1037 = vpop.f32.mrf.mxu0
    %v1038 = vadd.f32 0.0, %v1037
    %1039 = vmatprep.mubr.f32.mxu0 0.0
    %1040 = vmatmul.mubr.f32.gmra.mxu0 %v894
    %v1041 = vpop.f32.mrf.mxu0
    %v1042 = vadd.f32 0.0, %v1041
    %v1043 = vpop.f32.mrf.mxu0
    %v1044 = vadd.f32 0.0, %v1043
    %1045 = vmatprep.mubr.f32.mxu0 0.0
    %1046 = vmatmul.mubr.f32.gmra.mxu0 %v895
    %v1047 = vpop.f32.mrf.mxu0
    %v1048 = vadd.f32 0.0, %v1047
    %v1049 = vpop.f32.mrf.mxu0
    %v1050 = vadd.f32 0.0, %v1049
    %1051 = vmatprep.mubr.f32.mxu0 0.0
    %1052 = vmatmul.mubr.f32.gmra.mxu0 %v896
    %v1053 = vpop.f32.mrf.mxu0
    %v1054 = vadd.f32 0.0, %v1053
    %v1055 = vpop.f32.mrf.mxu0
    %v1056 = vadd.f32 0.0, %v1055
    %1057 = vdwg.mxu0
    %1058 = vmatprep.subr.mxu0 %v335
    %1059 = vmatpush1.msra.mxu0 %v333
    %1060 = vmatprep.subr.mxu0 %v329
    %1061 = vmatpush1.msra.mxu0 %v327
    %1062 = vmatprep.subr.mxu0 %v323
    %1063 = vmatpush1.msra.mxu0 %v321
    %1064 = vmatprep.subr.mxu0 %v317
    %1065 = vmatpush1.msra.mxu0 %v315
    %1066 = vmatprep.subr.mxu0 %v311
    %1067 = vmatpush1.msra.mxu0 %v309
    %1068 = vmatprep.subr.mxu0 %v305
    %1069 = vmatpush1.msra.mxu0 %v303
    %1070 = vmatprep.subr.mxu0 %v299
    %1071 = vmatpush1.msra.mxu0 %v297
    %1072 = vmatprep.subr.mxu0 %v293
    %1073 = vmatpush1.msra.mxu0 %v291
    %1074 = vmatprep.subr.mxu0 %v287
    %1075 = vmatpush1.msra.mxu0 %v285
    %1076 = vmatprep.subr.mxu0 %v281
    %1077 = vmatpush1.msra.mxu0 %v279
    %1078 = vmatprep.subr.mxu0 %v275
    %1079 = vmatpush1.msra.mxu0 %v273
    %1080 = vmatprep.subr.mxu0 %v269
    %1081 = vmatpush1.msra.mxu0 %v267
    %1082 = vmatprep.subr.mxu0 %v263
    %1083 = vmatpush1.msra.mxu0 %v261
    %1084 = vmatprep.subr.mxu0 %v257
    %1085 = vmatpush1.msra.mxu0 %v255
    %1086 = vmatprep.subr.mxu0 %v251
    %1087 = vmatpush1.msra.mxu0 %v249
    %1088 = vmatprep.subr.mxu0 %v245
    %1089 = vmatpush1.msra.mxu0 %v243
    %1090 = vmatprep.subr.mxu0 0.0
    %1091 = vmatpush2.msra.mxu0 0.0
    %1092 = vmatprep.subr.mxu0 0.0
    %1093 = vmatpush2.msra.mxu0 0.0
    %1094 = vmatprep.subr.mxu0 0.0
    %1095 = vmatpush2.msra.mxu0 0.0
    %1096 = vmatprep.subr.mxu0 0.0
    %1097 = vmatpush2.msra.mxu0 0.0
    %1098 = vmatprep.subr.mxu0 0.0
    %1099 = vmatpush2.msra.mxu0 0.0
    %1100 = vmatprep.subr.mxu0 0.0
    %1101 = vmatpush2.msra.mxu0 0.0
    %1102 = vmatprep.subr.mxu0 0.0
    %1103 = vmatpush2.msra.mxu0 0.0
    %1104 = vmatprep.subr.mxu0 0.0
    %1105 = vmatpush2.msra.mxu0 0.0
    %1106 = vmatprep.subr.mxu0 0.0
    %1107 = vmatpush2.msra.mxu0 0.0
    %1108 = vmatprep.subr.mxu0 0.0
    %1109 = vmatpush2.msra.mxu0 0.0
    %1110 = vmatprep.subr.mxu0 0.0
    %1111 = vmatpush2.msra.mxu0 0.0
    %1112 = vmatprep.subr.mxu0 0.0
    %1113 = vmatpush2.msra.mxu0 0.0
    %1114 = vmatprep.subr.mxu0 0.0
    %1115 = vmatpush2.msra.mxu0 0.0
    %1116 = vmatprep.subr.mxu0 0.0
    %1117 = vmatpush2.msra.mxu0 0.0
    %1118 = vmatprep.subr.mxu0 0.0
    %1119 = vmatpush2.msra.mxu0 0.0
    %1120 = vmatprep.subr.mxu0 0.0
    %1121 = vmatpush2.msra.mxu0 0.0
    %1122 = vmatprep.mubr.f32.mxu0 0.0
    %1123 = vmatmul.mubr.f32.gmra.mxu0 %v864
    %v1124 = vpop.f32.mrf.mxu0
    %v1125 = vadd.f32 %v964, %v1124
    %v1126 = vpop.f32.mrf.mxu0
    %v1127 = vadd.f32 %v966, %v1126
    %1128 = vmatprep.mubr.f32.mxu0 0.0
    %1129 = vmatmul.mubr.f32.gmra.mxu0 %v865
    %v1130 = vpop.f32.mrf.mxu0
    %v1131 = vadd.f32 %v970, %v1130
    %v1132 = vpop.f32.mrf.mxu0
    %v1133 = vadd.f32 %v972, %v1132
    %1134 = vmatprep.mubr.f32.mxu0 0.0
    %1135 = vmatmul.mubr.f32.gmra.mxu0 %v866
    %v1136 = vpop.f32.mrf.mxu0
    %v1137 = vadd.f32 %v976, %v1136
    %v1138 = vpop.f32.mrf.mxu0
    %v1139 = vadd.f32 %v978, %v1138
    %1140 = vmatprep.mubr.f32.mxu0 0.0
    %1141 = vmatmul.mubr.f32.gmra.mxu0 %v867
    %v1142 = vpop.f32.mrf.mxu0
    %v1143 = vadd.f32 %v982, %v1142
    %v1144 = vpop.f32.mrf.mxu0
    %v1145 = vadd.f32 %v984, %v1144
    %1146 = vmatprep.mubr.f32.mxu0 0.0
    %1147 = vmatmul.mubr.f32.gmra.mxu0 %v868
    %v1148 = vpop.f32.mrf.mxu0
    %v1149 = vadd.f32 %v988, %v1148
    %v1150 = vpop.f32.mrf.mxu0
    %v1151 = vadd.f32 %v990, %v1150
    %1152 = vmatprep.mubr.f32.mxu0 0.0
    %1153 = vmatmul.mubr.f32.gmra.mxu0 %v869
    %v1154 = vpop.f32.mrf.mxu0
    %v1155 = vadd.f32 %v994, %v1154
    %v1156 = vpop.f32.mrf.mxu0
    %v1157 = vadd.f32 %v996, %v1156
    %1158 = vmatprep.mubr.f32.mxu0 0.0
    %1159 = vmatmul.mubr.f32.gmra.mxu0 %v870
    %v1160 = vpop.f32.mrf.mxu0
    %v1161 = vadd.f32 %v1000, %v1160
    %v1162 = vpop.f32.mrf.mxu0
    %v1163 = vadd.f32 %v1002, %v1162
    %1164 = vmatprep.mubr.f32.mxu0 0.0
    %1165 = vmatmul.mubr.f32.gmra.mxu0 %v871
    %v1166 = vpop.f32.mrf.mxu0
    %v1167 = vadd.f32 %v1006, %v1166
    %v1168 = vpop.f32.mrf.mxu0
    %v1169 = vadd.f32 %v1008, %v1168
    %1170 = vmatprep.mubr.f32.mxu0 0.0
    %1171 = vmatmul.mubr.f32.gmra.mxu0 %v872
    %v1172 = vpop.f32.mrf.mxu0
    %v1173 = vadd.f32 %v1012, %v1172
    %v1174 = vpop.f32.mrf.mxu0
    %v1175 = vadd.f32 %v1014, %v1174
    %1176 = vmatprep.mubr.f32.mxu0 0.0
    %1177 = vmatmul.mubr.f32.gmra.mxu0 %v873
    %v1178 = vpop.f32.mrf.mxu0
    %v1179 = vadd.f32 %v1018, %v1178
    %v1180 = vpop.f32.mrf.mxu0
    %v1181 = vadd.f32 %v1020, %v1180
    %1182 = vmatprep.mubr.f32.mxu0 0.0
    %1183 = vmatmul.mubr.f32.gmra.mxu0 %v874
    %v1184 = vpop.f32.mrf.mxu0
    %v1185 = vadd.f32 %v1024, %v1184
    %v1186 = vpop.f32.mrf.mxu0
    %v1187 = vadd.f32 %v1026, %v1186
    %1188 = vmatprep.mubr.f32.mxu0 0.0
    %1189 = vmatmul.mubr.f32.gmra.mxu0 %v875
    %v1190 = vpop.f32.mrf.mxu0
    %v1191 = vadd.f32 %v1030, %v1190
    %v1192 = vpop.f32.mrf.mxu0
    %v1193 = vadd.f32 %v1032, %v1192
    %1194 = vmatprep.mubr.f32.mxu0 0.0
    %1195 = vmatmul.mubr.f32.gmra.mxu0 %v876
    %v1196 = vpop.f32.mrf.mxu0
    %v1197 = vadd.f32 %v1036, %v1196
    %v1198 = vpop.f32.mrf.mxu0
    %v1199 = vadd.f32 %v1038, %v1198
    %1200 = vmatprep.mubr.f32.mxu0 0.0
    %1201 = vmatmul.mubr.f32.gmra.mxu0 %v877
    %v1202 = vpop.f32.mrf.mxu0
    %v1203 = vadd.f32 %v1042, %v1202
    %v1204 = vpop.f32.mrf.mxu0
    %v1205 = vadd.f32 %v1044, %v1204
    %1206 = vmatprep.mubr.f32.mxu0 0.0
    %1207 = vmatmul.mubr.f32.gmra.mxu0 %v878
    %v1208 = vpop.f32.mrf.mxu0
    %v1209 = vadd.f32 %v1048, %v1208
    %v1210 = vpop.f32.mrf.mxu0
    %v1211 = vadd.f32 %v1050, %v1210
    %1212 = vmatprep.mubr.f32.mxu0 0.0
    %1213 = vmatmul.mubr.f32.gmra.mxu0 %v879
    %v1214 = vpop.f32.mrf.mxu0
    %v1215 = vadd.f32 %v1054, %v1214
    %v1216 = vpop.f32.mrf.mxu0
    %v1217 = vadd.f32 %v1056, %v1216
    %1218 = vdwg.mxu0
    %s1219 = scalar_lea.vmem [#allocation5], 256
    %v1220 = vld [vmem:[%s1219] sm:$0xff]
    %v1221 = vld [vmem:[%s1219 + $0x8] sm:$0xff]
    %v1222 = vld [vmem:[%s1219 + $0x10] sm:$0xff]
    %v1223 = vld [vmem:[%s1219 + $0x18] sm:$0xff]
    %v1224 = vld [vmem:[%s1219 + $0x20] sm:$0xff]
    %v1225 = vld [vmem:[%s1219 + $0x28] sm:$0xff]
    %v1226 = vld [vmem:[%s1219 + $0x30] sm:$0xff]
    %v1227 = vld [vmem:[%s1219 + $0x38] sm:$0xff]
    %v1228 = vld [vmem:[%s1219 + $0x40] sm:$0xff]
    %v1229 = vld [vmem:[%s1219 + $0x48] sm:$0xff]
    %v1230 = vld [vmem:[%s1219 + $0x50] sm:$0xff]
    %v1231 = vld [vmem:[%s1219 + $0x58] sm:$0xff]
    %v1232 = vld [vmem:[%s1219 + $0x60] sm:$0xff]
    %v1233 = vld [vmem:[%s1219 + $0x68] sm:$0xff]
    %v1234 = vld [vmem:[%s1219 + $0x70] sm:$0xff]
    %v1235 = vld [vmem:[%s1219 + $0x78] sm:$0xff]
    %1236 = vmatprep.subr.mxu0 %v657
    %1237 = vmatpush1.msra.mxu0 %v655
    %1238 = vmatprep.subr.mxu0 %v651
    %1239 = vmatpush1.msra.mxu0 %v649
    %1240 = vmatprep.subr.mxu0 %v645
    %1241 = vmatpush1.msra.mxu0 %v643
    %1242 = vmatprep.subr.mxu0 %v639
    %1243 = vmatpush1.msra.mxu0 %v637
    %1244 = vmatprep.subr.mxu0 %v633
    %1245 = vmatpush1.msra.mxu0 %v631
    %1246 = vmatprep.subr.mxu0 %v627
    %1247 = vmatpush1.msra.mxu0 %v625
    %1248 = vmatprep.subr.mxu0 %v621
    %1249 = vmatpush1.msra.mxu0 %v619
    %1250 = vmatprep.subr.mxu0 %v615
    %1251 = vmatpush1.msra.mxu0 %v613
    %1252 = vmatprep.subr.mxu0 %v609
    %1253 = vmatpush1.msra.mxu0 %v607
    %1254 = vmatprep.subr.mxu0 %v603
    %1255 = vmatpush1.msra.mxu0 %v601
    %1256 = vmatprep.subr.mxu0 %v597
    %1257 = vmatpush1.msra.mxu0 %v595
    %1258 = vmatprep.subr.mxu0 %v591
    %1259 = vmatpush1.msra.mxu0 %v589
    %1260 = vmatprep.subr.mxu0 %v585
    %1261 = vmatpush1.msra.mxu0 %v583
    %1262 = vmatprep.subr.mxu0 %v579
    %1263 = vmatpush1.msra.mxu0 %v577
    %1264 = vmatprep.subr.mxu0 %v573
    %1265 = vmatpush1.msra.mxu0 %v571
    %1266 = vmatprep.subr.mxu0 %v567
    %1267 = vmatpush1.msra.mxu0 %v565
    %1268 = vmatprep.subr.mxu0 0.0
    %1269 = vmatpush2.msra.mxu0 0.0
    %1270 = vmatprep.subr.mxu0 0.0
    %1271 = vmatpush2.msra.mxu0 0.0
    %1272 = vmatprep.subr.mxu0 0.0
    %1273 = vmatpush2.msra.mxu0 0.0
    %1274 = vmatprep.subr.mxu0 0.0
    %1275 = vmatpush2.msra.mxu0 0.0
    %1276 = vmatprep.subr.mxu0 0.0
    %1277 = vmatpush2.msra.mxu0 0.0
    %1278 = vmatprep.subr.mxu0 0.0
    %1279 = vmatpush2.msra.mxu0 0.0
    %1280 = vmatprep.subr.mxu0 0.0
    %1281 = vmatpush2.msra.mxu0 0.0
    %1282 = vmatprep.subr.mxu0 0.0
    %1283 = vmatpush2.msra.mxu0 0.0
    %1284 = vmatprep.subr.mxu0 0.0
    %1285 = vmatpush2.msra.mxu0 0.0
    %1286 = vmatprep.subr.mxu0 0.0
    %1287 = vmatpush2.msra.mxu0 0.0
    %1288 = vmatprep.subr.mxu0 0.0
    %1289 = vmatpush2.msra.mxu0 0.0
    %1290 = vmatprep.subr.mxu0 0.0
    %1291 = vmatpush2.msra.mxu0 0.0
    %1292 = vmatprep.subr.mxu0 0.0
    %1293 = vmatpush2.msra.mxu0 0.0
    %1294 = vmatprep.subr.mxu0 0.0
    %1295 = vmatpush2.msra.mxu0 0.0
    %1296 = vmatprep.subr.mxu0 0.0
    %1297 = vmatpush2.msra.mxu0 0.0
    %1298 = vmatprep.subr.mxu0 0.0
    %1299 = vmatpush2.msra.mxu0 0.0
    %1300 = vmatprep.mubr.f32.mxu0 0.0
    %1301 = vmatmul.mubr.f32.gmra.mxu0 %v1220
    %v1302 = vpop.f32.mrf.mxu0
    %v1303 = vadd.f32 0.0, %v1302
    %v1304 = vpop.f32.mrf.mxu0
    %v1305 = vadd.f32 0.0, %v1304
    %1306 = vmatprep.mubr.f32.mxu0 0.0
    %1307 = vmatmul.mubr.f32.gmra.mxu0 %v1221
    %v1308 = vpop.f32.mrf.mxu0
    %v1309 = vadd.f32 0.0, %v1308
    %v1310 = vpop.f32.mrf.mxu0
    %v1311 = vadd.f32 0.0, %v1310
    %1312 = vmatprep.mubr.f32.mxu0 0.0
    %1313 = vmatmul.mubr.f32.gmra.mxu0 %v1222
    %v1314 = vpop.f32.mrf.mxu0
    %v1315 = vadd.f32 0.0, %v1314
    %v1316 = vpop.f32.mrf.mxu0
    %v1317 = vadd.f32 0.0, %v1316
    %1318 = vmatprep.mubr.f32.mxu0 0.0
    %1319 = vmatmul.mubr.f32.gmra.mxu0 %v1223
    %v1320 = vpop.f32.mrf.mxu0
    %v1321 = vadd.f32 0.0, %v1320
    %v1322 = vpop.f32.mrf.mxu0
    %v1323 = vadd.f32 0.0, %v1322
    %1324 = vmatprep.mubr.f32.mxu0 0.0
    %1325 = vmatmul.mubr.f32.gmra.mxu0 %v1224
    %v1326 = vpop.f32.mrf.mxu0
    %v1327 = vadd.f32 0.0, %v1326
    %v1328 = vpop.f32.mrf.mxu0
    %v1329 = vadd.f32 0.0, %v1328
    %1330 = vmatprep.mubr.f32.mxu0 0.0
    %1331 = vmatmul.mubr.f32.gmra.mxu0 %v1225
    %v1332 = vpop.f32.mrf.mxu0
    %v1333 = vadd.f32 0.0, %v1332
    %v1334 = vpop.f32.mrf.mxu0
    %v1335 = vadd.f32 0.0, %v1334
    %1336 = vmatprep.mubr.f32.mxu0 0.0
    %1337 = vmatmul.mubr.f32.gmra.mxu0 %v1226
    %v1338 = vpop.f32.mrf.mxu0
    %v1339 = vadd.f32 0.0, %v1338
    %v1340 = vpop.f32.mrf.mxu0
    %v1341 = vadd.f32 0.0, %v1340
    %1342 = vmatprep.mubr.f32.mxu0 0.0
    %1343 = vmatmul.mubr.f32.gmra.mxu0 %v1227
    %v1344 = vpop.f32.mrf.mxu0
    %v1345 = vadd.f32 0.0, %v1344
    %v1346 = vpop.f32.mrf.mxu0
    %v1347 = vadd.f32 0.0, %v1346
    %1348 = vmatprep.mubr.f32.mxu0 0.0
    %1349 = vmatmul.mubr.f32.gmra.mxu0 %v1228
    %v1350 = vpop.f32.mrf.mxu0
    %v1351 = vadd.f32 0.0, %v1350
    %v1352 = vpop.f32.mrf.mxu0
    %v1353 = vadd.f32 0.0, %v1352
    %1354 = vmatprep.mubr.f32.mxu0 0.0
    %1355 = vmatmul.mubr.f32.gmra.mxu0 %v1229
    %v1356 = vpop.f32.mrf.mxu0
    %v1357 = vadd.f32 0.0, %v1356
    %v1358 = vpop.f32.mrf.mxu0
    %v1359 = vadd.f32 0.0, %v1358
    %1360 = vmatprep.mubr.f32.mxu0 0.0
    %1361 = vmatmul.mubr.f32.gmra.mxu0 %v1230
    %v1362 = vpop.f32.mrf.mxu0
    %v1363 = vadd.f32 0.0, %v1362
    %v1364 = vpop.f32.mrf.mxu0
    %v1365 = vadd.f32 0.0, %v1364
    %1366 = vmatprep.mubr.f32.mxu0 0.0
    %1367 = vmatmul.mubr.f32.gmra.mxu0 %v1231
    %v1368 = vpop.f32.mrf.mxu0
    %v1369 = vadd.f32 0.0, %v1368
    %v1370 = vpop.f32.mrf.mxu0
    %v1371 = vadd.f32 0.0, %v1370
    %1372 = vmatprep.mubr.f32.mxu0 0.0
    %1373 = vmatmul.mubr.f32.gmra.mxu0 %v1232
    %v1374 = vpop.f32.mrf.mxu0
    %v1375 = vadd.f32 0.0, %v1374
    %v1376 = vpop.f32.mrf.mxu0
    %v1377 = vadd.f32 0.0, %v1376
    %1378 = vmatprep.mubr.f32.mxu0 0.0
    %1379 = vmatmul.mubr.f32.gmra.mxu0 %v1233
    %v1380 = vpop.f32.mrf.mxu0
    %v1381 = vadd.f32 0.0, %v1380
    %v1382 = vpop.f32.mrf.mxu0
    %v1383 = vadd.f32 0.0, %v1382
    %1384 = vmatprep.mubr.f32.mxu0 0.0
    %1385 = vmatmul.mubr.f32.gmra.mxu0 %v1234
    %v1386 = vpop.f32.mrf.mxu0
    %v1387 = vadd.f32 0.0, %v1386
    %v1388 = vpop.f32.mrf.mxu0
    %v1389 = vadd.f32 0.0, %v1388
    %1390 = vmatprep.mubr.f32.mxu0 0.0
    %1391 = vmatmul.mubr.f32.gmra.mxu0 %v1235
    %v1392 = vpop.f32.mrf.mxu0
    %v1393 = vadd.f32 0.0, %v1392
    %v1394 = vpop.f32.mrf.mxu0
    %v1395 = vadd.f32 0.0, %v1394
    %1396 = vdwg.mxu0
    %v1397 = vadd.f32 %v1125, %v1303
    %v1398 = vadd.f32 %v1127, %v1305
    %v1399 = vadd.f32 %v1131, %v1309
    %v1400 = vadd.f32 %v1133, %v1311
    %v1401 = vadd.f32 %v1137, %v1315
    %v1402 = vadd.f32 %v1139, %v1317
    %v1403 = vadd.f32 %v1143, %v1321
    %v1404 = vadd.f32 %v1145, %v1323
    %v1405 = vadd.f32 %v1149, %v1327
    %v1406 = vadd.f32 %v1151, %v1329
    %v1407 = vadd.f32 %v1155, %v1333
    %v1408 = vadd.f32 %v1157, %v1335
    %v1409 = vadd.f32 %v1161, %v1339
    %v1410 = vadd.f32 %v1163, %v1341
    %v1411 = vadd.f32 %v1167, %v1345
    %v1412 = vadd.f32 %v1169, %v1347
    %v1413 = vadd.f32 %v1173, %v1351
    %v1414 = vadd.f32 %v1175, %v1353
    %v1415 = vadd.f32 %v1179, %v1357
    %v1416 = vadd.f32 %v1181, %v1359
    %v1417 = vadd.f32 %v1185, %v1363
    %v1418 = vadd.f32 %v1187, %v1365
    %v1419 = vadd.f32 %v1191, %v1369
    %v1420 = vadd.f32 %v1193, %v1371
    %v1421 = vadd.f32 %v1197, %v1375
    %v1422 = vadd.f32 %v1199, %v1377
    %v1423 = vadd.f32 %v1203, %v1381
    %v1424 = vadd.f32 %v1205, %v1383
    %v1425 = vadd.f32 %v1209, %v1387
    %v1426 = vadd.f32 %v1211, %v1389
    %v1427 = vadd.f32 %v1215, %v1393
    %v1428 = vadd.f32 %v1217, %v1395
    %v1429 = vmax.f32 %v1397, 0.0
    %v1430 = vmax.f32 %v1398, 0.0
    %v1431 = vmax.f32 %v1399, 0.0
    %v1432 = vmax.f32 %v1400, 0.0
    %v1433 = vmax.f32 %v1401, 0.0
    %v1434 = vmax.f32 %v1402, 0.0
    %v1435 = vmax.f32 %v1403, 0.0
    %v1436 = vmax.f32 %v1404, 0.0
    %v1437 = vmax.f32 %v1405, 0.0
    %v1438 = vmax.f32 %v1406, 0.0
    %v1439 = vmax.f32 %v1407, 0.0
    %v1440 = vmax.f32 %v1408, 0.0
    %v1441 = vmax.f32 %v1409, 0.0
    %v1442 = vmax.f32 %v1410, 0.0
    %v1443 = vmax.f32 %v1411, 0.0
    %v1444 = vmax.f32 %v1412, 0.0
    %v1445 = vmax.f32 %v1413, 0.0
    %v1446 = vmax.f32 %v1414, 0.0
    %v1447 = vmax.f32 %v1415, 0.0
    %v1448 = vmax.f32 %v1416, 0.0
    %v1449 = vmax.f32 %v1417, 0.0
    %v1450 = vmax.f32 %v1418, 0.0
    %v1451 = vmax.f32 %v1419, 0.0
    %v1452 = vmax.f32 %v1420, 0.0
    %v1453 = vmax.f32 %v1421, 0.0
    %v1454 = vmax.f32 %v1422, 0.0
    %v1455 = vmax.f32 %v1423, 0.0
    %v1456 = vmax.f32 %v1424, 0.0
    %v1457 = vmax.f32 %v1425, 0.0
    %v1458 = vmax.f32 %v1426, 0.0
    %v1459 = vmax.f32 %v1427, 0.0
    %v1460 = vmax.f32 %v1428, 0.0
    %v1461 = vld [vmem:[#allocation8] sm:$0xff]
    %v1462 = vld [vmem:[#allocation8 + $0x8] sm:$0xff]
    %v1463 = vld [vmem:[#allocation8 + $0x10] sm:$0xff]
    %v1464 = vld [vmem:[#allocation8 + $0x18] sm:$0xff]
    %v1465 = vld [vmem:[#allocation8 + $0x20] sm:$0xff]
    %v1466 = vld [vmem:[#allocation8 + $0x28] sm:$0xff]
    %v1467 = vld [vmem:[#allocation8 + $0x30] sm:$0xff]
    %v1468 = vld [vmem:[#allocation8 + $0x38] sm:$0xff]
    %v1469 = vld [vmem:[#allocation8 + $0x40] sm:$0xff]
    %v1470 = vld [vmem:[#allocation8 + $0x48] sm:$0xff]
    %v1471 = vld [vmem:[#allocation8 + $0x50] sm:$0xff]
    %v1472 = vld [vmem:[#allocation8 + $0x58] sm:$0xff]
    %v1473 = vld [vmem:[#allocation8 + $0x60] sm:$0xff]
    %v1474 = vld [vmem:[#allocation8 + $0x68] sm:$0xff]
    %v1475 = vld [vmem:[#allocation8 + $0x70] sm:$0xff]
    %v1476 = vld [vmem:[#allocation8 + $0x78] sm:$0xff]
    %v1477 = vld [vmem:[#allocation8 + $0x80] sm:$0xff]
    %v1478 = vld [vmem:[#allocation8 + $0x88] sm:$0xff]
    %v1479 = vld [vmem:[#allocation8 + $0x90] sm:$0xff]
    %v1480 = vld [vmem:[#allocation8 + $0x98] sm:$0xff]
    %v1481 = vld [vmem:[#allocation8 + $0xa0] sm:$0xff]
    %v1482 = vld [vmem:[#allocation8 + $0xa8] sm:$0xff]
    %v1483 = vld [vmem:[#allocation8 + $0xb0] sm:$0xff]
    %v1484 = vld [vmem:[#allocation8 + $0xb8] sm:$0xff]
    %v1485 = vld [vmem:[#allocation8 + $0xc0] sm:$0xff]
    %v1486 = vld [vmem:[#allocation8 + $0xc8] sm:$0xff]
    %v1487 = vld [vmem:[#allocation8 + $0xd0] sm:$0xff]
    %v1488 = vld [vmem:[#allocation8 + $0xd8] sm:$0xff]
    %v1489 = vld [vmem:[#allocation8 + $0xe0] sm:$0xff]
    %v1490 = vld [vmem:[#allocation8 + $0xe8] sm:$0xff]
    %v1491 = vld [vmem:[#allocation8 + $0xf0] sm:$0xff]
    %v1492 = vld [vmem:[#allocation8 + $0xf8] sm:$0xff]
    %v1493 = vld [vmem:[#allocation8 + $0x100] sm:$0xff]
    %v1494 = vld [vmem:[#allocation8 + $0x108] sm:$0xff]
    %v1495 = vld [vmem:[#allocation8 + $0x110] sm:$0xff]
    %v1496 = vld [vmem:[#allocation8 + $0x118] sm:$0xff]
    %v1497 = vld [vmem:[#allocation8 + $0x120] sm:$0xff]
    %v1498 = vld [vmem:[#allocation8 + $0x128] sm:$0xff]
    %v1499 = vld [vmem:[#allocation8 + $0x130] sm:$0xff]
    %v1500 = vld [vmem:[#allocation8 + $0x138] sm:$0xff]
    %v1501 = vld [vmem:[#allocation8 + $0x140] sm:$0xff]
    %v1502 = vld [vmem:[#allocation8 + $0x148] sm:$0xff]
    %v1503 = vld [vmem:[#allocation8 + $0x150] sm:$0xff]
    %v1504 = vld [vmem:[#allocation8 + $0x158] sm:$0xff]
    %v1505 = vld [vmem:[#allocation8 + $0x160] sm:$0xff]
    %v1506 = vld [vmem:[#allocation8 + $0x168] sm:$0xff]
    %v1507 = vld [vmem:[#allocation8 + $0x170] sm:$0xff]
    %v1508 = vld [vmem:[#allocation8 + $0x178] sm:$0xff]
    %v1509 = vld [vmem:[#allocation8 + $0x180] sm:$0xff]
    %v1510 = vld [vmem:[#allocation8 + $0x188] sm:$0xff]
    %v1511 = vld [vmem:[#allocation8 + $0x190] sm:$0xff]
    %v1512 = vld [vmem:[#allocation8 + $0x198] sm:$0xff]
    %v1513 = vld [vmem:[#allocation8 + $0x1a0] sm:$0xff]
    %v1514 = vld [vmem:[#allocation8 + $0x1a8] sm:$0xff]
    %v1515 = vld [vmem:[#allocation8 + $0x1b0] sm:$0xff]
    %v1516 = vld [vmem:[#allocation8 + $0x1b8] sm:$0xff]
    %v1517 = vld [vmem:[#allocation8 + $0x1c0] sm:$0xff]
    %v1518 = vld [vmem:[#allocation8 + $0x1c8] sm:$0xff]
    %v1519 = vld [vmem:[#allocation8 + $0x1d0] sm:$0xff]
    %v1520 = vld [vmem:[#allocation8 + $0x1d8] sm:$0xff]
    %v1521 = vld [vmem:[#allocation8 + $0x1e0] sm:$0xff]
    %v1522 = vld [vmem:[#allocation8 + $0x1e8] sm:$0xff]
    %v1523 = vld [vmem:[#allocation8 + $0x1f0] sm:$0xff]
    %v1524 = vld [vmem:[#allocation8 + $0x1f8] sm:$0xff]
    %v1525 = vld [vmem:[%s4] sm:$0x3]
    %v1527 = vlaneseq
    %v1528 = vshrl.u32 %v1527, 7
    %v1529 = vsub.s32 0, %v1528
    %v1530 = vrot.slane %v1525, %v1529
    %v1531 = vlaneseq
    %v1532 = vshrl.u32 %v1531, 7
    %v1533 = vsub.s32 1, %v1532
    %v1534 = vrot.slane %v1525, %v1533
    %1537 = vmatprep.subr.mxu0 %v1492
    %1538 = vmatpush1.msra.mxu0 %v1491
    %1539 = vmatprep.subr.mxu0 %v1490
    %1540 = vmatpush1.msra.mxu0 %v1489
    %1541 = vmatprep.subr.mxu0 %v1488
    %1542 = vmatpush1.msra.mxu0 %v1487
    %1543 = vmatprep.subr.mxu0 %v1486
    %1544 = vmatpush1.msra.mxu0 %v1485
    %1545 = vmatprep.subr.mxu0 %v1484
    %1546 = vmatpush1.msra.mxu0 %v1483
    %1547 = vmatprep.subr.mxu0 %v1482
    %1548 = vmatpush1.msra.mxu0 %v1481
    %1549 = vmatprep.subr.mxu0 %v1480
    %1550 = vmatpush1.msra.mxu0 %v1479
    %1551 = vmatprep.subr.mxu0 %v1478
    %1552 = vmatpush1.msra.mxu0 %v1477
    %1553 = vmatprep.subr.mxu0 %v1476
    %1554 = vmatpush1.msra.mxu0 %v1475
    %1555 = vmatprep.subr.mxu0 %v1474
    %1556 = vmatpush1.msra.mxu0 %v1473
    %1557 = vmatprep.subr.mxu0 %v1472
    %1558 = vmatpush1.msra.mxu0 %v1471
    %1559 = vmatprep.subr.mxu0 %v1470
    %1560 = vmatpush1.msra.mxu0 %v1469
    %1561 = vmatprep.subr.mxu0 %v1468
    %1562 = vmatpush1.msra.mxu0 %v1467
    %1563 = vmatprep.subr.mxu0 %v1466
    %1564 = vmatpush1.msra.mxu0 %v1465
    %1565 = vmatprep.subr.mxu0 %v1464
    %1566 = vmatpush1.msra.mxu0 %v1463
    %1567 = vmatprep.subr.mxu0 %v1462
    %1568 = vmatpush1.msra.mxu0 %v1461
    %1569 = vmatprep.subr.mxu0 %v1524
    %1570 = vmatpush2.msra.mxu0 %v1523
    %1571 = vmatprep.subr.mxu0 %v1522
    %1572 = vmatpush2.msra.mxu0 %v1521
    %1573 = vmatprep.subr.mxu0 %v1520
    %1574 = vmatpush2.msra.mxu0 %v1519
    %1575 = vmatprep.subr.mxu0 %v1518
    %1576 = vmatpush2.msra.mxu0 %v1517
    %1577 = vmatprep.subr.mxu0 %v1516
    %1578 = vmatpush2.msra.mxu0 %v1515
    %1579 = vmatprep.subr.mxu0 %v1514
    %1580 = vmatpush2.msra.mxu0 %v1513
    %1581 = vmatprep.subr.mxu0 %v1512
    %1582 = vmatpush2.msra.mxu0 %v1511
    %1583 = vmatprep.subr.mxu0 %v1510
    %1584 = vmatpush2.msra.mxu0 %v1509
    %1585 = vmatprep.subr.mxu0 %v1508
    %1586 = vmatpush2.msra.mxu0 %v1507
    %1587 = vmatprep.subr.mxu0 %v1506
    %1588 = vmatpush2.msra.mxu0 %v1505
    %1589 = vmatprep.subr.mxu0 %v1504
    %1590 = vmatpush2.msra.mxu0 %v1503
    %1591 = vmatprep.subr.mxu0 %v1502
    %1592 = vmatpush2.msra.mxu0 %v1501
    %1593 = vmatprep.subr.mxu0 %v1500
    %1594 = vmatpush2.msra.mxu0 %v1499
    %1595 = vmatprep.subr.mxu0 %v1498
    %1596 = vmatpush2.msra.mxu0 %v1497
    %1597 = vmatprep.subr.mxu0 %v1496
    %1598 = vmatpush2.msra.mxu0 %v1495
    %1599 = vmatprep.subr.mxu0 %v1494
    %1600 = vmatpush2.msra.mxu0 %v1493
    %1601 = vmatprep.mubr.f32.mxu0 %v1430
    %1602 = vmatmul.mubr.f32.gmra.mxu0 %v1429
    %v1603 = vpop.f32.mrf.mxu0
    %v1604 = vadd.f32 %v1530, %v1603
    %v1605 = vpop.f32.mrf.mxu0
    %v1606 = vadd.f32 %v1534, %v1605
    %1607 = vmatprep.mubr.f32.mxu0 %v1432
    %1608 = vmatmul.mubr.f32.gmra.mxu0 %v1431
    %v1609 = vpop.f32.mrf.mxu0
    %v1610 = vadd.f32 %v1530, %v1609
    %v1611 = vpop.f32.mrf.mxu0
    %v1612 = vadd.f32 %v1534, %v1611
    %1613 = vmatprep.mubr.f32.mxu0 %v1434
    %1614 = vmatmul.mubr.f32.gmra.mxu0 %v1433
    %v1615 = vpop.f32.mrf.mxu0
    %v1616 = vadd.f32 %v1530, %v1615
    %v1617 = vpop.f32.mrf.mxu0
    %v1618 = vadd.f32 %v1534, %v1617
    %1619 = vmatprep.mubr.f32.mxu0 %v1436
    %1620 = vmatmul.mubr.f32.gmra.mxu0 %v1435
    %v1621 = vpop.f32.mrf.mxu0
    %v1622 = vadd.f32 %v1530, %v1621
    %v1623 = vpop.f32.mrf.mxu0
    %v1624 = vadd.f32 %v1534, %v1623
    %1625 = vmatprep.mubr.f32.mxu0 %v1438
    %1626 = vmatmul.mubr.f32.gmra.mxu0 %v1437
    %v1627 = vpop.f32.mrf.mxu0
    %v1628 = vadd.f32 %v1530, %v1627
    %v1629 = vpop.f32.mrf.mxu0
    %v1630 = vadd.f32 %v1534, %v1629
    %1631 = vmatprep.mubr.f32.mxu0 %v1440
    %1632 = vmatmul.mubr.f32.gmra.mxu0 %v1439
    %v1633 = vpop.f32.mrf.mxu0
    %v1634 = vadd.f32 %v1530, %v1633
    %v1635 = vpop.f32.mrf.mxu0
    %v1636 = vadd.f32 %v1534, %v1635
    %1637 = vmatprep.mubr.f32.mxu0 %v1442
    %1638 = vmatmul.mubr.f32.gmra.mxu0 %v1441
    %v1639 = vpop.f32.mrf.mxu0
    %v1640 = vadd.f32 %v1530, %v1639
    %v1641 = vpop.f32.mrf.mxu0
    %v1642 = vadd.f32 %v1534, %v1641
    %1643 = vmatprep.mubr.f32.mxu0 %v1444
    %1644 = vmatmul.mubr.f32.gmra.mxu0 %v1443
    %v1645 = vpop.f32.mrf.mxu0
    %v1646 = vadd.f32 %v1530, %v1645
    %v1647 = vpop.f32.mrf.mxu0
    %v1648 = vadd.f32 %v1534, %v1647
    %1649 = vmatprep.mubr.f32.mxu0 %v1446
    %1650 = vmatmul.mubr.f32.gmra.mxu0 %v1445
    %v1651 = vpop.f32.mrf.mxu0
    %v1652 = vadd.f32 %v1530, %v1651
    %v1653 = vpop.f32.mrf.mxu0
    %v1654 = vadd.f32 %v1534, %v1653
    %1655 = vmatprep.mubr.f32.mxu0 %v1448
    %1656 = vmatmul.mubr.f32.gmra.mxu0 %v1447
    %v1657 = vpop.f32.mrf.mxu0
    %v1658 = vadd.f32 %v1530, %v1657
    %v1659 = vpop.f32.mrf.mxu0
    %v1660 = vadd.f32 %v1534, %v1659
    %1661 = vmatprep.mubr.f32.mxu0 %v1450
    %1662 = vmatmul.mubr.f32.gmra.mxu0 %v1449
    %v1663 = vpop.f32.mrf.mxu0
    %v1664 = vadd.f32 %v1530, %v1663
    %v1665 = vpop.f32.mrf.mxu0
    %v1666 = vadd.f32 %v1534, %v1665
    %1667 = vmatprep.mubr.f32.mxu0 %v1452
    %1668 = vmatmul.mubr.f32.gmra.mxu0 %v1451
    %v1669 = vpop.f32.mrf.mxu0
    %v1670 = vadd.f32 %v1530, %v1669
    %v1671 = vpop.f32.mrf.mxu0
    %v1672 = vadd.f32 %v1534, %v1671
    %1673 = vmatprep.mubr.f32.mxu0 %v1454
    %1674 = vmatmul.mubr.f32.gmra.mxu0 %v1453
    %v1675 = vpop.f32.mrf.mxu0
    %v1676 = vadd.f32 %v1530, %v1675
    %v1677 = vpop.f32.mrf.mxu0
    %v1678 = vadd.f32 %v1534, %v1677
    %1679 = vmatprep.mubr.f32.mxu0 %v1456
    %1680 = vmatmul.mubr.f32.gmra.mxu0 %v1455
    %v1681 = vpop.f32.mrf.mxu0
    %v1682 = vadd.f32 %v1530, %v1681
    %v1683 = vpop.f32.mrf.mxu0
    %v1684 = vadd.f32 %v1534, %v1683
    %1685 = vmatprep.mubr.f32.mxu0 %v1458
    %1686 = vmatmul.mubr.f32.gmra.mxu0 %v1457
    %v1687 = vpop.f32.mrf.mxu0
    %v1688 = vadd.f32 %v1530, %v1687
    %v1689 = vpop.f32.mrf.mxu0
    %v1690 = vadd.f32 %v1534, %v1689
    %1691 = vmatprep.mubr.f32.mxu0 %v1460
    %1692 = vmatmul.mubr.f32.gmra.mxu0 %v1459
    %v1693 = vpop.f32.mrf.mxu0
    %v1694 = vadd.f32 %v1530, %v1693
    %v1695 = vpop.f32.mrf.mxu0
    %v1696 = vadd.f32 %v1534, %v1695
    %1697 = vdwg.mxu0
    %v1698 = vand.u32 2147483647, %v1604
    %v1699 = vand.u32 2147483647, %v1606
    %v1700 = vand.u32 2147483647, %v1610
    %v1701 = vand.u32 2147483647, %v1612
    %v1702 = vand.u32 2147483647, %v1616
    %v1703 = vand.u32 2147483647, %v1618
    %v1704 = vand.u32 2147483647, %v1622
    %v1705 = vand.u32 2147483647, %v1624
    %v1706 = vand.u32 2147483647, %v1628
    %v1707 = vand.u32 2147483647, %v1630
    %v1708 = vand.u32 2147483647, %v1634
    %v1709 = vand.u32 2147483647, %v1636
    %v1710 = vand.u32 2147483647, %v1640
    %v1711 = vand.u32 2147483647, %v1642
    %v1712 = vand.u32 2147483647, %v1646
    %v1713 = vand.u32 2147483647, %v1648
    %v1714 = vand.u32 2147483647, %v1652
    %v1715 = vand.u32 2147483647, %v1654
    %v1716 = vand.u32 2147483647, %v1658
    %v1717 = vand.u32 2147483647, %v1660
    %v1718 = vand.u32 2147483647, %v1664
    %v1719 = vand.u32 2147483647, %v1666
    %v1720 = vand.u32 2147483647, %v1670
    %v1721 = vand.u32 2147483647, %v1672
    %v1722 = vand.u32 2147483647, %v1676
    %v1723 = vand.u32 2147483647, %v1678
    %v1724 = vand.u32 2147483647, %v1682
    %v1725 = vand.u32 2147483647, %v1684
    %v1726 = vand.u32 2147483647, %v1688
    %v1727 = vand.u32 2147483647, %v1690
    %v1728 = vand.u32 2147483647, %v1694
    %v1729 = vand.u32 2147483647, %v1696
    %v1730 = vsub.f32 0.0, %v1698
    %v1731 = vsub.f32 0.0, %v1699
    %v1732 = vsub.f32 0.0, %v1700
    %v1733 = vsub.f32 0.0, %v1701
    %v1734 = vsub.f32 0.0, %v1702
    %v1735 = vsub.f32 0.0, %v1703
    %v1736 = vsub.f32 0.0, %v1704
    %v1737 = vsub.f32 0.0, %v1705
    %v1738 = vsub.f32 0.0, %v1706
    %v1739 = vsub.f32 0.0, %v1707
    %v1740 = vsub.f32 0.0, %v1708
    %v1741 = vsub.f32 0.0, %v1709
    %v1742 = vsub.f32 0.0, %v1710
    %v1743 = vsub.f32 0.0, %v1711
    %v1744 = vsub.f32 0.0, %v1712
    %v1745 = vsub.f32 0.0, %v1713
    %v1746 = vsub.f32 0.0, %v1714
    %v1747 = vsub.f32 0.0, %v1715
    %v1748 = vsub.f32 0.0, %v1716
    %v1749 = vsub.f32 0.0, %v1717
    %v1750 = vsub.f32 0.0, %v1718
    %v1751 = vsub.f32 0.0, %v1719
    %v1752 = vsub.f32 0.0, %v1720
    %v1753 = vsub.f32 0.0, %v1721
    %v1754 = vsub.f32 0.0, %v1722
    %v1755 = vsub.f32 0.0, %v1723
    %v1756 = vsub.f32 0.0, %v1724
    %v1757 = vsub.f32 0.0, %v1725
    %v1758 = vsub.f32 0.0, %v1726
    %v1759 = vsub.f32 0.0, %v1727
    %v1760 = vsub.f32 0.0, %v1728
    %v1761 = vsub.f32 0.0, %v1729
    %v1762 = vmul.f32 %v1730, 1.442695
    %v1763 = vpow.pop %v1762
    %v1764 = vmul.f32 %v1731, 1.442695
    %v1765 = vpow.pop %v1764
    %v1766 = vmul.f32 %v1732, 1.442695
    %v1767 = vpow.pop %v1766
    %v1768 = vmul.f32 %v1733, 1.442695
    %v1769 = vpow.pop %v1768
    %v1770 = vmul.f32 %v1734, 1.442695
    %v1771 = vpow.pop %v1770
    %v1772 = vmul.f32 %v1735, 1.442695
    %v1773 = vpow.pop %v1772
    %v1774 = vmul.f32 %v1736, 1.442695
    %v1775 = vpow.pop %v1774
    %v1776 = vmul.f32 %v1737, 1.442695
    %v1777 = vpow.pop %v1776
    %v1778 = vmul.f32 %v1738, 1.442695
    %v1779 = vpow.pop %v1778
    %v1780 = vmul.f32 %v1739, 1.442695
    %v1781 = vpow.pop %v1780
    %v1782 = vmul.f32 %v1740, 1.442695
    %v1783 = vpow.pop %v1782
    %v1784 = vmul.f32 %v1741, 1.442695
    %v1785 = vpow.pop %v1784
    %v1786 = vmul.f32 %v1742, 1.442695
    %v1787 = vpow.pop %v1786
    %v1788 = vmul.f32 %v1743, 1.442695
    %v1789 = vpow.pop %v1788
    %v1790 = vmul.f32 %v1744, 1.442695
    %v1791 = vpow.pop %v1790
    %v1792 = vmul.f32 %v1745, 1.442695
    %v1793 = vpow.pop %v1792
    %v1794 = vmul.f32 %v1746, 1.442695
    %v1795 = vpow.pop %v1794
    %v1796 = vmul.f32 %v1747, 1.442695
    %v1797 = vpow.pop %v1796
    %v1798 = vmul.f32 %v1748, 1.442695
    %v1799 = vpow.pop %v1798
    %v1800 = vmul.f32 %v1749, 1.442695
    %v1801 = vpow.pop %v1800
    %v1802 = vmul.f32 %v1750, 1.442695
    %v1803 = vpow.pop %v1802
    %v1804 = vmul.f32 %v1751, 1.442695
    %v1805 = vpow.pop %v1804
    %v1806 = vmul.f32 %v1752, 1.442695
    %v1807 = vpow.pop %v1806
    %v1808 = vmul.f32 %v1753, 1.442695
    %v1809 = vpow.pop %v1808
    %v1810 = vmul.f32 %v1754, 1.442695
    %v1811 = vpow.pop %v1810
    %v1812 = vmul.f32 %v1755, 1.442695
    %v1813 = vpow.pop %v1812
    %v1814 = vmul.f32 %v1756, 1.442695
    %v1815 = vpow.pop %v1814
    %v1816 = vmul.f32 %v1757, 1.442695
    %v1817 = vpow.pop %v1816
    %v1818 = vmul.f32 %v1758, 1.442695
    %v1819 = vpow.pop %v1818
    %v1820 = vmul.f32 %v1759, 1.442695
    %v1821 = vpow.pop %v1820
    %v1822 = vmul.f32 %v1760, 1.442695
    %v1823 = vpow.pop %v1822
    %v1824 = vmul.f32 %v1761, 1.442695
    %v1825 = vpow.pop %v1824
    %v1826 = vsub.f32 1.0, %v1763
    %v1827 = vsub.f32 1.0, %v1765
    %v1828 = vsub.f32 1.0, %v1767
    %v1829 = vsub.f32 1.0, %v1769
    %v1830 = vsub.f32 1.0, %v1771
    %v1831 = vsub.f32 1.0, %v1773
    %v1832 = vsub.f32 1.0, %v1775
    %v1833 = vsub.f32 1.0, %v1777
    %v1834 = vsub.f32 1.0, %v1779
    %v1835 = vsub.f32 1.0, %v1781
    %v1836 = vsub.f32 1.0, %v1783
    %v1837 = vsub.f32 1.0, %v1785
    %v1838 = vsub.f32 1.0, %v1787
    %v1839 = vsub.f32 1.0, %v1789
    %v1840 = vsub.f32 1.0, %v1791
    %v1841 = vsub.f32 1.0, %v1793
    %v1842 = vsub.f32 1.0, %v1795
    %v1843 = vsub.f32 1.0, %v1797
    %v1844 = vsub.f32 1.0, %v1799
    %v1845 = vsub.f32 1.0, %v1801
    %v1846 = vsub.f32 1.0, %v1803
    %v1847 = vsub.f32 1.0, %v1805
    %v1848 = vsub.f32 1.0, %v1807
    %v1849 = vsub.f32 1.0, %v1809
    %v1850 = vsub.f32 1.0, %v1811
    %v1851 = vsub.f32 1.0, %v1813
    %v1852 = vsub.f32 1.0, %v1815
    %v1853 = vsub.f32 1.0, %v1817
    %v1854 = vsub.f32 1.0, %v1819
    %v1855 = vsub.f32 1.0, %v1821
    %v1856 = vsub.f32 1.0, %v1823
    %v1857 = vsub.f32 1.0, %v1825
    %v1858 = vmul.f32 %v1763, %v1763
    %v1859 = vmul.f32 %v1765, %v1765
    %v1860 = vmul.f32 %v1767, %v1767
    %v1861 = vmul.f32 %v1769, %v1769
    %v1862 = vmul.f32 %v1771, %v1771
    %v1863 = vmul.f32 %v1773, %v1773
    %v1864 = vmul.f32 %v1775, %v1775
    %v1865 = vmul.f32 %v1777, %v1777
    %v1866 = vmul.f32 %v1779, %v1779
    %v1867 = vmul.f32 %v1781, %v1781
    %v1868 = vmul.f32 %v1783, %v1783
    %v1869 = vmul.f32 %v1785, %v1785
    %v1870 = vmul.f32 %v1787, %v1787
    %v1871 = vmul.f32 %v1789, %v1789
    %v1872 = vmul.f32 %v1791, %v1791
    %v1873 = vmul.f32 %v1793, %v1793
    %v1874 = vmul.f32 %v1795, %v1795
    %v1875 = vmul.f32 %v1797, %v1797
    %v1876 = vmul.f32 %v1799, %v1799
    %v1877 = vmul.f32 %v1801, %v1801
    %v1878 = vmul.f32 %v1803, %v1803
    %v1879 = vmul.f32 %v1805, %v1805
    %v1880 = vmul.f32 %v1807, %v1807
    %v1881 = vmul.f32 %v1809, %v1809
    %v1882 = vmul.f32 %v1811, %v1811
    %v1883 = vmul.f32 %v1813, %v1813
    %v1884 = vmul.f32 %v1815, %v1815
    %v1885 = vmul.f32 %v1817, %v1817
    %v1886 = vmul.f32 %v1819, %v1819
    %v1887 = vmul.f32 %v1821, %v1821
    %v1888 = vmul.f32 %v1823, %v1823
    %v1889 = vmul.f32 %v1825, %v1825
    %v1890 = vadd.f32 %v1858, 1.0
    %v1891 = vadd.f32 %v1859, 1.0
    %v1892 = vadd.f32 %v1860, 1.0
    %v1893 = vadd.f32 %v1861, 1.0
    %v1894 = vadd.f32 %v1862, 1.0
    %v1895 = vadd.f32 %v1863, 1.0
    %v1896 = vadd.f32 %v1864, 1.0
    %v1897 = vadd.f32 %v1865, 1.0
    %v1898 = vadd.f32 %v1866, 1.0
    %v1899 = vadd.f32 %v1867, 1.0
    %v1900 = vadd.f32 %v1868, 1.0
    %v1901 = vadd.f32 %v1869, 1.0
    %v1902 = vadd.f32 %v1870, 1.0
    %v1903 = vadd.f32 %v1871, 1.0
    %v1904 = vadd.f32 %v1872, 1.0
    %v1905 = vadd.f32 %v1873, 1.0
    %v1906 = vadd.f32 %v1874, 1.0
    %v1907 = vadd.f32 %v1875, 1.0
    %v1908 = vadd.f32 %v1876, 1.0
    %v1909 = vadd.f32 %v1877, 1.0
    %v1910 = vadd.f32 %v1878, 1.0
    %v1911 = vadd.f32 %v1879, 1.0
    %v1912 = vadd.f32 %v1880, 1.0
    %v1913 = vadd.f32 %v1881, 1.0
    %v1914 = vadd.f32 %v1882, 1.0
    %v1915 = vadd.f32 %v1883, 1.0
    %v1916 = vadd.f32 %v1884, 1.0
    %v1917 = vadd.f32 %v1885, 1.0
    %v1918 = vadd.f32 %v1886, 1.0
    %v1919 = vadd.f32 %v1887, 1.0
    %v1920 = vadd.f32 %v1888, 1.0
    %v1921 = vadd.f32 %v1889, 1.0
    %v1922 = vrcp.pop %v1890
    %v1923 = vrcp.pop %v1891
    %v1924 = vrcp.pop %v1892
    %v1925 = vrcp.pop %v1893
    %v1926 = vrcp.pop %v1894
    %v1927 = vrcp.pop %v1895
    %v1928 = vrcp.pop %v1896
    %v1929 = vrcp.pop %v1897
    %v1930 = vrcp.pop %v1898
    %v1931 = vrcp.pop %v1899
    %v1932 = vrcp.pop %v1900
    %v1933 = vrcp.pop %v1901
    %v1934 = vrcp.pop %v1902
    %v1935 = vrcp.pop %v1903
    %v1936 = vrcp.pop %v1904
    %v1937 = vrcp.pop %v1905
    %v1938 = vrcp.pop %v1906
    %v1939 = vrcp.pop %v1907
    %v1940 = vrcp.pop %v1908
    %v1941 = vrcp.pop %v1909
    %v1942 = vrcp.pop %v1910
    %v1943 = vrcp.pop %v1911
    %v1944 = vrcp.pop %v1912
    %v1945 = vrcp.pop %v1913
    %v1946 = vrcp.pop %v1914
    %v1947 = vrcp.pop %v1915
    %v1948 = vrcp.pop %v1916
    %v1949 = vrcp.pop %v1917
    %v1950 = vrcp.pop %v1918
    %v1951 = vrcp.pop %v1919
    %v1952 = vrcp.pop %v1920
    %v1953 = vrcp.pop %v1921
    %v1954 = vmul.f32 %v1826, %v1922
    %v1955 = vmul.f32 %v1827, %v1923
    %v1956 = vmul.f32 %v1828, %v1924
    %v1957 = vmul.f32 %v1829, %v1925
    %v1958 = vmul.f32 %v1830, %v1926
    %v1959 = vmul.f32 %v1831, %v1927
    %v1960 = vmul.f32 %v1832, %v1928
    %v1961 = vmul.f32 %v1833, %v1929
    %v1962 = vmul.f32 %v1834, %v1930
    %v1963 = vmul.f32 %v1835, %v1931
    %v1964 = vmul.f32 %v1836, %v1932
    %v1965 = vmul.f32 %v1837, %v1933
    %v1966 = vmul.f32 %v1838, %v1934
    %v1967 = vmul.f32 %v1839, %v1935
    %v1968 = vmul.f32 %v1840, %v1936
    %v1969 = vmul.f32 %v1841, %v1937
    %v1970 = vmul.f32 %v1842, %v1938
    %v1971 = vmul.f32 %v1843, %v1939
    %v1972 = vmul.f32 %v1844, %v1940
    %v1973 = vmul.f32 %v1845, %v1941
    %v1974 = vmul.f32 %v1846, %v1942
    %v1975 = vmul.f32 %v1847, %v1943
    %v1976 = vmul.f32 %v1848, %v1944
    %v1977 = vmul.f32 %v1849, %v1945
    %v1978 = vmul.f32 %v1850, %v1946
    %v1979 = vmul.f32 %v1851, %v1947
    %v1980 = vmul.f32 %v1852, %v1948
    %v1981 = vmul.f32 %v1853, %v1949
    %v1982 = vmul.f32 %v1854, %v1950
    %v1983 = vmul.f32 %v1855, %v1951
    %v1984 = vmul.f32 %v1856, %v1952
    %v1985 = vmul.f32 %v1857, %v1953
    %vm1986 = vcmp.ge.f32.partialorder %v1604, 0.0
    %vm1987 = vcmp.ge.f32.partialorder %v1606, 0.0
    %vm1988 = vcmp.ge.f32.partialorder %v1610, 0.0
    %vm1989 = vcmp.ge.f32.partialorder %v1612, 0.0
    %vm1990 = vcmp.ge.f32.partialorder %v1616, 0.0
    %vm1991 = vcmp.ge.f32.partialorder %v1618, 0.0
    %vm1992 = vcmp.ge.f32.partialorder %v1622, 0.0
    %vm1993 = vcmp.ge.f32.partialorder %v1624, 0.0
    %vm1994 = vcmp.ge.f32.partialorder %v1628, 0.0
    %vm1995 = vcmp.ge.f32.partialorder %v1630, 0.0
    %vm1996 = vcmp.ge.f32.partialorder %v1634, 0.0
    %vm1997 = vcmp.ge.f32.partialorder %v1636, 0.0
    %vm1998 = vcmp.ge.f32.partialorder %v1640, 0.0
    %vm1999 = vcmp.ge.f32.partialorder %v1642, 0.0
    %vm2000 = vcmp.ge.f32.partialorder %v1646, 0.0
    %vm2001 = vcmp.ge.f32.partialorder %v1648, 0.0
    %vm2002 = vcmp.ge.f32.partialorder %v1652, 0.0
    %vm2003 = vcmp.ge.f32.partialorder %v1654, 0.0
    %vm2004 = vcmp.ge.f32.partialorder %v1658, 0.0
    %vm2005 = vcmp.ge.f32.partialorder %v1660, 0.0
    %vm2006 = vcmp.ge.f32.partialorder %v1664, 0.0
    %vm2007 = vcmp.ge.f32.partialorder %v1666, 0.0
    %vm2008 = vcmp.ge.f32.partialorder %v1670, 0.0
    %vm2009 = vcmp.ge.f32.partialorder %v1672, 0.0
    %vm2010 = vcmp.ge.f32.partialorder %v1676, 0.0
    %vm2011 = vcmp.ge.f32.partialorder %v1678, 0.0
    %vm2012 = vcmp.ge.f32.partialorder %v1682, 0.0
    %vm2013 = vcmp.ge.f32.partialorder %v1684, 0.0
    %vm2014 = vcmp.ge.f32.partialorder %v1688, 0.0
    %vm2015 = vcmp.ge.f32.partialorder %v1690, 0.0
    %vm2016 = vcmp.ge.f32.partialorder %v1694, 0.0
    %vm2017 = vcmp.ge.f32.partialorder %v1696, 0.0
    %v2018 = vsub.f32 0.0, %v1763
    %v2019 = vsub.f32 0.0, %v1765
    %v2020 = vsub.f32 0.0, %v1767
    %v2021 = vsub.f32 0.0, %v1769
    %v2022 = vsub.f32 0.0, %v1771
    %v2023 = vsub.f32 0.0, %v1773
    %v2024 = vsub.f32 0.0, %v1775
    %v2025 = vsub.f32 0.0, %v1777
    %v2026 = vsub.f32 0.0, %v1779
    %v2027 = vsub.f32 0.0, %v1781
    %v2028 = vsub.f32 0.0, %v1783
    %v2029 = vsub.f32 0.0, %v1785
    %v2030 = vsub.f32 0.0, %v1787
    %v2031 = vsub.f32 0.0, %v1789
    %v2032 = vsub.f32 0.0, %v1791
    %v2033 = vsub.f32 0.0, %v1793
    %v2034 = vsub.f32 0.0, %v1795
    %v2035 = vsub.f32 0.0, %v1797
    %v2036 = vsub.f32 0.0, %v1799
    %v2037 = vsub.f32 0.0, %v1801
    %v2038 = vsub.f32 0.0, %v1803
    %v2039 = vsub.f32 0.0, %v1805
    %v2040 = vsub.f32 0.0, %v1807
    %v2041 = vsub.f32 0.0, %v1809
    %v2042 = vsub.f32 0.0, %v1811
    %v2043 = vsub.f32 0.0, %v1813
    %v2044 = vsub.f32 0.0, %v1815
    %v2045 = vsub.f32 0.0, %v1817
    %v2046 = vsub.f32 0.0, %v1819
    %v2047 = vsub.f32 0.0, %v1821
    %v2048 = vsub.f32 0.0, %v1823
    %v2049 = vsub.f32 0.0, %v1825
    %v2050 = vmul.f32 %v2018, %v1954
    %v2051 = vmul.f32 %v2019, %v1955
    %v2052 = vmul.f32 %v2020, %v1956
    %v2053 = vmul.f32 %v2021, %v1957
    %v2054 = vmul.f32 %v2022, %v1958
    %v2055 = vmul.f32 %v2023, %v1959
    %v2056 = vmul.f32 %v2024, %v1960
    %v2057 = vmul.f32 %v2025, %v1961
    %v2058 = vmul.f32 %v2026, %v1962
    %v2059 = vmul.f32 %v2027, %v1963
    %v2060 = vmul.f32 %v2028, %v1964
    %v2061 = vmul.f32 %v2029, %v1965
    %v2062 = vmul.f32 %v2030, %v1966
    %v2063 = vmul.f32 %v2031, %v1967
    %v2064 = vmul.f32 %v2032, %v1968
    %v2065 = vmul.f32 %v2033, %v1969
    %v2066 = vmul.f32 %v2034, %v1970
    %v2067 = vmul.f32 %v2035, %v1971
    %v2068 = vmul.f32 %v2036, %v1972
    %v2069 = vmul.f32 %v2037, %v1973
    %v2070 = vmul.f32 %v2038, %v1974
    %v2071 = vmul.f32 %v2039, %v1975
    %v2072 = vmul.f32 %v2040, %v1976
    %v2073 = vmul.f32 %v2041, %v1977
    %v2074 = vmul.f32 %v2042, %v1978
    %v2075 = vmul.f32 %v2043, %v1979
    %v2076 = vmul.f32 %v2044, %v1980
    %v2077 = vmul.f32 %v2045, %v1981
    %v2078 = vmul.f32 %v2046, %v1982
    %v2079 = vmul.f32 %v2047, %v1983
    %v2080 = vmul.f32 %v2048, %v1984
    %v2081 = vmul.f32 %v2049, %v1985
    %v2082 = vsel %vm1986, %v1954, %v2050
    %v2083 = vsel %vm1987, %v1955, %v2051
    %v2084 = vsel %vm1988, %v1956, %v2052
    %v2085 = vsel %vm1989, %v1957, %v2053
    %v2086 = vsel %vm1990, %v1958, %v2054
    %v2087 = vsel %vm1991, %v1959, %v2055
    %v2088 = vsel %vm1992, %v1960, %v2056
    %v2089 = vsel %vm1993, %v1961, %v2057
    %v2090 = vsel %vm1994, %v1962, %v2058
    %v2091 = vsel %vm1995, %v1963, %v2059
    %v2092 = vsel %vm1996, %v1964, %v2060
    %v2093 = vsel %vm1997, %v1965, %v2061
    %v2094 = vsel %vm1998, %v1966, %v2062
    %v2095 = vsel %vm1999, %v1967, %v2063
    %v2096 = vsel %vm2000, %v1968, %v2064
    %v2097 = vsel %vm2001, %v1969, %v2065
    %v2098 = vsel %vm2002, %v1970, %v2066
    %v2099 = vsel %vm2003, %v1971, %v2067
    %v2100 = vsel %vm2004, %v1972, %v2068
    %v2101 = vsel %vm2005, %v1973, %v2069
    %v2102 = vsel %vm2006, %v1974, %v2070
    %v2103 = vsel %vm2007, %v1975, %v2071
    %v2104 = vsel %vm2008, %v1976, %v2072
    %v2105 = vsel %vm2009, %v1977, %v2073
    %v2106 = vsel %vm2010, %v1978, %v2074
    %v2107 = vsel %vm2011, %v1979, %v2075
    %v2108 = vsel %vm2012, %v1980, %v2076
    %v2109 = vsel %vm2013, %v1981, %v2077
    %v2110 = vsel %vm2014, %v1982, %v2078
    %v2111 = vsel %vm2015, %v1983, %v2079
    %v2112 = vsel %vm2016, %v1984, %v2080
    %v2113 = vsel %vm2017, %v1985, %v2081
    %v2114 = vadd.f32 %v832, %v2082
    %v2115 = vadd.f32 %v833, %v2083
    %v2116 = vadd.f32 %v834, %v2084
    %v2117 = vadd.f32 %v835, %v2085
    %v2118 = vadd.f32 %v836, %v2086
    %v2119 = vadd.f32 %v837, %v2087
    %v2120 = vadd.f32 %v838, %v2088
    %v2121 = vadd.f32 %v839, %v2089
    %v2122 = vadd.f32 %v840, %v2090
    %v2123 = vadd.f32 %v841, %v2091
    %v2124 = vadd.f32 %v842, %v2092
    %v2125 = vadd.f32 %v843, %v2093
    %v2126 = vadd.f32 %v844, %v2094
    %v2127 = vadd.f32 %v845, %v2095
    %v2128 = vadd.f32 %v846, %v2096
    %v2129 = vadd.f32 %v847, %v2097
    %v2130 = vadd.f32 %v848, %v2098
    %v2131 = vadd.f32 %v849, %v2099
    %v2132 = vadd.f32 %v850, %v2100
    %v2133 = vadd.f32 %v851, %v2101
    %v2134 = vadd.f32 %v852, %v2102
    %v2135 = vadd.f32 %v853, %v2103
    %v2136 = vadd.f32 %v854, %v2104
    %v2137 = vadd.f32 %v855, %v2105
    %v2138 = vadd.f32 %v856, %v2106
    %v2139 = vadd.f32 %v857, %v2107
    %v2140 = vadd.f32 %v858, %v2108
    %v2141 = vadd.f32 %v859, %v2109
    %v2142 = vadd.f32 %v860, %v2110
    %v2143 = vadd.f32 %v861, %v2111
    %v2144 = vadd.f32 %v862, %v2112
    %v2145 = vadd.f32 %v863, %v2113
    %2146 = vst [vmem:[#allocation10] sm:$0xff] %v2114
    %2147 = vst [vmem:[#allocation10 + $0x8] sm:$0xff] %v2115
    %2148 = vst [vmem:[#allocation10 + $0x10] sm:$0xff] %v2116
    %2149 = vst [vmem:[#allocation10 + $0x18] sm:$0xff] %v2117
    %2150 = vst [vmem:[#allocation10 + $0x20] sm:$0xff] %v2118
    %2151 = vst [vmem:[#allocation10 + $0x28] sm:$0xff] %v2119
    %2152 = vst [vmem:[#allocation10 + $0x30] sm:$0xff] %v2120
    %2153 = vst [vmem:[#allocation10 + $0x38] sm:$0xff] %v2121
    %2154 = vst [vmem:[#allocation10 + $0x40] sm:$0xff] %v2122
    %2155 = vst [vmem:[#allocation10 + $0x48] sm:$0xff] %v2123
    %2156 = vst [vmem:[#allocation10 + $0x50] sm:$0xff] %v2124
    %2157 = vst [vmem:[#allocation10 + $0x58] sm:$0xff] %v2125
    %2158 = vst [vmem:[#allocation10 + $0x60] sm:$0xff] %v2126
    %2159 = vst [vmem:[#allocation10 + $0x68] sm:$0xff] %v2127
    %2160 = vst [vmem:[#allocation10 + $0x70] sm:$0xff] %v2128
    %2161 = vst [vmem:[#allocation10 + $0x78] sm:$0xff] %v2129
    %2162 = vst [vmem:[#allocation10 + $0x80] sm:$0xff] %v2130
    %2163 = vst [vmem:[#allocation10 + $0x88] sm:$0xff] %v2131
    %2164 = vst [vmem:[#allocation10 + $0x90] sm:$0xff] %v2132
    %2165 = vst [vmem:[#allocation10 + $0x98] sm:$0xff] %v2133
    %2166 = vst [vmem:[#allocation10 + $0xa0] sm:$0xff] %v2134
    %2167 = vst [vmem:[#allocation10 + $0xa8] sm:$0xff] %v2135
    %2168 = vst [vmem:[#allocation10 + $0xb0] sm:$0xff] %v2136
    %2169 = vst [vmem:[#allocation10 + $0xb8] sm:$0xff] %v2137
    %2170 = vst [vmem:[#allocation10 + $0xc0] sm:$0xff] %v2138
    %2171 = vst [vmem:[#allocation10 + $0xc8] sm:$0xff] %v2139
    %2172 = vst [vmem:[#allocation10 + $0xd0] sm:$0xff] %v2140
    %2173 = vst [vmem:[#allocation10 + $0xd8] sm:$0xff] %v2141
    %2174 = vst [vmem:[#allocation10 + $0xe0] sm:$0xff] %v2142
    %2175 = vst [vmem:[#allocation10 + $0xe8] sm:$0xff] %v2143
    %2176 = vst [vmem:[#allocation10 + $0xf0] sm:$0xff] %v2144
    %2177 = vst [vmem:[#allocation10 + $0xf8] sm:$0xff] %v2145
    // Predicated region
    $region42: #{tpu_custom_call.1} parent=1 // pred_check
      _
    $region43: #{tpu_custom_call.1} parent=1 // pred_check_branch
      %2179 = sbr.rel (0) target = $region45
    $region44: #{tpu_custom_call.1} parent=1 // pred_region
      %s2181 = ssub.s32 4096, 4096
      %2182 = vsyncadd [#allocation4], %s2181
      %s2183 = sshll.u32 [#allocation10], 4
      %s2184 = int_to_ptr.vmem [resolvable:$true] %s2183
      %2189 = dma.vmem_to_hbm [thread:$0]  %s2184, 4096, %s6, [#allocation4], 256, 256, 16
    $region45: #{tpu_custom_call.1} parent=1 // pred_fallthru
      _
    // Predicated region
    $region46: #{tpu_custom_call.1} parent=1 // pred_check
      _
    $region47: #{tpu_custom_call.1} parent=1 // pred_check_branch
      %2191 = sbr.rel (0) target = $region49
    $region48: #{tpu_custom_call.1} parent=1 // pred_region
      %2192 = dma.done [#allocation4], 4096
    $region49: #{tpu_custom_call.1} parent=1 // pred_fallthru
      _
    %2193 = vsyncpa [#allocation3], 1
    %2194 = vsyncpa [#allocation6], 1
    %2195 = vsyncpa [#allocation9], 1
    %2196 = vsyncpa [#allocation4], 1

</llo_original>
